<compile_context>
chip_gen: v7x
topology: tpu7x:2x2x1
jax: 0.10.0
libtpu: 0.0.40
codegen_flags: <defaults>
</compile_context>

<pallas_src>
import functools
import math

import jax
import jax.numpy as jnp
from jax.experimental import pallas as pl
from jax.experimental.pallas import tpu as pltpu


# ----------------------------------------------------------------------------
# Fused Pallas kernel: grouped-conv -> groupnorm -> VQ (argmin + gather) -> ST
# ----------------------------------------------------------------------------
def _kmeans_kernel(x_ref, w_ref, gnw_ref, gnb_ref, embT_ref, emb_ref, embsq_ref,
                   out_ref, ze_ref, zq_ref, idx_ref, *, G, V, C, L, eps):
    # x_ref:(1,L,D) w_ref:(D,D) gnw/gnb:(1,D)
    # embT_ref:(G,V,C) emb_ref:(G,C,V) embsq_ref:(G,1,C)
    x = x_ref[0]                                                       # (L, D)

    # grouped 1x1 conv as one block-diagonal dense matmul (MXU, K=D)
    ze_pre = jnp.dot(x, w_ref[...], preferred_element_type=jnp.float32)  # (L, D)

    zq_cols, zn_cols, idx_cols = [], [], []
    for g in range(G):                                  # static, unrolled (G=2)
        sl = slice(g * V, (g + 1) * V)
        zg = ze_pre[:, sl]                                             # (L, V)

        # GroupNorm over this (group-channels x length) slab (biased variance)
        mean = jnp.mean(zg, axis=(0, 1), keepdims=True)                # (1, 1)
        var = jnp.mean(jnp.square(zg - mean), axis=(0, 1), keepdims=True)
        zn = (zg - mean) * jax.lax.rsqrt(var + eps)                    # EUP rsqrt
        zn = zn * gnw_ref[:, sl] + gnb_ref[:, sl]                      # (L, V)

        # squared-distance proxy: ||e||^2 - 2 z.e  (same argmin as ||z-e||)
        scores = jnp.dot(zn, embT_ref[g],
                         preferred_element_type=jnp.float32)           # (L, C)
        dist = embsq_ref[g] - 2.0 * scores                             # (L, C)

        # first-occurrence argmin over codes (min + iota select, lane reduce)
        dmin = jnp.min(dist, axis=-1, keepdims=True)                   # (L, 1)
        iota = jax.lax.broadcasted_iota(jnp.int32, (L, C), 1)
        idx = jnp.min(jnp.where(dist <= dmin, iota, C),
                      axis=-1, keepdims=True)                          # (L, 1)

        # gather code vectors via one-hot matmul on the MXU (K = C)
        onehot = (iota == idx).astype(jnp.float32)                     # (L, C)
        zq_g = jnp.dot(onehot, emb_ref[g],
                       preferred_element_type=jnp.float32)             # (L, V)

        zq_cols.append(zq_g)
        zn_cols.append(zn)
        idx_cols.append(idx)

    zq = jnp.concatenate(zq_cols, axis=-1)                             # (L, D)
    zn_full = jnp.concatenate(zn_cols, axis=-1)                        # (L, D)

    # straight-through forward value: (zq + ze) - ze  (matches torch fp order)
    out_ref[0] = ((zq + zn_full) - zn_full).astype(out_ref.dtype)
    ze_ref[0] = zn_full.astype(ze_ref.dtype)
    zq_ref[0] = zq.astype(zq_ref.dtype)
    idx_ref[0] = jnp.concatenate(idx_cols, axis=-1).astype(jnp.int32)


def kmeans_quantizer_forward(x, w_blockdiag, gn_w, gn_b, embT, emb_g, emb_sq,
                             *, num_groups, eps=1e-5):
    """Run the fused quantizer forward. x: (bs, L, D) channels-last."""
    bs, L, D = x.shape
    G = num_groups
    V = D // G
    C = emb_g.shape[1]

    kernel = functools.partial(_kmeans_kernel, G=G, V=V, C=C, L=L, eps=eps)
    out_shape = (
        jax.ShapeDtypeStruct((bs, L, D), x.dtype),       # straight-through out
        jax.ShapeDtypeStruct((bs, L, D), jnp.float32),   # ze (post-projection)
        jax.ShapeDtypeStruct((bs, L, D), jnp.float32),   # zq (quantized)
        jax.ShapeDtypeStruct((bs, L, G), jnp.int32),     # cluster ids
    )
    return pl.pallas_call(
        kernel,
        out_shape=out_shape,
        grid_spec=pltpu.PrefetchScalarGridSpec(
            num_scalar_prefetch=0,
            grid=(bs,),
            in_specs=[
                pl.BlockSpec((1, L, D), lambda b: (b, 0, 0)),   # x tile
                pl.BlockSpec((D, D), lambda b: (0, 0)),         # block-diag conv W^T
                pl.BlockSpec((1, D), lambda b: (0, 0)),         # GN weight
                pl.BlockSpec((1, D), lambda b: (0, 0)),         # GN bias
                pl.BlockSpec((G, V, C), lambda b: (0, 0, 0)),   # emb^T  (scores)
                pl.BlockSpec((G, C, V), lambda b: (0, 0, 0)),   # emb    (gather)
                pl.BlockSpec((G, 1, C), lambda b: (0, 0, 0)),   # ||emb||^2
            ],
            out_specs=[
                pl.BlockSpec((1, L, D), lambda b: (b, 0, 0)),
                pl.BlockSpec((1, L, D), lambda b: (b, 0, 0)),
                pl.BlockSpec((1, L, D), lambda b: (b, 0, 0)),
                pl.BlockSpec((1, L, G), lambda b: (b, 0, 0)),
            ],
        ),
        compiler_params=pltpu.CompilerParams(
            dimension_semantics=("parallel",)),
    )(x, w_blockdiag, gn_w.reshape(1, D), gn_b.reshape(1, D), embT, emb_g, emb_sq)


# ----------------------------------------------------------------------------
# JAX wrapper matching the PyTorch KMeansQuantizer module
# ----------------------------------------------------------------------------
class KMeansQuantizer:
    def __init__(self, key, dim, codeDim, numGroups=2, numCodes=320,
                 combineGroups=True, gamma=0.25, eps=1e-5):
        assert codeDim % numGroups == 0
        # the .view() in the torch forward requires dim == numGroups * varDim
        assert dim == codeDim, "forward requires dim == codeDim"
        self.dim = dim
        self.numGroups = numGroups
        self.numCodes = numCodes
        self.combineGroups = combineGroups
        self.varDim = codeDim // numGroups
        self.gamma = gamma
        self.eps = eps
        self.ze = None
        self.zq = None

        k1, k2, k3, k4 = jax.random.split(key, 4)
        emb_groups = 1 if combineGroups else numGroups
        self.embeddings = 0.01 * jax.random.normal(
            k1, (numCodes, emb_groups, self.varDim), jnp.float32)
        # Conv1d(dim, dim, k=1, groups=numGroups, bias=False) weight: (dim, dim/G, 1)
        self.conv_w = jax.random.normal(
            k2, (dim, dim // numGroups, 1), jnp.float32) / math.sqrt(dim // numGroups)
        # GroupNorm affine (random so the path is exercised)
        self.gn_w = 1.0 + 0.1 * jax.random.normal(k3, (dim,), jnp.float32)
        self.gn_b = 0.01 * jax.random.normal(k4, (dim,), jnp.float32)

        # --- derived, precomputed once (algebra/layout in the wrapper) ---
        G, V, C, D = numGroups, self.varDim, numCodes, dim
        emb = self.embeddings
        if combineGroups:
            emb = jnp.broadcast_to(emb, (C, G, V))
        self._emb_g = jnp.transpose(emb, (1, 0, 2))          # (G, C, V)  gather
        self._embT = jnp.transpose(self._emb_g, (0, 2, 1))    # (G, V, C)  scores
        self._emb_sq = jnp.sum(self._emb_g * self._emb_g,
                               axis=-1).reshape(G, 1, C)      # (G, 1, C)
        # fold the grouped 1x1 conv into one block-diagonal (D, D) matmul weight
        wbd = jnp.zeros((D, D), jnp.float32)
        for g in range(G):
            wg = self.conv_w[g * V:(g + 1) * V, :, 0]         # (V_out, V_in)
            wbd = wbd.at[g * V:(g + 1) * V, g * V:(g + 1) * V].set(wg.T)
        self._w_blockdiag = wbd

    @property
    def expandEmbedding(self):
        if self.combineGroups:
            return jnp.broadcast_to(
                self.embeddings, (self.numCodes, self.numGroups, self.varDim))
        return self.embeddings

    def computeLoss(self):
        latent = jnp.mean((self.zq - jax.lax.stop_gradient(self.ze)) ** 2)
        commit = jnp.mean((self.ze - jax.lax.stop_gradient(self.zq)) ** 2)
        return latent + self.gamma * commit

    def __call__(self, x, enc_len=None, returnClusterIds=False):
        out, ze, zq, idx = kmeans_quantizer_forward(
            x, self._w_blockdiag, self.gn_w, self.gn_b,
            self._embT, self._emb_g, self._emb_sq,
            num_groups=self.numGroups, eps=self.eps)
        if returnClusterIds:
            return idx
        # torch stores these channels-first (bs, dim, l)
        self.ze = jnp.transpose(ze, (0, 2, 1))
        self.zq = jnp.transpose(zq, (0, 2, 1))
        return out


# ----------------------------------------------------------------------------
# Pure-JAX reference mirroring the PyTorch forward
# ----------------------------------------------------------------------------
def _reference_forward(x, conv_w, gn_w, gn_b, embeddings, numGroups,
                       combineGroups, eps=1e-5):
    bs, L, D = x.shape
    G = numGroups
    V = D // G
    C = embeddings.shape[0]
    emb = jnp.broadcast_to(embeddings, (C, G, V)) if combineGroups else embeddings

    xt = jnp.transpose(x, (0, 2, 1))                               # (bs, D, L)
    ze_groups = []
    for g in range(G):
        wg = conv_w[g * V:(g + 1) * V, :, 0]                       # (V, V)
        xg = xt[:, g * V:(g + 1) * V, :]                           # (bs, V, L)
        ze_groups.append(jnp.einsum('oi,bil->bol', wg, xg))
    ze = jnp.concatenate(ze_groups, axis=1)                        # (bs, D, L)

    zr = ze.reshape(bs, G, V, L)
    mean = jnp.mean(zr, axis=(2, 3), keepdims=True)
    var = jnp.mean((zr - mean) ** 2, axis=(2, 3), keepdims=True)
    zn = ((zr - mean) / jnp.sqrt(var + eps)).reshape(bs, D, L)
    zn = zn * gn_w[None, :, None] + gn_b[None, :, None]            # projection out

    ze_ = zn.reshape(bs, G, V, L).transpose(0, 3, 1, 2)            # (bs, L, G, V)
    diff = ze_[None] - emb[:, None, None]                          # (C,bs,L,G,V)
    dist = jnp.sqrt(jnp.sum(diff * diff, axis=-1))                 # (C,bs,L,G)
    idx = jnp.argmin(dist, axis=0)                                 # (bs, L, G)
    zq = jnp.stack([emb[idx[..., g], g] for g in range(G)], axis=-2)
    zq = zq.reshape(bs, L, D)                                      # (bs, L, D)
    return zq, zn, jnp.transpose(zq, (0, 2, 1)), idx


# ----------------------------------------------------------------------------
if __name__ == "__main__":
    key = jax.random.PRNGKey(0)
    BS, L = 2, 128
    DIM = CODE_DIM = 256          # numGroups=2 -> varDim=128 (lane-aligned)
    NUM_GROUPS = 2
    NUM_CODES = 320

    quant = KMeansQuantizer(key, dim=DIM, codeDim=CODE_DIM,
                            numGroups=NUM_GROUPS, numCodes=NUM_CODES,
                            combineGroups=True)

    kx = jax.random.fold_in(key, 99)
    x = jax.random.normal(kx, (BS, L, DIM), jnp.float32)

    out = quant(x)
    jax.block_until_ready(out)
    ids = quant(x, returnClusterIds=True)
    jax.block_until_ready(ids)

    # reference check
    out_ref, ze_ref, zq_ref, idx_ref = _reference_forward(
        x, quant.conv_w, quant.gn_w, quant.gn_b, quant.embeddings,
        NUM_GROUPS, True, eps=quant.eps)

    assert out.shape == (BS, L, DIM)
    assert ids.shape == (BS, L, NUM_GROUPS)
    assert quant.ze.shape == (BS, DIM, L) and quant.zq.shape == (BS, DIM, L)
    assert jnp.array_equal(ids, idx_ref), "cluster ids mismatch"
    assert jnp.allclose(out, out_ref, atol=1e-4), "forward output mismatch"
    assert jnp.allclose(quant.ze, ze_ref, atol=1e-4), "ze mismatch"
    assert jnp.allclose(quant.zq, zq_ref, atol=1e-4), "zq mismatch"
    _ = quant.computeLoss()

    print("KERNEL_OK")
</pallas_src>

<mosaic_0001>
module attributes {stable_mosaic.version = 11 : i64} {
  func.func @_kmeans_kernel(%arg0: i32, %arg1: memref<1x128x256xf32, #tpu.memory_space<vmem>>, %arg2: memref<256x256xf32, #tpu.memory_space<vmem>>, %arg3: memref<1x256xf32, #tpu.memory_space<vmem>>, %arg4: memref<1x256xf32, #tpu.memory_space<vmem>>, %arg5: memref<2x128x320xf32, #tpu.memory_space<vmem>>, %arg6: memref<2x320x128xf32, #tpu.memory_space<vmem>>, %arg7: memref<2x1x320xf32, #tpu.memory_space<vmem>>, %arg8: memref<1x128x256xf32, #tpu.memory_space<vmem>>, %arg9: memref<1x128x256xf32, #tpu.memory_space<vmem>>, %arg10: memref<1x128x256xf32, #tpu.memory_space<vmem>>, %arg11: memref<1x128x2xi32, #tpu.memory_space<vmem>>) attributes {dimension_semantics = [#tpu.dimension_semantics<parallel>], iteration_bounds = array<i64: 2>, scalar_prefetch = 0 : i64, scratch_operands = 0 : i64, tpu.core_type = #tpu.core_type<tc>, window_params = [{transform_indices = @transform_0, window_bounds = array<i64: 1, 128, 256>}, {pipeline_mode = #tpu.pipeline_mode<synchronous>, transform_indices = @transform_1, window_bounds = array<i64: 256, 256>}, {pipeline_mode = #tpu.pipeline_mode<synchronous>, transform_indices = @transform_2, window_bounds = array<i64: 1, 256>}, {pipeline_mode = #tpu.pipeline_mode<synchronous>, transform_indices = @transform_3, window_bounds = array<i64: 1, 256>}, {pipeline_mode = #tpu.pipeline_mode<synchronous>, transform_indices = @transform_4, window_bounds = array<i64: 2, 128, 320>}, {pipeline_mode = #tpu.pipeline_mode<synchronous>, transform_indices = @transform_5, window_bounds = array<i64: 2, 320, 128>}, {pipeline_mode = #tpu.pipeline_mode<synchronous>, transform_indices = @transform_6, window_bounds = array<i64: 2, 1, 320>}, {transform_indices = @transform_7, window_bounds = array<i64: 1, 128, 256>}, {transform_indices = @transform_8, window_bounds = array<i64: 1, 128, 256>}, {transform_indices = @transform_9, window_bounds = array<i64: 1, 128, 256>}, {transform_indices = @transform_10, window_bounds = array<i64: 1, 128, 2>}]} {
    %c0 = arith.constant 0 : index
    %c0_0 = arith.constant 0 : index
    %c0_1 = arith.constant 0 : index
    %0 = vector.load %arg1[%c0, %c0_0, %c0_1] : memref<1x128x256xf32, #tpu.memory_space<vmem>>, vector<1x128x256xf32>
    %1 = vector.shape_cast %0 : vector<1x128x256xf32> to vector<128x256xf32>
    %c0_2 = arith.constant 0 : index
    %c0_3 = arith.constant 0 : index
    %2 = vector.load %arg2[%c0_2, %c0_3] : memref<256x256xf32, #tpu.memory_space<vmem>>, vector<256x256xf32>
    %cst = arith.constant dense<0.000000e+00> : vector<128x256xf32>
    %3 = tpu.matmul %1, %2, %cst {dimension_numbers = #tpu.dot_dimension_numbers<[1], [0], [0], [1], [0, 0, 1, 1], [], []>} : vector<128x256xf32>, vector<256x256xf32>, vector<128x256xf32> -> vector<128x256xf32>
    %4 = vector.extract_strided_slice %3 {offsets = [0, 0], sizes = [128, 128], strides = [1, 1]} : vector<128x256xf32> to vector<128x128xf32>
    %5 = vector.shape_cast %4 : vector<128x128xf32> to vector<1x128x128xf32>
    %cst_4 = arith.constant dense<0.000000e+00> : vector<1xf32>
    %6 = vector.multi_reduction <add>, %5, %cst_4 [1, 2] : vector<1x128x128xf32> to vector<1xf32>
    %7 = vector.shape_cast %6 : vector<1xf32> to vector<1x1x1xf32>
    %8 = vector.extract %7[0, 0, 0] : f32 from vector<1x1x1xf32>
    %9 = vector.broadcast %8 : f32 to vector<1x1xf32>
    %cst_5 = arith.constant 1.638400e+04 : f32
    %10 = vector.broadcast %cst_5 : f32 to vector<1x1xf32>
    %11 = arith.divf %9, %10 : vector<1x1xf32>
    %12 = vector.broadcast %11 : vector<1x1xf32> to vector<128x128xf32>
    %13 = arith.subf %4, %12 : vector<128x128xf32>
    %14 = arith.mulf %13, %13 : vector<128x128xf32>
    %15 = vector.shape_cast %14 : vector<128x128xf32> to vector<1x128x128xf32>
    %cst_6 = arith.constant dense<0.000000e+00> : vector<1xf32>
    %16 = vector.multi_reduction <add>, %15, %cst_6 [1, 2] : vector<1x128x128xf32> to vector<1xf32>
    %17 = vector.shape_cast %16 : vector<1xf32> to vector<1x1x1xf32>
    %18 = vector.extract %17[0, 0, 0] : f32 from vector<1x1x1xf32>
    %19 = vector.broadcast %18 : f32 to vector<1x1xf32>
    %cst_7 = arith.constant 1.638400e+04 : f32
    %20 = vector.broadcast %cst_7 : f32 to vector<1x1xf32>
    %21 = arith.divf %19, %20 : vector<1x1xf32>
    %22 = vector.broadcast %11 : vector<1x1xf32> to vector<128x128xf32>
    %23 = arith.subf %4, %22 : vector<128x128xf32>
    %cst_8 = arith.constant 9.99999974E-6 : f32
    %24 = vector.broadcast %cst_8 : f32 to vector<1x1xf32>
    %25 = arith.addf %21, %24 : vector<1x1xf32>
    %26 = math.rsqrt %25 : vector<1x1xf32>
    %27 = vector.broadcast %26 : vector<1x1xf32> to vector<128x128xf32>
    %28 = arith.mulf %23, %27 : vector<128x128xf32>
    %c0_9 = arith.constant 0 : index
    %c0_10 = arith.constant 0 : index
    %29 = vector.load %arg3[%c0_9, %c0_10] : memref<1x256xf32, #tpu.memory_space<vmem>>, vector<1x128xf32>
    %30 = vector.broadcast %29 : vector<1x128xf32> to vector<128x128xf32>
    %31 = arith.mulf %28, %30 : vector<128x128xf32>
    %c0_11 = arith.constant 0 : index
    %c0_12 = arith.constant 0 : index
    %32 = vector.load %arg4[%c0_11, %c0_12] : memref<1x256xf32, #tpu.memory_space<vmem>>, vector<1x128xf32>
    %33 = vector.broadcast %32 : vector<1x128xf32> to vector<128x128xf32>
    %34 = arith.addf %31, %33 : vector<128x128xf32>
    %c0_13 = arith.constant 0 : index
    %c0_14 = arith.constant 0 : index
    %c0_15 = arith.constant 0 : index
    %35 = vector.load %arg5[%c0_13, %c0_14, %c0_15] : memref<2x128x320xf32, #tpu.memory_space<vmem>>, vector<1x128x320xf32>
    %36 = vector.shape_cast %35 : vector<1x128x320xf32> to vector<128x320xf32>
    %cst_16 = arith.constant dense<0.000000e+00> : vector<128x320xf32>
    %37 = tpu.matmul %34, %36, %cst_16 {dimension_numbers = #tpu.dot_dimension_numbers<[1], [0], [0], [1], [0, 0, 1, 1], [], []>} : vector<128x128xf32>, vector<128x320xf32>, vector<128x320xf32> -> vector<128x320xf32>
    %c0_17 = arith.constant 0 : index
    %c0_18 = arith.constant 0 : index
    %c0_19 = arith.constant 0 : index
    %38 = vector.load %arg7[%c0_17, %c0_18, %c0_19] : memref<2x1x320xf32, #tpu.memory_space<vmem>>, vector<1x1x320xf32>
    %39 = vector.shape_cast %38 : vector<1x1x320xf32> to vector<1x320xf32>
    %cst_20 = arith.constant 2.000000e+00 : f32
    %40 = vector.broadcast %cst_20 : f32 to vector<128x320xf32>
    %41 = arith.mulf %40, %37 : vector<128x320xf32>
    %42 = vector.broadcast %39 : vector<1x320xf32> to vector<128x320xf32>
    %43 = arith.subf %42, %41 : vector<128x320xf32>
    %cst_21 = arith.constant dense<0x7F800000> : vector<128xf32>
    %44 = vector.multi_reduction <minimumf>, %43, %cst_21 [1] : vector<128x320xf32> to vector<128xf32>
    %45 = vector.shape_cast %44 : vector<128xf32> to vector<128x1xf32>
    %46 = tpu.iota {dimensions = array<i32: 1>} : vector<128x320xi32>
    %47 = vector.broadcast %45 : vector<128x1xf32> to vector<128x320xf32>
    %48 = arith.cmpf ole, %43, %47 : vector<128x320xf32>
    %c320_i32 = arith.constant 320 : i32
    %49 = vector.broadcast %c320_i32 : i32 to vector<128x320xi32>
    %50 = arith.select %48, %46, %49 : vector<128x320xi1>, vector<128x320xi32>
    %cst_22 = arith.constant dense<2147483647> : vector<128xi32>
    %51 = vector.multi_reduction <minsi>, %50, %cst_22 [1] : vector<128x320xi32> to vector<128xi32>
    %52 = vector.shape_cast %51 : vector<128xi32> to vector<128x1xi32>
    %53 = vector.broadcast %52 : vector<128x1xi32> to vector<128x320xi32>
    %54 = arith.cmpi eq, %46, %53 : vector<128x320xi32>
    %55 = arith.extui %54 : vector<128x320xi1> to vector<128x320xi32>
    %56 = arith.sitofp %55 : vector<128x320xi32> to vector<128x320xf32>
    %c0_23 = arith.constant 0 : index
    %c0_24 = arith.constant 0 : index
    %c0_25 = arith.constant 0 : index
    %57 = vector.load %arg6[%c0_23, %c0_24, %c0_25] : memref<2x320x128xf32, #tpu.memory_space<vmem>>, vector<1x320x128xf32>
    %58 = vector.shape_cast %57 : vector<1x320x128xf32> to vector<320x128xf32>
    %cst_26 = arith.constant dense<0.000000e+00> : vector<128x128xf32>
    %59 = tpu.matmul %56, %58, %cst_26 {dimension_numbers = #tpu.dot_dimension_numbers<[1], [0], [0], [1], [0, 0, 1, 1], [], []>} : vector<128x320xf32>, vector<320x128xf32>, vector<128x128xf32> -> vector<128x128xf32>
    %60 = vector.extract_strided_slice %3 {offsets = [0, 128], sizes = [128, 128], strides = [1, 1]} : vector<128x256xf32> to vector<128x128xf32>
    %61 = vector.shape_cast %60 : vector<128x128xf32> to vector<1x128x128xf32>
    %cst_27 = arith.constant dense<0.000000e+00> : vector<1xf32>
    %62 = vector.multi_reduction <add>, %61, %cst_27 [1, 2] : vector<1x128x128xf32> to vector<1xf32>
    %63 = vector.shape_cast %62 : vector<1xf32> to vector<1x1x1xf32>
    %64 = vector.extract %63[0, 0, 0] : f32 from vector<1x1x1xf32>
    %65 = vector.broadcast %64 : f32 to vector<1x1xf32>
    %cst_28 = arith.constant 1.638400e+04 : f32
    %66 = vector.broadcast %cst_28 : f32 to vector<1x1xf32>
    %67 = arith.divf %65, %66 : vector<1x1xf32>
    %68 = vector.broadcast %67 : vector<1x1xf32> to vector<128x128xf32>
    %69 = arith.subf %60, %68 : vector<128x128xf32>
    %70 = arith.mulf %69, %69 : vector<128x128xf32>
    %71 = vector.shape_cast %70 : vector<128x128xf32> to vector<1x128x128xf32>
    %cst_29 = arith.constant dense<0.000000e+00> : vector<1xf32>
    %72 = vector.multi_reduction <add>, %71, %cst_29 [1, 2] : vector<1x128x128xf32> to vector<1xf32>
    %73 = vector.shape_cast %72 : vector<1xf32> to vector<1x1x1xf32>
    %74 = vector.extract %73[0, 0, 0] : f32 from vector<1x1x1xf32>
    %75 = vector.broadcast %74 : f32 to vector<1x1xf32>
    %cst_30 = arith.constant 1.638400e+04 : f32
    %76 = vector.broadcast %cst_30 : f32 to vector<1x1xf32>
    %77 = arith.divf %75, %76 : vector<1x1xf32>
    %78 = vector.broadcast %67 : vector<1x1xf32> to vector<128x128xf32>
    %79 = arith.subf %60, %78 : vector<128x128xf32>
    %cst_31 = arith.constant 9.99999974E-6 : f32
    %80 = vector.broadcast %cst_31 : f32 to vector<1x1xf32>
    %81 = arith.addf %77, %80 : vector<1x1xf32>
    %82 = math.rsqrt %81 : vector<1x1xf32>
    %83 = vector.broadcast %82 : vector<1x1xf32> to vector<128x128xf32>
    %84 = arith.mulf %79, %83 : vector<128x128xf32>
    %c0_32 = arith.constant 0 : index
    %c128 = arith.constant 128 : index
    %85 = vector.load %arg3[%c0_32, %c128] : memref<1x256xf32, #tpu.memory_space<vmem>>, vector<1x128xf32>
    %86 = vector.broadcast %85 : vector<1x128xf32> to vector<128x128xf32>
    %87 = arith.mulf %84, %86 : vector<128x128xf32>
    %c0_33 = arith.constant 0 : index
    %c128_34 = arith.constant 128 : index
    %88 = vector.load %arg4[%c0_33, %c128_34] : memref<1x256xf32, #tpu.memory_space<vmem>>, vector<1x128xf32>
    %89 = vector.broadcast %88 : vector<1x128xf32> to vector<128x128xf32>
    %90 = arith.addf %87, %89 : vector<128x128xf32>
    %c1 = arith.constant 1 : index
    %c0_35 = arith.constant 0 : index
    %c0_36 = arith.constant 0 : index
    %91 = vector.load %arg5[%c1, %c0_35, %c0_36] : memref<2x128x320xf32, #tpu.memory_space<vmem>>, vector<1x128x320xf32>
    %92 = vector.shape_cast %91 : vector<1x128x320xf32> to vector<128x320xf32>
    %cst_37 = arith.constant dense<0.000000e+00> : vector<128x320xf32>
    %93 = tpu.matmul %90, %92, %cst_37 {dimension_numbers = #tpu.dot_dimension_numbers<[1], [0], [0], [1], [0, 0, 1, 1], [], []>} : vector<128x128xf32>, vector<128x320xf32>, vector<128x320xf32> -> vector<128x320xf32>
    %c1_38 = arith.constant 1 : index
    %c0_39 = arith.constant 0 : index
    %c0_40 = arith.constant 0 : index
    %94 = vector.load %arg7[%c1_38, %c0_39, %c0_40] : memref<2x1x320xf32, #tpu.memory_space<vmem>>, vector<1x1x320xf32>
    %95 = vector.shape_cast %94 : vector<1x1x320xf32> to vector<1x320xf32>
    %cst_41 = arith.constant 2.000000e+00 : f32
    %96 = vector.broadcast %cst_41 : f32 to vector<128x320xf32>
    %97 = arith.mulf %96, %93 : vector<128x320xf32>
    %98 = vector.broadcast %95 : vector<1x320xf32> to vector<128x320xf32>
    %99 = arith.subf %98, %97 : vector<128x320xf32>
    %cst_42 = arith.constant dense<0x7F800000> : vector<128xf32>
    %100 = vector.multi_reduction <minimumf>, %99, %cst_42 [1] : vector<128x320xf32> to vector<128xf32>
    %101 = vector.shape_cast %100 : vector<128xf32> to vector<128x1xf32>
    %102 = tpu.iota {dimensions = array<i32: 1>} : vector<128x320xi32>
    %103 = vector.broadcast %101 : vector<128x1xf32> to vector<128x320xf32>
    %104 = arith.cmpf ole, %99, %103 : vector<128x320xf32>
    %c320_i32_43 = arith.constant 320 : i32
    %105 = vector.broadcast %c320_i32_43 : i32 to vector<128x320xi32>
    %106 = arith.select %104, %102, %105 : vector<128x320xi1>, vector<128x320xi32>
    %cst_44 = arith.constant dense<2147483647> : vector<128xi32>
    %107 = vector.multi_reduction <minsi>, %106, %cst_44 [1] : vector<128x320xi32> to vector<128xi32>
    %108 = vector.shape_cast %107 : vector<128xi32> to vector<128x1xi32>
    %109 = vector.broadcast %108 : vector<128x1xi32> to vector<128x320xi32>
    %110 = arith.cmpi eq, %102, %109 : vector<128x320xi32>
    %111 = arith.extui %110 : vector<128x320xi1> to vector<128x320xi32>
    %112 = arith.sitofp %111 : vector<128x320xi32> to vector<128x320xf32>
    %c1_45 = arith.constant 1 : index
    %c0_46 = arith.constant 0 : index
    %c0_47 = arith.constant 0 : index
    %113 = vector.load %arg6[%c1_45, %c0_46, %c0_47] : memref<2x320x128xf32, #tpu.memory_space<vmem>>, vector<1x320x128xf32>
    %114 = vector.shape_cast %113 : vector<1x320x128xf32> to vector<320x128xf32>
    %cst_48 = arith.constant dense<0.000000e+00> : vector<128x128xf32>
    %115 = tpu.matmul %112, %114, %cst_48 {dimension_numbers = #tpu.dot_dimension_numbers<[1], [0], [0], [1], [0, 0, 1, 1], [], []>} : vector<128x320xf32>, vector<320x128xf32>, vector<128x128xf32> -> vector<128x128xf32>
    %116 = tpu.concatenate %59, %115 in 1 : vector<128x128xf32>, vector<128x128xf32> -> vector<128x256xf32>
    %117 = tpu.concatenate %34, %90 in 1 : vector<128x128xf32>, vector<128x128xf32> -> vector<128x256xf32>
    %118 = arith.addf %116, %117 : vector<128x256xf32>
    %119 = arith.subf %118, %117 : vector<128x256xf32>
    %c0_49 = arith.constant 0 : index
    %c0_50 = arith.constant 0 : index
    %c0_51 = arith.constant 0 : index
    %120 = vector.load %arg8[%c0_49, %c0_50, %c0_51] : memref<1x128x256xf32, #tpu.memory_space<vmem>>, vector<1x128x256xf32>
    %121 = vector.shape_cast %120 : vector<1x128x256xf32> to vector<128x256xf32>
    %122 = vector.shape_cast %119 : vector<128x256xf32> to vector<1x128x256xf32>
    tpu.vector_store %arg8[%c0_49, %c0_50, %c0_51], %122 {strides = array<i32>} : memref<1x128x256xf32, #tpu.memory_space<vmem>>, vector<1x128x256xf32>,
    %c0_52 = arith.constant 0 : index
    %c0_53 = arith.constant 0 : index
    %c0_54 = arith.constant 0 : index
    %123 = vector.load %arg9[%c0_52, %c0_53, %c0_54] : memref<1x128x256xf32, #tpu.memory_space<vmem>>, vector<1x128x256xf32>
    %124 = vector.shape_cast %123 : vector<1x128x256xf32> to vector<128x256xf32>
    %125 = vector.shape_cast %117 : vector<128x256xf32> to vector<1x128x256xf32>
    tpu.vector_store %arg9[%c0_52, %c0_53, %c0_54], %125 {strides = array<i32>} : memref<1x128x256xf32, #tpu.memory_space<vmem>>, vector<1x128x256xf32>,
    %c0_55 = arith.constant 0 : index
    %c0_56 = arith.constant 0 : index
    %c0_57 = arith.constant 0 : index
    %126 = vector.load %arg10[%c0_55, %c0_56, %c0_57] : memref<1x128x256xf32, #tpu.memory_space<vmem>>, vector<1x128x256xf32>
    %127 = vector.shape_cast %126 : vector<1x128x256xf32> to vector<128x256xf32>
    %128 = vector.shape_cast %116 : vector<128x256xf32> to vector<1x128x256xf32>
    tpu.vector_store %arg10[%c0_55, %c0_56, %c0_57], %128 {strides = array<i32>} : memref<1x128x256xf32, #tpu.memory_space<vmem>>, vector<1x128x256xf32>,
    %129 = tpu.concatenate %52, %108 in 1 : vector<128x1xi32>, vector<128x1xi32> -> vector<128x2xi32>
    %c0_58 = arith.constant 0 : index
    %c0_59 = arith.constant 0 : index
    %c0_60 = arith.constant 0 : index
    %130 = vector.load %arg11[%c0_58, %c0_59, %c0_60] : memref<1x128x2xi32, #tpu.memory_space<vmem>>, vector<1x128x2xi32>
    %131 = vector.shape_cast %130 : vector<1x128x2xi32> to vector<128x2xi32>
    %132 = vector.shape_cast %129 : vector<128x2xi32> to vector<1x128x2xi32>
    tpu.vector_store %arg11[%c0_58, %c0_59, %c0_60], %132 {strides = array<i32>} : memref<1x128x2xi32, #tpu.memory_space<vmem>>, vector<1x128x2xi32>,
    return
  }
  func.func @transform_0(%arg0: i32) -> (i32, i32, i32) {
    %c0_i32 = arith.constant 0 : i32
    %c0_i32_0 = arith.constant 0 : i32
    %c0_i32_1 = arith.constant 0 : i32
    return %arg0, %c0_i32, %c0_i32_0 : i32, i32, i32
  }
  func.func @transform_1(%arg0: i32) -> (i32, i32) {
    %c0_i32 = arith.constant 0 : i32
    %c0_i32_0 = arith.constant 0 : i32
    %c0_i32_1 = arith.constant 0 : i32
    return %c0_i32, %c0_i32_0 : i32, i32
  }
  func.func @transform_2(%arg0: i32) -> (i32, i32) {
    %c0_i32 = arith.constant 0 : i32
    %c0_i32_0 = arith.constant 0 : i32
    %c0_i32_1 = arith.constant 0 : i32
    return %c0_i32, %c0_i32_0 : i32, i32
  }
  func.func @transform_3(%arg0: i32) -> (i32, i32) {
    %c0_i32 = arith.constant 0 : i32
    %c0_i32_0 = arith.constant 0 : i32
    %c0_i32_1 = arith.constant 0 : i32
    return %c0_i32, %c0_i32_0 : i32, i32
  }
  func.func @transform_4(%arg0: i32) -> (i32, i32, i32) {
    %c0_i32 = arith.constant 0 : i32
    %c0_i32_0 = arith.constant 0 : i32
    %c0_i32_1 = arith.constant 0 : i32
    %c0_i32_2 = arith.constant 0 : i32
    return %c0_i32, %c0_i32_0, %c0_i32_1 : i32, i32, i32
  }
  func.func @transform_5(%arg0: i32) -> (i32, i32, i32) {
    %c0_i32 = arith.constant 0 : i32
    %c0_i32_0 = arith.constant 0 : i32
    %c0_i32_1 = arith.constant 0 : i32
    %c0_i32_2 = arith.constant 0 : i32
    return %c0_i32, %c0_i32_0, %c0_i32_1 : i32, i32, i32
  }
  func.func @transform_6(%arg0: i32) -> (i32, i32, i32) {
    %c0_i32 = arith.constant 0 : i32
    %c0_i32_0 = arith.constant 0 : i32
    %c0_i32_1 = arith.constant 0 : i32
    %c0_i32_2 = arith.constant 0 : i32
    return %c0_i32, %c0_i32_0, %c0_i32_1 : i32, i32, i32
  }
  func.func @transform_7(%arg0: i32) -> (i32, i32, i32) {
    %c0_i32 = arith.constant 0 : i32
    %c0_i32_0 = arith.constant 0 : i32
    %c0_i32_1 = arith.constant 0 : i32
    return %arg0, %c0_i32, %c0_i32_0 : i32, i32, i32
  }
  func.func @transform_8(%arg0: i32) -> (i32, i32, i32) {
    %c0_i32 = arith.constant 0 : i32
    %c0_i32_0 = arith.constant 0 : i32
    %c0_i32_1 = arith.constant 0 : i32
    return %arg0, %c0_i32, %c0_i32_0 : i32, i32, i32
  }
  func.func @transform_9(%arg0: i32) -> (i32, i32, i32) {
    %c0_i32 = arith.constant 0 : i32
    %c0_i32_0 = arith.constant 0 : i32
    %c0_i32_1 = arith.constant 0 : i32
    return %arg0, %c0_i32, %c0_i32_0 : i32, i32, i32
  }
  func.func @transform_10(%arg0: i32) -> (i32, i32, i32) {
    %c0_i32 = arith.constant 0 : i32
    %c0_i32_0 = arith.constant 0 : i32
    %c0_i32_1 = arith.constant 0 : i32
    return %arg0, %c0_i32, %c0_i32_0 : i32, i32, i32
  }
}

</mosaic_0001>

<llo_original>
// kernel: tpu_custom_call.1
$region0: #{tpu_custom_call.1}
  #allocation0 [shape = 'u32[]', space=smem, size = 0x4, offset = 0x4, fixed_abs, tag = 'smem constant byte address 0x4 - core index']
  #allocation1 [shape = 'u32[144,128]{1,0:T(1,128)}', space=vmem, size = 0x12000, scoped, tag = 'internal scratch']
  %s0 = inlined_call_operand.vmem [shape: f32[2,128,256], index: 0, kind: input, shape index: {}]
  %s1 = inlined_call_operand.hbm [shape: f32[256,256], index: 1, kind: input, shape index: {}]
  %s2 = inlined_call_operand.vmem [shape: f32[1,256], index: 2, kind: input, shape index: {}]
  %s3 = inlined_call_operand.vmem [shape: f32[1,256], index: 3, kind: input, shape index: {}]
  %s4 = inlined_call_operand.vmem [shape: f32[2,128,320], index: 4, kind: input, shape index: {}]
  %s5 = inlined_call_operand.vmem [shape: f32[2,320,128], index: 5, kind: input, shape index: {}]
  %s6 = inlined_call_operand.vmem [shape: f32[2,1,320], index: 6, kind: input, shape index: {}]
  %s7 = inlined_call_operand.hbm [shape: f32[2,128,256], index: 7, kind: output, shape index: {0}]
  %s8 = inlined_call_operand.hbm [shape: f32[2,128,256], index: 8, kind: output, shape index: {1}]
  %s9 = inlined_call_operand.hbm [shape: f32[2,128,256], index: 9, kind: output, shape index: {2}]
  %s10 = inlined_call_operand.vmem [shape: s32[2,128,2], index: 10, kind: output, shape index: {3}]
  %11 = xla_tuple %s7, %s8, %s9, %s10
  %s12 = sld [smem:[#allocation0]]
  $region89: #{tpu_custom_call.1} parent=0
    _
  %s14 = ssub.s32 1, %s12
  %s15 = scalar_select 0, %s14, %s12
  $region1: #{tpu_custom_call.1} parent=0
    #allocation2 [shape = 'u8[262144]{0}', space=vmem, size = 0x40000, scoped, tag = 'input window, operand 1, single buffered']
    #allocation3 [shape = 's32[2]{0}', space=sflag, size = 0x8, scoped, tag = 'scoped memory for tpu_custom_call.1']
    #allocation4 [shape = 's32[2]{0}', space=sflag, size = 0x8, scoped, tag = 'scoped memory for tpu_custom_call.1']
    #allocation5 [shape = 'u8[262144]{0}', space=vmem, size = 0x40000, scoped, tag = 'output window, operand 0']
    #allocation6 [shape = 'u8[262144]{0}', space=vmem, size = 0x40000, scoped, tag = 'output window, operand 1']
    #allocation7 [shape = 's32[2]{0}', space=sflag, size = 0x8, scoped, tag = 'scoped memory for tpu_custom_call.1']
    #allocation8 [shape = 'u8[262144]{0}', space=vmem, size = 0x40000, scoped, tag = 'output window, operand 2']
    %16 = vsyncpa [#allocation3], 0
    %17 = vsyncpa [#allocation4], 0
    %s18 = scalar_lea.sflag [#allocation4], 1
    %19 = vsyncpa %s18, 0
    %20 = vsyncpa [#allocation7], 0
    %s21 = scalar_lea.sflag [#allocation7], 1
    %22 = vsyncpa %s21, 0
    loop: start=0, step=1, limit=4
    $region2: #{tpu_custom_call.1} parent=1 // loop_pre_header
      _
    $region3: #{tpu_custom_call.1} parent=1 // loop_header
      %s24 = sphi 0, %s28
      %p25 = scmp.ge.s32.totalorder %s24, 4
      %s34 = sphi 0, %s36
      %s37 = sphi 0, %s34
      %s38 = sphi 0, %s37
      %s54 = sphi 0, %s38
      %s58 = sphi 0, %s58
      %s60 = sphi 0, %s58
      %s61 = sphi 0, %s60
      %s75 = sphi 0, %s61
      %s79 = sphi 0, %s79
      %s81 = sphi 0, %s79
      %s82 = sphi 0, %s81
      %s96 = sphi 0, %s82
      %s100 = sphi 0, %s100
      %s102 = sphi 0, %s100
      %s103 = sphi 0, %s102
      %s117 = sphi 0, %s103
      %s121 = sphi 0, %s121
      %s123 = sphi 0, %s121
      %s124 = sphi 0, %s123
      %s138 = sphi 0, %s124
      %s142 = sphi 0, %s142
      %s144 = sphi 0, %s142
      %s145 = sphi 0, %s144
      %s159 = sphi 0, %s145
      %s163 = sphi 0, %s163
      %s165 = sphi 0, %s163
      %s166 = sphi 0, %s165
      %s180 = sphi 0, %s166
      %s186 = sphi 0, %s188
      %s189 = sphi 0, %s186
      %s190 = sphi 0, %s189
      %s206 = sphi 0, %s190
      %s212 = sphi 0, %s214
      %s215 = sphi 0, %s212
      %s216 = sphi 0, %s215
      %s232 = sphi 0, %s216
      %s238 = sphi 0, %s240
      %s241 = sphi 0, %s238
      %s242 = sphi 0, %s241
      %s258 = sphi 0, %s242
      %s264 = sphi 0, %s266
      %s267 = sphi 0, %s264
      %s268 = sphi 0, %s267
      %s284 = sphi 0, %s268
    $region4: #{tpu_custom_call.1} parent=1 // loop_header_branch
      %27 = sbr.rel (%p25) target = $region8
    $region5: #{tpu_custom_call.1} parent=1 // loop_body
      %s29 = ssub.s32 %s24, 1
      %s30 = ssub.s32 %s24, 2
      %s31 = sadd.s32 %s24, 1
      %s32 = ssub.s32 %s24, %s31
      %p33 = scmp.eq.s32.totalorder %s32, 0
      %s35 = sadd.s32 %s34, 1
      %s36 = scalar_select %p33, %s34, %s35
      %p39 = pneg %p33
      %p40 = scmp.eq.s32.totalorder %s24, 1
      %p41 = por %p39, %p40
      %p42 = scmp.ne.s32.totalorder %s34, %s37
      %p43 = scmp.eq.s32.totalorder %s24, 0
      %p44 = por %p42, %p43
      %p45 = scmp.ne.s32.totalorder %s34, %s37
      %p46 = scmp.eq.s32.totalorder %s29, 1
      %p47 = por %p45, %p46
      %p48 = scmp.ne.s32.totalorder %s37, %s38
      %p49 = scmp.eq.s32.totalorder %s29, 0
      %p50 = por %p48, %p49
      %p51 = scmp.ne.s32.totalorder %s37, %s38
      %p52 = scmp.eq.s32.totalorder %s30, 1
      %p53 = por %p51, %p52
      %p55 = scmp.ne.s32.totalorder %s38, %s54
      %p56 = scmp.eq.s32.totalorder %s30, 0
      %p57 = por %p55, %p56
      %s59 = sadd.s32 %s58, 1
      %p62 = scmp.eq.s32.totalorder %s24, 1
      %p63 = scmp.ne.s32.totalorder %s58, %s60
      %p64 = scmp.eq.s32.totalorder %s24, 0
      %p65 = por %p63, %p64
      %p66 = scmp.ne.s32.totalorder %s58, %s60
      %p67 = scmp.eq.s32.totalorder %s29, 1
      %p68 = por %p66, %p67
      %p69 = scmp.ne.s32.totalorder %s60, %s61
      %p70 = scmp.eq.s32.totalorder %s29, 0
      %p71 = por %p69, %p70
      %p72 = scmp.ne.s32.totalorder %s60, %s61
      %p73 = scmp.eq.s32.totalorder %s30, 1
      %p74 = por %p72, %p73
      %p76 = scmp.ne.s32.totalorder %s61, %s75
      %p77 = scmp.eq.s32.totalorder %s30, 0
      %p78 = por %p76, %p77
      %s80 = sadd.s32 %s79, 1
      %p83 = scmp.eq.s32.totalorder %s24, 1
      %p84 = scmp.ne.s32.totalorder %s79, %s81
      %p85 = scmp.eq.s32.totalorder %s24, 0
      %p86 = por %p84, %p85
      %p87 = scmp.ne.s32.totalorder %s79, %s81
      %p88 = scmp.eq.s32.totalorder %s29, 1
      %p89 = por %p87, %p88
      %p90 = scmp.ne.s32.totalorder %s81, %s82
      %p91 = scmp.eq.s32.totalorder %s29, 0
      %p92 = por %p90, %p91
      %p93 = scmp.ne.s32.totalorder %s81, %s82
      %p94 = scmp.eq.s32.totalorder %s30, 1
      %p95 = por %p93, %p94
      %p97 = scmp.ne.s32.totalorder %s82, %s96
      %p98 = scmp.eq.s32.totalorder %s30, 0
      %p99 = por %p97, %p98
      %s101 = sadd.s32 %s100, 1
      %p104 = scmp.eq.s32.totalorder %s24, 1
      %p105 = scmp.ne.s32.totalorder %s100, %s102
      %p106 = scmp.eq.s32.totalorder %s24, 0
      %p107 = por %p105, %p106
      %p108 = scmp.ne.s32.totalorder %s100, %s102
      %p109 = scmp.eq.s32.totalorder %s29, 1
      %p110 = por %p108, %p109
      %p111 = scmp.ne.s32.totalorder %s102, %s103
      %p112 = scmp.eq.s32.totalorder %s29, 0
      %p113 = por %p111, %p112
      %p114 = scmp.ne.s32.totalorder %s102, %s103
      %p115 = scmp.eq.s32.totalorder %s30, 1
      %p116 = por %p114, %p115
      %p118 = scmp.ne.s32.totalorder %s103, %s117
      %p119 = scmp.eq.s32.totalorder %s30, 0
      %p120 = por %p118, %p119
      %s122 = sadd.s32 %s121, 1
      %p125 = scmp.eq.s32.totalorder %s24, 1
      %p126 = scmp.ne.s32.totalorder %s121, %s123
      %p127 = scmp.eq.s32.totalorder %s24, 0
      %p128 = por %p126, %p127
      %p129 = scmp.ne.s32.totalorder %s121, %s123
      %p130 = scmp.eq.s32.totalorder %s29, 1
      %p131 = por %p129, %p130
      %p132 = scmp.ne.s32.totalorder %s123, %s124
      %p133 = scmp.eq.s32.totalorder %s29, 0
      %p134 = por %p132, %p133
      %p135 = scmp.ne.s32.totalorder %s123, %s124
      %p136 = scmp.eq.s32.totalorder %s30, 1
      %p137 = por %p135, %p136
      %p139 = scmp.ne.s32.totalorder %s124, %s138
      %p140 = scmp.eq.s32.totalorder %s30, 0
      %p141 = por %p139, %p140
      %s143 = sadd.s32 %s142, 1
      %p146 = scmp.eq.s32.totalorder %s24, 1
      %p147 = scmp.ne.s32.totalorder %s142, %s144
      %p148 = scmp.eq.s32.totalorder %s24, 0
      %p149 = por %p147, %p148
      %p150 = scmp.ne.s32.totalorder %s142, %s144
      %p151 = scmp.eq.s32.totalorder %s29, 1
      %p152 = por %p150, %p151
      %p153 = scmp.ne.s32.totalorder %s144, %s145
      %p154 = scmp.eq.s32.totalorder %s29, 0
      %p155 = por %p153, %p154
      %p156 = scmp.ne.s32.totalorder %s144, %s145
      %p157 = scmp.eq.s32.totalorder %s30, 1
      %p158 = por %p156, %p157
      %p160 = scmp.ne.s32.totalorder %s145, %s159
      %p161 = scmp.eq.s32.totalorder %s30, 0
      %p162 = por %p160, %p161
      %s164 = sadd.s32 %s163, 1
      %p167 = scmp.eq.s32.totalorder %s24, 1
      %p168 = scmp.ne.s32.totalorder %s163, %s165
      %p169 = scmp.eq.s32.totalorder %s24, 0
      %p170 = por %p168, %p169
      %p171 = scmp.ne.s32.totalorder %s163, %s165
      %p172 = scmp.eq.s32.totalorder %s29, 1
      %p173 = por %p171, %p172
      %p174 = scmp.ne.s32.totalorder %s165, %s166
      %p175 = scmp.eq.s32.totalorder %s29, 0
      %p176 = por %p174, %p175
      %p177 = scmp.ne.s32.totalorder %s165, %s166
      %p178 = scmp.eq.s32.totalorder %s30, 1
      %p179 = por %p177, %p178
      %p181 = scmp.ne.s32.totalorder %s166, %s180
      %p182 = scmp.eq.s32.totalorder %s30, 0
      %p183 = por %p181, %p182
      %s184 = ssub.s32 %s24, %s31
      %p185 = scmp.eq.s32.totalorder %s184, 0
      %s187 = sadd.s32 %s186, 1
      %s188 = scalar_select %p185, %s186, %s187
      %p191 = pneg %p185
      %p192 = scmp.eq.s32.totalorder %s24, 1
      %p193 = por %p191, %p192
      %p194 = scmp.ne.s32.totalorder %s186, %s189
      %p195 = scmp.eq.s32.totalorder %s24, 0
      %p196 = por %p194, %p195
      %p197 = scmp.ne.s32.totalorder %s186, %s189
      %p198 = scmp.eq.s32.totalorder %s29, 1
      %p199 = por %p197, %p198
      %p200 = scmp.ne.s32.totalorder %s189, %s190
      %p201 = scmp.eq.s32.totalorder %s29, 0
      %p202 = por %p200, %p201
      %p203 = scmp.ne.s32.totalorder %s189, %s190
      %p204 = scmp.eq.s32.totalorder %s30, 1
      %p205 = por %p203, %p204
      %p207 = scmp.ne.s32.totalorder %s190, %s206
      %p208 = scmp.eq.s32.totalorder %s30, 0
      %p209 = por %p207, %p208
      %s210 = ssub.s32 %s24, %s31
      %p211 = scmp.eq.s32.totalorder %s210, 0
      %s213 = sadd.s32 %s212, 1
      %s214 = scalar_select %p211, %s212, %s213
      %p217 = pneg %p211
      %p218 = scmp.eq.s32.totalorder %s24, 1
      %p219 = por %p217, %p218
      %p220 = scmp.ne.s32.totalorder %s212, %s215
      %p221 = scmp.eq.s32.totalorder %s24, 0
      %p222 = por %p220, %p221
      %p223 = scmp.ne.s32.totalorder %s212, %s215
      %p224 = scmp.eq.s32.totalorder %s29, 1
      %p225 = por %p223, %p224
      %p226 = scmp.ne.s32.totalorder %s215, %s216
      %p227 = scmp.eq.s32.totalorder %s29, 0
      %p228 = por %p226, %p227
      %p229 = scmp.ne.s32.totalorder %s215, %s216
      %p230 = scmp.eq.s32.totalorder %s30, 1
      %p231 = por %p229, %p230
      %p233 = scmp.ne.s32.totalorder %s216, %s232
      %p234 = scmp.eq.s32.totalorder %s30, 0
      %p235 = por %p233, %p234
      %s236 = ssub.s32 %s24, %s31
      %p237 = scmp.eq.s32.totalorder %s236, 0
      %s239 = sadd.s32 %s238, 1
      %s240 = scalar_select %p237, %s238, %s239
      %p243 = pneg %p237
      %p244 = scmp.eq.s32.totalorder %s24, 1
      %p245 = por %p243, %p244
      %p246 = scmp.ne.s32.totalorder %s238, %s241
      %p247 = scmp.eq.s32.totalorder %s24, 0
      %p248 = por %p246, %p247
      %p249 = scmp.ne.s32.totalorder %s238, %s241
      %p250 = scmp.eq.s32.totalorder %s29, 1
      %p251 = por %p249, %p250
      %p252 = scmp.ne.s32.totalorder %s241, %s242
      %p253 = scmp.eq.s32.totalorder %s29, 0
      %p254 = por %p252, %p253
      %p255 = scmp.ne.s32.totalorder %s241, %s242
      %p256 = scmp.eq.s32.totalorder %s30, 1
      %p257 = por %p255, %p256
      %p259 = scmp.ne.s32.totalorder %s242, %s258
      %p260 = scmp.eq.s32.totalorder %s30, 0
      %p261 = por %p259, %p260
      %s262 = ssub.s32 %s24, %s31
      %p263 = scmp.eq.s32.totalorder %s262, 0
      %s265 = sadd.s32 %s264, 1
      %s266 = scalar_select %p263, %s264, %s265
      %p269 = pneg %p263
      %p270 = scmp.eq.s32.totalorder %s24, 1
      %p271 = por %p269, %p270
      %p272 = scmp.ne.s32.totalorder %s264, %s267
      %p273 = scmp.eq.s32.totalorder %s24, 0
      %p274 = por %p272, %p273
      %p275 = scmp.ne.s32.totalorder %s264, %s267
      %p276 = scmp.eq.s32.totalorder %s29, 1
      %p277 = por %p275, %p276
      %p278 = scmp.ne.s32.totalorder %s267, %s268
      %p279 = scmp.eq.s32.totalorder %s29, 0
      %p280 = por %p278, %p279
      %p281 = scmp.ne.s32.totalorder %s267, %s268
      %p282 = scmp.eq.s32.totalorder %s30, 1
      %p283 = por %p281, %p282
      %p285 = scmp.ne.s32.totalorder %s268, %s284
      %p286 = scmp.eq.s32.totalorder %s30, 0
      %p287 = por %p285, %p286
      %p288 = scmp.le.s32.totalorder 1, %s24
      %p289 = scmp.lt.s32.totalorder %s24, 3
      %p290 = pnand %p288, %p289
      %p291 = pneg %p290
      // Predicated region
      $region9: #{tpu_custom_call.1} parent=5 // pred_check
        _
      $region10: #{tpu_custom_call.1} parent=5 // pred_check_branch
        %293 = sbr.rel (%p290) target = $region12
      $region11: #{tpu_custom_call.1} parent=5 // pred_region
        %s294 = ssub.s32 %s24, 1
        // Predicated region
        $region13: #{tpu_custom_call.1} parent=11 // pred_check
          %p295 = pneg %p71
        $region14: #{tpu_custom_call.1} parent=11 // pred_check_branch
          %297 = sbr.rel (%p295) target = $region16
        $region15: #{tpu_custom_call.1} parent=11 // pred_region
          %s299 = ssub.s32 8192, 8192
          %300 = vsyncadd [#allocation3], %s299
          %s301 = sshll.u32 [#allocation2], 4
          %s302 = int_to_ptr.vmem [resolvable:$true] %s301
          %307 = dma.hbm_to_vmem [thread:$0]  %s1, 8192, %s302, [#allocation3], 256, 256, 16
        $region16: #{tpu_custom_call.1} parent=11 // pred_fallthru
          _
        // Predicated region
        $region17: #{tpu_custom_call.1} parent=11 // pred_check
          %p308 = pneg %p92
        $region18: #{tpu_custom_call.1} parent=11 // pred_check_branch
          %310 = sbr.rel (%p308) target = $region20
        $region19: #{tpu_custom_call.1} parent=11 // pred_region
          _
        $region20: #{tpu_custom_call.1} parent=11 // pred_fallthru
          _
        // Predicated region
        $region21: #{tpu_custom_call.1} parent=11 // pred_check
          %p311 = pneg %p113
        $region22: #{tpu_custom_call.1} parent=11 // pred_check_branch
          %313 = sbr.rel (%p311) target = $region24
        $region23: #{tpu_custom_call.1} parent=11 // pred_region
          _
        $region24: #{tpu_custom_call.1} parent=11 // pred_fallthru
          _
        // Predicated region
        $region25: #{tpu_custom_call.1} parent=11 // pred_check
          %p314 = pneg %p134
        $region26: #{tpu_custom_call.1} parent=11 // pred_check_branch
          %316 = sbr.rel (%p314) target = $region28
        $region27: #{tpu_custom_call.1} parent=11 // pred_region
          _
        $region28: #{tpu_custom_call.1} parent=11 // pred_fallthru
          _
        // Predicated region
        $region29: #{tpu_custom_call.1} parent=11 // pred_check
          %p317 = pneg %p155
        $region30: #{tpu_custom_call.1} parent=11 // pred_check_branch
          %319 = sbr.rel (%p317) target = $region32
        $region31: #{tpu_custom_call.1} parent=11 // pred_region
          _
        $region32: #{tpu_custom_call.1} parent=11 // pred_fallthru
          _
        // Predicated region
        $region33: #{tpu_custom_call.1} parent=11 // pred_check
          %p320 = pneg %p176
        $region34: #{tpu_custom_call.1} parent=11 // pred_check_branch
          %322 = sbr.rel (%p320) target = $region36
        $region35: #{tpu_custom_call.1} parent=11 // pred_region
          _
        $region36: #{tpu_custom_call.1} parent=11 // pred_fallthru
          _
      $region12: #{tpu_custom_call.1} parent=5 // pred_fallthru
        _
      %p323 = scmp.lt.s32.totalorder %s24, 2
      // Predicated region
      $region37: #{tpu_custom_call.1} parent=5 // pred_check
        %p324 = pneg %p323
      $region38: #{tpu_custom_call.1} parent=5 // pred_check_branch
        %326 = sbr.rel (%p324) target = $region40
      $region39: #{tpu_custom_call.1} parent=5 // pred_region
        // Predicated region
        $region41: #{tpu_custom_call.1} parent=39 // pred_check
          %p327 = pneg %p44
        $region42: #{tpu_custom_call.1} parent=39 // pred_check_branch
          %329 = sbr.rel (%p327) target = $region44
        $region43: #{tpu_custom_call.1} parent=39 // pred_region
          %p330 = scmp.lt.s32.totalorder %s24, 1
          %s331 = scalar_select %p330, %s24, 1
          %s332 = smul.addr %s331, 32
          %s333 = smul.addr %s332, 8
          %s334 = scalar_lea.vmem %s0, %s333
        $region44: #{tpu_custom_call.1} parent=39 // pred_fallthru
          _
      $region40: #{tpu_custom_call.1} parent=5 // pred_fallthru
        _
      %p335 = scmp.le.s32.totalorder 1, %s24
      %p336 = scmp.lt.s32.totalorder %s24, 3
      %p337 = pnand %p335, %p336
      %p338 = pneg %p337
      // Predicated region
      $region45: #{tpu_custom_call.1} parent=5 // pred_check
        _
      $region46: #{tpu_custom_call.1} parent=5 // pred_check_branch
        %340 = sbr.rel (%p337) target = $region48
      $region47: #{tpu_custom_call.1} parent=5 // pred_region
        %s341 = ssub.s32 %s24, 1
        // Predicated region
        $region49: #{tpu_custom_call.1} parent=47 // pred_check
          %p342 = pneg %p71
        $region50: #{tpu_custom_call.1} parent=47 // pred_check_branch
          %344 = sbr.rel (%p342) target = $region52
        $region51: #{tpu_custom_call.1} parent=47 // pred_region
          %345 = dma.done [#allocation3], 8192
        $region52: #{tpu_custom_call.1} parent=47 // pred_fallthru
          _
        %p346 = scmp.lt.s32.totalorder %s29, 1
        %s347 = scalar_select %p346, %s29, 1
        %s348 = smul.addr %s347, 32
        %s349 = smul.addr %s348, 8
        %s350 = scalar_lea.vmem %s0, %s349
        %p351 = pneg %p50
        %p352 = pneg %p47
        %p353 = pneg %p71
        %p354 = pneg %p68
        %p355 = pneg %p92
        %p356 = pneg %p89
        %p357 = pneg %p113
        %p358 = pneg %p110
        %p359 = pneg %p134
        %p360 = pneg %p131
        %p361 = pneg %p155
        %p362 = pneg %p152
        %p363 = pneg %p176
        %p364 = pneg %p173
        %p365 = pneg %p202
        %p366 = pneg %p199
        %s367 = sand.u32 %s189, 1
        %s368 = scalar_lea.sflag [#allocation4], %s367
        %s369 = sand.u32 %s189, 1
        %s370 = smul.addr %s369, 256
        %s371 = scalar_lea.vmem [#allocation5], %s370
        %p372 = pneg %p228
        %p373 = pneg %p225
        %s374 = sand.u32 %s29, 1
        %s375 = scalar_lea.sflag [#allocation7], %s374
        %s376 = sand.u32 %s215, 1
        %s377 = smul.addr %s376, 256
        %s378 = scalar_lea.vmem [#allocation6], %s377
        %p379 = pneg %p254
        %p380 = pneg %p251
        %s381 = sand.u32 %s29, 1
        %s382 = scalar_lea.sflag [#allocation7], %s381
        %s383 = sand.u32 %s241, 1
        %s384 = smul.addr %s383, 256
        %s385 = scalar_lea.vmem [#allocation8], %s384
        %p386 = pneg %p280
        %p387 = pneg %p277
        %p388 = scmp.lt.s32.totalorder %s29, 1
        %s389 = scalar_select %p388, %s29, 1
        %s390 = smul.addr %s389, 16
        %s391 = smul.addr %s390, 8
        %s392 = scalar_lea.vmem %s10, %s391
        %p393 = scmp.lt.s32.totalorder %s29, 1
        %s394 = scalar_select %p393, %s29, 1
        %s395 = smul.addr %s394, 32
        %s396 = smul.addr %s395, 8
        %s397 = scalar_lea.vmem %s0, %s396
        %p398 = scmp.lt.s32.totalorder %s29, 1
        %s399 = scalar_select %p398, %s29, 1
        %s400 = smul.addr %s399, 16
        %s401 = smul.addr %s400, 8
        %s402 = scalar_lea.vmem %s10, %s401
        %v403 = vld [vmem:[%s397] sm:$0xff]
        %v404 = vld [vmem:[%s397 + $0x8] sm:$0xff]
        %v405 = vld [vmem:[%s397 + $0x10] sm:$0xff]
        %v406 = vld [vmem:[%s397 + $0x18] sm:$0xff]
        %v407 = vld [vmem:[%s397 + $0x20] sm:$0xff]
        %v408 = vld [vmem:[%s397 + $0x28] sm:$0xff]
        %v409 = vld [vmem:[%s397 + $0x30] sm:$0xff]
        %v410 = vld [vmem:[%s397 + $0x38] sm:$0xff]
        %v411 = vld [vmem:[%s397 + $0x40] sm:$0xff]
        %v412 = vld [vmem:[%s397 + $0x48] sm:$0xff]
        %v413 = vld [vmem:[%s397 + $0x50] sm:$0xff]
        %v414 = vld [vmem:[%s397 + $0x58] sm:$0xff]
        %v415 = vld [vmem:[%s397 + $0x60] sm:$0xff]
        %v416 = vld [vmem:[%s397 + $0x68] sm:$0xff]
        %v417 = vld [vmem:[%s397 + $0x70] sm:$0xff]
        %v418 = vld [vmem:[%s397 + $0x78] sm:$0xff]
        %v419 = vld [vmem:[%s397 + $0x80] sm:$0xff]
        %v420 = vld [vmem:[%s397 + $0x88] sm:$0xff]
        %v421 = vld [vmem:[%s397 + $0x90] sm:$0xff]
        %v422 = vld [vmem:[%s397 + $0x98] sm:$0xff]
        %v423 = vld [vmem:[%s397 + $0xa0] sm:$0xff]
        %v424 = vld [vmem:[%s397 + $0xa8] sm:$0xff]
        %v425 = vld [vmem:[%s397 + $0xb0] sm:$0xff]
        %v426 = vld [vmem:[%s397 + $0xb8] sm:$0xff]
        %v427 = vld [vmem:[%s397 + $0xc0] sm:$0xff]
        %v428 = vld [vmem:[%s397 + $0xc8] sm:$0xff]
        %v429 = vld [vmem:[%s397 + $0xd0] sm:$0xff]
        %v430 = vld [vmem:[%s397 + $0xd8] sm:$0xff]
        %v431 = vld [vmem:[%s397 + $0xe0] sm:$0xff]
        %v432 = vld [vmem:[%s397 + $0xe8] sm:$0xff]
        %v433 = vld [vmem:[%s397 + $0xf0] sm:$0xff]
        %v434 = vld [vmem:[%s397 + $0xf8] sm:$0xff]
        %v435 = vld [vmem:[#allocation2] sm:$0xff]
        %v436 = vld [vmem:[#allocation2 + $0x8] sm:$0xff]
        %v437 = vld [vmem:[#allocation2 + $0x10] sm:$0xff]
        %v438 = vld [vmem:[#allocation2 + $0x18] sm:$0xff]
        %v439 = vld [vmem:[#allocation2 + $0x20] sm:$0xff]
        %v440 = vld [vmem:[#allocation2 + $0x28] sm:$0xff]
        %v441 = vld [vmem:[#allocation2 + $0x30] sm:$0xff]
        %v442 = vld [vmem:[#allocation2 + $0x38] sm:$0xff]
        %v443 = vld [vmem:[#allocation2 + $0x40] sm:$0xff]
        %v444 = vld [vmem:[#allocation2 + $0x48] sm:$0xff]
        %v445 = vld [vmem:[#allocation2 + $0x50] sm:$0xff]
        %v446 = vld [vmem:[#allocation2 + $0x58] sm:$0xff]
        %v447 = vld [vmem:[#allocation2 + $0x60] sm:$0xff]
        %v448 = vld [vmem:[#allocation2 + $0x68] sm:$0xff]
        %v449 = vld [vmem:[#allocation2 + $0x70] sm:$0xff]
        %v450 = vld [vmem:[#allocation2 + $0x78] sm:$0xff]
        %v451 = vld [vmem:[#allocation2 + $0x80] sm:$0xff]
        %v452 = vld [vmem:[#allocation2 + $0x88] sm:$0xff]
        %v453 = vld [vmem:[#allocation2 + $0x90] sm:$0xff]
        %v454 = vld [vmem:[#allocation2 + $0x98] sm:$0xff]
        %v455 = vld [vmem:[#allocation2 + $0xa0] sm:$0xff]
        %v456 = vld [vmem:[#allocation2 + $0xa8] sm:$0xff]
        %v457 = vld [vmem:[#allocation2 + $0xb0] sm:$0xff]
        %v458 = vld [vmem:[#allocation2 + $0xb8] sm:$0xff]
        %v459 = vld [vmem:[#allocation2 + $0xc0] sm:$0xff]
        %v460 = vld [vmem:[#allocation2 + $0xc8] sm:$0xff]
        %v461 = vld [vmem:[#allocation2 + $0xd0] sm:$0xff]
        %v462 = vld [vmem:[#allocation2 + $0xd8] sm:$0xff]
        %v463 = vld [vmem:[#allocation2 + $0xe0] sm:$0xff]
        %v464 = vld [vmem:[#allocation2 + $0xe8] sm:$0xff]
        %v465 = vld [vmem:[#allocation2 + $0xf0] sm:$0xff]
        %v466 = vld [vmem:[#allocation2 + $0xf8] sm:$0xff]
        %v467 = vld [vmem:[#allocation2 + $0x100] sm:$0xff]
        %v468 = vld [vmem:[#allocation2 + $0x108] sm:$0xff]
        %v469 = vld [vmem:[#allocation2 + $0x110] sm:$0xff]
        %v470 = vld [vmem:[#allocation2 + $0x118] sm:$0xff]
        %v471 = vld [vmem:[#allocation2 + $0x120] sm:$0xff]
        %v472 = vld [vmem:[#allocation2 + $0x128] sm:$0xff]
        %v473 = vld [vmem:[#allocation2 + $0x130] sm:$0xff]
        %v474 = vld [vmem:[#allocation2 + $0x138] sm:$0xff]
        %v475 = vld [vmem:[#allocation2 + $0x140] sm:$0xff]
        %v476 = vld [vmem:[#allocation2 + $0x148] sm:$0xff]
        %v477 = vld [vmem:[#allocation2 + $0x150] sm:$0xff]
        %v478 = vld [vmem:[#allocation2 + $0x158] sm:$0xff]
        %v479 = vld [vmem:[#allocation2 + $0x160] sm:$0xff]
        %v480 = vld [vmem:[#allocation2 + $0x168] sm:$0xff]
        %v481 = vld [vmem:[#allocation2 + $0x170] sm:$0xff]
        %v482 = vld [vmem:[#allocation2 + $0x178] sm:$0xff]
        %v483 = vld [vmem:[#allocation2 + $0x180] sm:$0xff]
        %v484 = vld [vmem:[#allocation2 + $0x188] sm:$0xff]
        %v485 = vld [vmem:[#allocation2 + $0x190] sm:$0xff]
        %v486 = vld [vmem:[#allocation2 + $0x198] sm:$0xff]
        %v487 = vld [vmem:[#allocation2 + $0x1a0] sm:$0xff]
        %v488 = vld [vmem:[#allocation2 + $0x1a8] sm:$0xff]
        %v489 = vld [vmem:[#allocation2 + $0x1b0] sm:$0xff]
        %v490 = vld [vmem:[#allocation2 + $0x1b8] sm:$0xff]
        %v491 = vld [vmem:[#allocation2 + $0x1c0] sm:$0xff]
        %v492 = vld [vmem:[#allocation2 + $0x1c8] sm:$0xff]
        %v493 = vld [vmem:[#allocation2 + $0x1d0] sm:$0xff]
        %v494 = vld [vmem:[#allocation2 + $0x1d8] sm:$0xff]
        %v495 = vld [vmem:[#allocation2 + $0x1e0] sm:$0xff]
        %v496 = vld [vmem:[#allocation2 + $0x1e8] sm:$0xff]
        %v497 = vld [vmem:[#allocation2 + $0x1f0] sm:$0xff]
        %v498 = vld [vmem:[#allocation2 + $0x1f8] sm:$0xff]
        %499 = vmatprep.subr.mxu0 %v436
        %500 = vmatpush1.msra.mxu0 %v435
        %501 = vmatprep.subr.mxu0 %v438
        %502 = vmatpush1.msra.mxu0 %v437
        %503 = vmatprep.subr.mxu0 %v440
        %504 = vmatpush1.msra.mxu0 %v439
        %505 = vmatprep.subr.mxu0 %v442
        %506 = vmatpush1.msra.mxu0 %v441
        %507 = vmatprep.subr.mxu0 %v444
        %508 = vmatpush1.msra.mxu0 %v443
        %509 = vmatprep.subr.mxu0 %v446
        %510 = vmatpush1.msra.mxu0 %v445
        %511 = vmatprep.subr.mxu0 %v448
        %512 = vmatpush1.msra.mxu0 %v447
        %513 = vmatprep.subr.mxu0 %v450
        %514 = vmatpush1.msra.mxu0 %v449
        %515 = vmatprep.subr.mxu0 %v452
        %516 = vmatpush1.msra.mxu0 %v451
        %517 = vmatprep.subr.mxu0 %v454
        %518 = vmatpush1.msra.mxu0 %v453
        %519 = vmatprep.subr.mxu0 %v456
        %520 = vmatpush1.msra.mxu0 %v455
        %521 = vmatprep.subr.mxu0 %v458
        %522 = vmatpush1.msra.mxu0 %v457
        %523 = vmatprep.subr.mxu0 %v460
        %524 = vmatpush1.msra.mxu0 %v459
        %525 = vmatprep.subr.mxu0 %v462
        %526 = vmatpush1.msra.mxu0 %v461
        %527 = vmatprep.subr.mxu0 %v464
        %528 = vmatpush1.msra.mxu0 %v463
        %529 = vmatprep.subr.mxu0 %v466
        %530 = vmatpush1.msra.mxu0 %v465
        %531 = vmatprep.subr.mxu0 %v468
        %532 = vmatpush1.msra.mxu0 %v467
        %533 = vmatprep.subr.mxu0 %v470
        %534 = vmatpush1.msra.mxu0 %v469
        %535 = vmatprep.subr.mxu0 %v472
        %536 = vmatpush1.msra.mxu0 %v471
        %537 = vmatprep.subr.mxu0 %v474
        %538 = vmatpush1.msra.mxu0 %v473
        %539 = vmatprep.subr.mxu0 %v476
        %540 = vmatpush1.msra.mxu0 %v475
        %541 = vmatprep.subr.mxu0 %v478
        %542 = vmatpush1.msra.mxu0 %v477
        %543 = vmatprep.subr.mxu0 %v480
        %544 = vmatpush1.msra.mxu0 %v479
        %545 = vmatprep.subr.mxu0 %v482
        %546 = vmatpush1.msra.mxu0 %v481
        %547 = vmatprep.subr.mxu0 %v484
        %548 = vmatpush1.msra.mxu0 %v483
        %549 = vmatprep.subr.mxu0 %v486
        %550 = vmatpush1.msra.mxu0 %v485
        %551 = vmatprep.subr.mxu0 %v488
        %552 = vmatpush1.msra.mxu0 %v487
        %553 = vmatprep.subr.mxu0 %v490
        %554 = vmatpush1.msra.mxu0 %v489
        %555 = vmatprep.subr.mxu0 %v492
        %556 = vmatpush1.msra.mxu0 %v491
        %557 = vmatprep.subr.mxu0 %v494
        %558 = vmatpush1.msra.mxu0 %v493
        %559 = vmatprep.subr.mxu0 %v496
        %560 = vmatpush1.msra.mxu0 %v495
        %561 = vmatprep.subr.mxu0 %v498
        %562 = vmatpush1.msra.mxu0 %v497
        %563 = vmatprep.mubr.f32.mxu0 %v404
        %564 = vmatmul.mubr.f32.gmra.mrb[0].mxu0 %v403
        %v565 = vpop.f32.mrb[0].mxu0
        %v566 = vadd.f32 0.0, %v565
        %v567 = vpop.f32.mrb[0].mxu0
        %v568 = vadd.f32 0.0, %v567
        %569 = vmatprep.mubr.f32.mxu0 %v406
        %570 = vmatmul.mubr.f32.gmra.mrb[0].mxu0 %v405
        %v571 = vpop.f32.mrb[0].mxu0
        %v572 = vadd.f32 0.0, %v571
        %v573 = vpop.f32.mrb[0].mxu0
        %v574 = vadd.f32 0.0, %v573
        %575 = vmatprep.mubr.f32.mxu0 %v408
        %576 = vmatmul.mubr.f32.gmra.mrb[0].mxu0 %v407
        %v577 = vpop.f32.mrb[0].mxu0
        %v578 = vadd.f32 0.0, %v577
        %v579 = vpop.f32.mrb[0].mxu0
        %v580 = vadd.f32 0.0, %v579
        %581 = vmatprep.mubr.f32.mxu0 %v410
        %582 = vmatmul.mubr.f32.gmra.mrb[0].mxu0 %v409
        %v583 = vpop.f32.mrb[0].mxu0
        %v584 = vadd.f32 0.0, %v583
        %v585 = vpop.f32.mrb[0].mxu0
        %v586 = vadd.f32 0.0, %v585
        %587 = vmatprep.mubr.f32.mxu0 %v412
        %588 = vmatmul.mubr.f32.gmra.mrb[0].mxu0 %v411
        %v589 = vpop.f32.mrb[0].mxu0
        %v590 = vadd.f32 0.0, %v589
        %v591 = vpop.f32.mrb[0].mxu0
        %v592 = vadd.f32 0.0, %v591
        %593 = vmatprep.mubr.f32.mxu0 %v414
        %594 = vmatmul.mubr.f32.gmra.mrb[0].mxu0 %v413
        %v595 = vpop.f32.mrb[0].mxu0
        %v596 = vadd.f32 0.0, %v595
        %v597 = vpop.f32.mrb[0].mxu0
        %v598 = vadd.f32 0.0, %v597
        %599 = vmatprep.mubr.f32.mxu0 %v416
        %600 = vmatmul.mubr.f32.gmra.mrb[0].mxu0 %v415
        %v601 = vpop.f32.mrb[0].mxu0
        %v602 = vadd.f32 0.0, %v601
        %v603 = vpop.f32.mrb[0].mxu0
        %v604 = vadd.f32 0.0, %v603
        %605 = vmatprep.mubr.f32.mxu0 %v418
        %606 = vmatmul.mubr.f32.gmra.mrb[0].mxu0 %v417
        %v607 = vpop.f32.mrb[0].mxu0
        %v608 = vadd.f32 0.0, %v607
        %v609 = vpop.f32.mrb[0].mxu0
        %v610 = vadd.f32 0.0, %v609
        %611 = vmatprep.mubr.f32.mxu0 %v420
        %612 = vmatmul.mubr.f32.gmra.mrb[0].mxu0 %v419
        %v613 = vpop.f32.mrb[0].mxu0
        %v614 = vadd.f32 0.0, %v613
        %v615 = vpop.f32.mrb[0].mxu0
        %v616 = vadd.f32 0.0, %v615
        %617 = vmatprep.mubr.f32.mxu0 %v422
        %618 = vmatmul.mubr.f32.gmra.mrb[0].mxu0 %v421
        %v619 = vpop.f32.mrb[0].mxu0
        %v620 = vadd.f32 0.0, %v619
        %v621 = vpop.f32.mrb[0].mxu0
        %v622 = vadd.f32 0.0, %v621
        %623 = vmatprep.mubr.f32.mxu0 %v424
        %624 = vmatmul.mubr.f32.gmra.mrb[0].mxu0 %v423
        %v625 = vpop.f32.mrb[0].mxu0
        %v626 = vadd.f32 0.0, %v625
        %v627 = vpop.f32.mrb[0].mxu0
        %v628 = vadd.f32 0.0, %v627
        %629 = vmatprep.mubr.f32.mxu0 %v426
        %630 = vmatmul.mubr.f32.gmra.mrb[0].mxu0 %v425
        %v631 = vpop.f32.mrb[0].mxu0
        %v632 = vadd.f32 0.0, %v631
        %v633 = vpop.f32.mrb[0].mxu0
        %v634 = vadd.f32 0.0, %v633
        %635 = vmatprep.mubr.f32.mxu0 %v428
        %636 = vmatmul.mubr.f32.gmra.mrb[0].mxu0 %v427
        %v637 = vpop.f32.mrb[0].mxu0
        %v638 = vadd.f32 0.0, %v637
        %v639 = vpop.f32.mrb[0].mxu0
        %v640 = vadd.f32 0.0, %v639
        %641 = vmatprep.mubr.f32.mxu0 %v430
        %642 = vmatmul.mubr.f32.gmra.mrb[0].mxu0 %v429
        %v643 = vpop.f32.mrb[0].mxu0
        %v644 = vadd.f32 0.0, %v643
        %v645 = vpop.f32.mrb[0].mxu0
        %v646 = vadd.f32 0.0, %v645
        %647 = vmatprep.mubr.f32.mxu0 %v432
        %648 = vmatmul.mubr.f32.gmra.mrb[0].mxu0 %v431
        %v649 = vpop.f32.mrb[0].mxu0
        %v650 = vadd.f32 0.0, %v649
        %v651 = vpop.f32.mrb[0].mxu0
        %v652 = vadd.f32 0.0, %v651
        %653 = vmatprep.mubr.f32.mxu0 %v434
        %654 = vmatmul.mubr.f32.gmra.mrb[0].mxu0 %v433
        %v655 = vpop.f32.mrb[0].mxu0
        %v656 = vadd.f32 0.0, %v655
        %v657 = vpop.f32.mrb[0].mxu0
        %v658 = vadd.f32 0.0, %v657
        %659 = vdwg.mxu0
        %v660 = vadd.f32 %v566, %v572
        %v661 = vadd.f32 %v660, %v578
        %v662 = vadd.f32 %v661, %v584
        %v663 = vadd.f32 %v662, %v590
        %v664 = vadd.f32 %v663, %v596
        %v665 = vadd.f32 %v664, %v602
        %v666 = vadd.f32 %v665, %v608
        %v667 = vadd.f32 %v666, %v614
        %v668 = vadd.f32 %v667, %v620
        %v669 = vadd.f32 %v668, %v626
        %v670 = vadd.f32 %v669, %v632
        %v671 = vadd.f32 %v670, %v638
        %v672 = vadd.f32 %v671, %v644
        %v673 = vadd.f32 %v672, %v650
        %v674 = vadd.f32 %v673, %v656
        %675 = vadd.xlane.f32.xlu0 %v674
        %v676 = vpop.xlane.xlu0 %675
        %v677 = vrot.slane %v676, 4
        %v678 = vadd.f32 %v676, %v677
        %v679 = vrot.slane %v678, 2
        %v680 = vadd.f32 %v678, %v679
        %v681 = vrot.slane %v680, 1
        %v682 = vadd.f32 %v680, %v681
        %s683 = vtos %v682
        %v684 = vstv %s683
        %v685 = vrcp.pop 16384.0
        %v686 = vmul.f32 %v684, %v685
        %v687 = vsub.f32 %v566, %v686
        %v688 = vsub.f32 %v572, %v686
        %v689 = vsub.f32 %v578, %v686
        %v690 = vsub.f32 %v584, %v686
        %v691 = vsub.f32 %v590, %v686
        %v692 = vsub.f32 %v596, %v686
        %v693 = vsub.f32 %v602, %v686
        %v694 = vsub.f32 %v608, %v686
        %v695 = vsub.f32 %v614, %v686
        %v696 = vsub.f32 %v620, %v686
        %v697 = vsub.f32 %v626, %v686
        %v698 = vsub.f32 %v632, %v686
        %v699 = vsub.f32 %v638, %v686
        %v700 = vsub.f32 %v644, %v686
        %v701 = vsub.f32 %v650, %v686
        %v702 = vsub.f32 %v656, %v686
        %v703 = vmul.f32 %v687, %v687
        %v704 = vmul.f32 %v688, %v688
        %v705 = vmul.f32 %v689, %v689
        %v706 = vmul.f32 %v690, %v690
        %v707 = vmul.f32 %v691, %v691
        %v708 = vmul.f32 %v692, %v692
        %v709 = vmul.f32 %v693, %v693
        %v710 = vmul.f32 %v694, %v694
        %v711 = vmul.f32 %v695, %v695
        %v712 = vmul.f32 %v696, %v696
        %v713 = vmul.f32 %v697, %v697
        %v714 = vmul.f32 %v698, %v698
        %v715 = vmul.f32 %v699, %v699
        %v716 = vmul.f32 %v700, %v700
        %v717 = vmul.f32 %v701, %v701
        %v718 = vmul.f32 %v702, %v702
        %v719 = vadd.f32 %v703, %v704
        %v720 = vadd.f32 %v719, %v705
        %v721 = vadd.f32 %v720, %v706
        %v722 = vadd.f32 %v721, %v707
        %v723 = vadd.f32 %v722, %v708
        %v724 = vadd.f32 %v723, %v709
        %v725 = vadd.f32 %v724, %v710
        %v726 = vadd.f32 %v725, %v711
        %v727 = vadd.f32 %v726, %v712
        %v728 = vadd.f32 %v727, %v713
        %v729 = vadd.f32 %v728, %v714
        %v730 = vadd.f32 %v729, %v715
        %v731 = vadd.f32 %v730, %v716
        %v732 = vadd.f32 %v731, %v717
        %v733 = vadd.f32 %v732, %v718
        %734 = vadd.xlane.f32.xlu0 %v733
        %v735 = vpop.xlane.xlu0 %734
        %v736 = vrot.slane %v735, 4
        %v737 = vadd.f32 %v735, %v736
        %v738 = vrot.slane %v737, 2
        %v739 = vadd.f32 %v737, %v738
        %v740 = vrot.slane %v739, 1
        %v741 = vadd.f32 %v739, %v740
        %s742 = vtos %v741
        %v743 = vstv %s742
        %v744 = vmul.f32 %v743, %v685
        %v745 = vadd.f32 %v744, 1e-05
        %v746 = vrsqrt.pop %v745
        %v747 = vmul.f32 %v687, %v746
        %v748 = vmul.f32 %v688, %v746
        %v749 = vmul.f32 %v689, %v746
        %v750 = vmul.f32 %v690, %v746
        %v751 = vmul.f32 %v691, %v746
        %v752 = vmul.f32 %v692, %v746
        %v753 = vmul.f32 %v693, %v746
        %v754 = vmul.f32 %v694, %v746
        %v755 = vmul.f32 %v695, %v746
        %v756 = vmul.f32 %v696, %v746
        %v757 = vmul.f32 %v697, %v746
        %v758 = vmul.f32 %v698, %v746
        %v759 = vmul.f32 %v699, %v746
        %v760 = vmul.f32 %v700, %v746
        %v761 = vmul.f32 %v701, %v746
        %v762 = vmul.f32 %v702, %v746
        %v763 = vld [vmem:[%s2] sm:$0x1]
        %v765 = vlaneseq
        %v766 = vshrl.u32 %v765, 7
        %v767 = vsub.s32 0, %v766
        %v768 = vrot.slane %v763, %v767
        %v770 = vmul.f32 %v747, %v768
        %v771 = vmul.f32 %v748, %v768
        %v772 = vmul.f32 %v749, %v768
        %v773 = vmul.f32 %v750, %v768
        %v774 = vmul.f32 %v751, %v768
        %v775 = vmul.f32 %v752, %v768
        %v776 = vmul.f32 %v753, %v768
        %v777 = vmul.f32 %v754, %v768
        %v778 = vmul.f32 %v755, %v768
        %v779 = vmul.f32 %v756, %v768
        %v780 = vmul.f32 %v757, %v768
        %v781 = vmul.f32 %v758, %v768
        %v782 = vmul.f32 %v759, %v768
        %v783 = vmul.f32 %v760, %v768
        %v784 = vmul.f32 %v761, %v768
        %v785 = vmul.f32 %v762, %v768
        %v786 = vld [vmem:[%s3] sm:$0x1]
        %v788 = vlaneseq
        %v789 = vshrl.u32 %v788, 7
        %v790 = vsub.s32 0, %v789
        %v791 = vrot.slane %v786, %v790
        %v793 = vadd.f32 %v770, %v791
        %v794 = vadd.f32 %v771, %v791
        %v795 = vadd.f32 %v772, %v791
        %v796 = vadd.f32 %v773, %v791
        %v797 = vadd.f32 %v774, %v791
        %v798 = vadd.f32 %v775, %v791
        %v799 = vadd.f32 %v776, %v791
        %v800 = vadd.f32 %v777, %v791
        %v801 = vadd.f32 %v778, %v791
        %v802 = vadd.f32 %v779, %v791
        %v803 = vadd.f32 %v780, %v791
        %v804 = vadd.f32 %v781, %v791
        %v805 = vadd.f32 %v782, %v791
        %v806 = vadd.f32 %v783, %v791
        %v807 = vadd.f32 %v784, %v791
        %v808 = vadd.f32 %v785, %v791
        %v809 = vld [vmem:[%s4] sm:$0xff]
        %v810 = vld [vmem:[%s4 + $0x8] sm:$0xff]
        %v811 = vld [vmem:[%s4 + $0x10] sm:$0xff]
        %v812 = vld [vmem:[%s4 + $0x18] sm:$0xff]
        %v813 = vld [vmem:[%s4 + $0x20] sm:$0xff]
        %v814 = vld [vmem:[%s4 + $0x28] sm:$0xff]
        %v815 = vld [vmem:[%s4 + $0x30] sm:$0xff]
        %v816 = vld [vmem:[%s4 + $0x38] sm:$0xff]
        %v817 = vld [vmem:[%s4 + $0x40] sm:$0xff]
        %v818 = vld [vmem:[%s4 + $0x48] sm:$0xff]
        %v819 = vld [vmem:[%s4 + $0x50] sm:$0xff]
        %v820 = vld [vmem:[%s4 + $0x58] sm:$0xff]
        %v821 = vld [vmem:[%s4 + $0x60] sm:$0xff]
        %v822 = vld [vmem:[%s4 + $0x68] sm:$0xff]
        %v823 = vld [vmem:[%s4 + $0x70] sm:$0xff]
        %v824 = vld [vmem:[%s4 + $0x78] sm:$0xff]
        %v825 = vld [vmem:[%s4 + $0x80] sm:$0xff]
        %v826 = vld [vmem:[%s4 + $0x88] sm:$0xff]
        %v827 = vld [vmem:[%s4 + $0x90] sm:$0xff]
        %v828 = vld [vmem:[%s4 + $0x98] sm:$0xff]
        %v829 = vld [vmem:[%s4 + $0xa0] sm:$0xff]
        %v830 = vld [vmem:[%s4 + $0xa8] sm:$0xff]
        %v831 = vld [vmem:[%s4 + $0xb0] sm:$0xff]
        %v832 = vld [vmem:[%s4 + $0xb8] sm:$0xff]
        %v833 = vld [vmem:[%s4 + $0xc0] sm:$0xff]
        %v834 = vld [vmem:[%s4 + $0xc8] sm:$0xff]
        %v835 = vld [vmem:[%s4 + $0xd0] sm:$0xff]
        %v836 = vld [vmem:[%s4 + $0xd8] sm:$0xff]
        %v837 = vld [vmem:[%s4 + $0xe0] sm:$0xff]
        %v838 = vld [vmem:[%s4 + $0xe8] sm:$0xff]
        %v839 = vld [vmem:[%s4 + $0xf0] sm:$0xff]
        %v840 = vld [vmem:[%s4 + $0xf8] sm:$0xff]
        %v841 = vld [vmem:[%s4 + $0x100] sm:$0xff]
        %v842 = vld [vmem:[%s4 + $0x108] sm:$0xff]
        %v843 = vld [vmem:[%s4 + $0x110] sm:$0xff]
        %v844 = vld [vmem:[%s4 + $0x118] sm:$0xff]
        %v845 = vld [vmem:[%s4 + $0x120] sm:$0xff]
        %v846 = vld [vmem:[%s4 + $0x128] sm:$0xff]
        %v847 = vld [vmem:[%s4 + $0x130] sm:$0xff]
        %v848 = vld [vmem:[%s4 + $0x138] sm:$0xff]
        %v849 = vld [vmem:[%s4 + $0x140] sm:$0xff]
        %v850 = vld [vmem:[%s4 + $0x148] sm:$0xff]
        %v851 = vld [vmem:[%s4 + $0x150] sm:$0xff]
        %v852 = vld [vmem:[%s4 + $0x158] sm:$0xff]
        %v853 = vld [vmem:[%s4 + $0x160] sm:$0xff]
        %v854 = vld [vmem:[%s4 + $0x168] sm:$0xff]
        %v855 = vld [vmem:[%s4 + $0x170] sm:$0xff]
        %v856 = vld [vmem:[%s4 + $0x178] sm:$0xff]
        %857 = vmatprep.subr.mxu0 %v810
        %858 = vmatpush1.msra.mxu0 %v809
        %859 = vmatprep.subr.mxu0 %v813
        %860 = vmatpush1.msra.mxu0 %v812
        %861 = vmatprep.subr.mxu0 %v816
        %862 = vmatpush1.msra.mxu0 %v815
        %863 = vmatprep.subr.mxu0 %v819
        %864 = vmatpush1.msra.mxu0 %v818
        %865 = vmatprep.subr.mxu0 %v822
        %866 = vmatpush1.msra.mxu0 %v821
        %867 = vmatprep.subr.mxu0 %v825
        %868 = vmatpush1.msra.mxu0 %v824
        %869 = vmatprep.subr.mxu0 %v828
        %870 = vmatpush1.msra.mxu0 %v827
        %871 = vmatprep.subr.mxu0 %v831
        %872 = vmatpush1.msra.mxu0 %v830
        %873 = vmatprep.subr.mxu0 %v834
        %874 = vmatpush1.msra.mxu0 %v833
        %875 = vmatprep.subr.mxu0 %v837
        %876 = vmatpush1.msra.mxu0 %v836
        %877 = vmatprep.subr.mxu0 %v840
        %878 = vmatpush1.msra.mxu0 %v839
        %879 = vmatprep.subr.mxu0 %v843
        %880 = vmatpush1.msra.mxu0 %v842
        %881 = vmatprep.subr.mxu0 %v846
        %882 = vmatpush1.msra.mxu0 %v845
        %883 = vmatprep.subr.mxu0 %v849
        %884 = vmatpush1.msra.mxu0 %v848
        %885 = vmatprep.subr.mxu0 %v852
        %886 = vmatpush1.msra.mxu0 %v851
        %887 = vmatprep.subr.mxu0 %v855
        %888 = vmatpush1.msra.mxu0 %v854
        %889 = vmatprep.subr.mxu0 0.0
        %890 = vmatpush1.msra.mxu0 0.0
        %891 = vmatprep.subr.mxu0 0.0
        %892 = vmatpush1.msra.mxu0 0.0
        %893 = vmatprep.subr.mxu0 0.0
        %894 = vmatpush1.msra.mxu0 0.0
        %895 = vmatprep.subr.mxu0 0.0
        %896 = vmatpush1.msra.mxu0 0.0
        %897 = vmatprep.subr.mxu0 0.0
        %898 = vmatpush1.msra.mxu0 0.0
        %899 = vmatprep.subr.mxu0 0.0
        %900 = vmatpush1.msra.mxu0 0.0
        %901 = vmatprep.subr.mxu0 0.0
        %902 = vmatpush1.msra.mxu0 0.0
        %903 = vmatprep.subr.mxu0 0.0
        %904 = vmatpush1.msra.mxu0 0.0
        %905 = vmatprep.subr.mxu0 0.0
        %906 = vmatpush1.msra.mxu0 0.0
        %907 = vmatprep.subr.mxu0 0.0
        %908 = vmatpush1.msra.mxu0 0.0
        %909 = vmatprep.subr.mxu0 0.0
        %910 = vmatpush1.msra.mxu0 0.0
        %911 = vmatprep.subr.mxu0 0.0
        %912 = vmatpush1.msra.mxu0 0.0
        %913 = vmatprep.subr.mxu0 0.0
        %914 = vmatpush1.msra.mxu0 0.0
        %915 = vmatprep.subr.mxu0 0.0
        %916 = vmatpush1.msra.mxu0 0.0
        %917 = vmatprep.subr.mxu0 0.0
        %918 = vmatpush1.msra.mxu0 0.0
        %919 = vmatprep.subr.mxu0 0.0
        %920 = vmatpush1.msra.mxu0 0.0
        %921 = vmatprep.mubr.f32.mxu0 0.0
        %922 = vmatmul.mubr.f32.gmra.mrb[0].mxu0 %v793
        %v923 = vpop.f32.mrb[0].mxu0
        %v924 = vadd.f32 0.0, %v923
        %v925 = vpop.f32.mrb[0].mxu0
        %v926 = vadd.f32 0.0, %v925
        %927 = vmatprep.mubr.f32.mxu0 0.0
        %928 = vmatmul.mubr.f32.gmra.mrb[0].mxu0 %v794
        %v929 = vpop.f32.mrb[0].mxu0
        %v930 = vadd.f32 0.0, %v929
        %v931 = vpop.f32.mrb[0].mxu0
        %v932 = vadd.f32 0.0, %v931
        %933 = vmatprep.mubr.f32.mxu0 0.0
        %934 = vmatmul.mubr.f32.gmra.mrb[0].mxu0 %v795
        %v935 = vpop.f32.mrb[0].mxu0
        %v936 = vadd.f32 0.0, %v935
        %v937 = vpop.f32.mrb[0].mxu0
        %v938 = vadd.f32 0.0, %v937
        %939 = vmatprep.mubr.f32.mxu0 0.0
        %940 = vmatmul.mubr.f32.gmra.mrb[0].mxu0 %v796
        %v941 = vpop.f32.mrb[0].mxu0
        %v942 = vadd.f32 0.0, %v941
        %v943 = vpop.f32.mrb[0].mxu0
        %v944 = vadd.f32 0.0, %v943
        %945 = vmatprep.mubr.f32.mxu0 0.0
        %946 = vmatmul.mubr.f32.gmra.mrb[0].mxu0 %v797
        %v947 = vpop.f32.mrb[0].mxu0
        %v948 = vadd.f32 0.0, %v947
        %v949 = vpop.f32.mrb[0].mxu0
        %v950 = vadd.f32 0.0, %v949
        %951 = vmatprep.mubr.f32.mxu0 0.0
        %952 = vmatmul.mubr.f32.gmra.mrb[0].mxu0 %v798
        %v953 = vpop.f32.mrb[0].mxu0
        %v954 = vadd.f32 0.0, %v953
        %v955 = vpop.f32.mrb[0].mxu0
        %v956 = vadd.f32 0.0, %v955
        %957 = vmatprep.mubr.f32.mxu0 0.0
        %958 = vmatmul.mubr.f32.gmra.mrb[0].mxu0 %v799
        %v959 = vpop.f32.mrb[0].mxu0
        %v960 = vadd.f32 0.0, %v959
        %v961 = vpop.f32.mrb[0].mxu0
        %v962 = vadd.f32 0.0, %v961
        %963 = vmatprep.mubr.f32.mxu0 0.0
        %964 = vmatmul.mubr.f32.gmra.mrb[0].mxu0 %v800
        %v965 = vpop.f32.mrb[0].mxu0
        %v966 = vadd.f32 0.0, %v965
        %v967 = vpop.f32.mrb[0].mxu0
        %v968 = vadd.f32 0.0, %v967
        %969 = vmatprep.mubr.f32.mxu0 0.0
        %970 = vmatmul.mubr.f32.gmra.mrb[0].mxu0 %v801
        %v971 = vpop.f32.mrb[0].mxu0
        %v972 = vadd.f32 0.0, %v971
        %v973 = vpop.f32.mrb[0].mxu0
        %v974 = vadd.f32 0.0, %v973
        %975 = vmatprep.mubr.f32.mxu0 0.0
        %976 = vmatmul.mubr.f32.gmra.mrb[0].mxu0 %v802
        %v977 = vpop.f32.mrb[0].mxu0
        %v978 = vadd.f32 0.0, %v977
        %v979 = vpop.f32.mrb[0].mxu0
        %v980 = vadd.f32 0.0, %v979
        %981 = vmatprep.mubr.f32.mxu0 0.0
        %982 = vmatmul.mubr.f32.gmra.mrb[0].mxu0 %v803
        %v983 = vpop.f32.mrb[0].mxu0
        %v984 = vadd.f32 0.0, %v983
        %v985 = vpop.f32.mrb[0].mxu0
        %v986 = vadd.f32 0.0, %v985
        %987 = vmatprep.mubr.f32.mxu0 0.0
        %988 = vmatmul.mubr.f32.gmra.mrb[0].mxu0 %v804
        %v989 = vpop.f32.mrb[0].mxu0
        %v990 = vadd.f32 0.0, %v989
        %v991 = vpop.f32.mrb[0].mxu0
        %v992 = vadd.f32 0.0, %v991
        %993 = vmatprep.mubr.f32.mxu0 0.0
        %994 = vmatmul.mubr.f32.gmra.mrb[0].mxu0 %v805
        %v995 = vpop.f32.mrb[0].mxu0
        %v996 = vadd.f32 0.0, %v995
        %v997 = vpop.f32.mrb[0].mxu0
        %v998 = vadd.f32 0.0, %v997
        %999 = vmatprep.mubr.f32.mxu0 0.0
        %1000 = vmatmul.mubr.f32.gmra.mrb[0].mxu0 %v806
        %v1001 = vpop.f32.mrb[0].mxu0
        %v1002 = vadd.f32 0.0, %v1001
        %v1003 = vpop.f32.mrb[0].mxu0
        %v1004 = vadd.f32 0.0, %v1003
        %1005 = vmatprep.mubr.f32.mxu0 0.0
        %1006 = vmatmul.mubr.f32.gmra.mrb[0].mxu0 %v807
        %v1007 = vpop.f32.mrb[0].mxu0
        %v1008 = vadd.f32 0.0, %v1007
        %v1009 = vpop.f32.mrb[0].mxu0
        %v1010 = vadd.f32 0.0, %v1009
        %1011 = vmatprep.mubr.f32.mxu0 0.0
        %1012 = vmatmul.mubr.f32.gmra.mrb[0].mxu0 %v808
        %v1013 = vpop.f32.mrb[0].mxu0
        %v1014 = vadd.f32 0.0, %v1013
        %v1015 = vpop.f32.mrb[0].mxu0
        %v1016 = vadd.f32 0.0, %v1015
        %1017 = vdwg.mxu0
        %1018 = vmatprep.subr.mxu0 0.0
        %1019 = vmatpush1.msra.mxu0 %v811
        %1020 = vmatprep.subr.mxu0 0.0
        %1021 = vmatpush1.msra.mxu0 %v814
        %1022 = vmatprep.subr.mxu0 0.0
        %1023 = vmatpush1.msra.mxu0 %v817
        %1024 = vmatprep.subr.mxu0 0.0
        %1025 = vmatpush1.msra.mxu0 %v820
        %1026 = vmatprep.subr.mxu0 0.0
        %1027 = vmatpush1.msra.mxu0 %v823
        %1028 = vmatprep.subr.mxu0 0.0
        %1029 = vmatpush1.msra.mxu0 %v826
        %1030 = vmatprep.subr.mxu0 0.0
        %1031 = vmatpush1.msra.mxu0 %v829
        %1032 = vmatprep.subr.mxu0 0.0
        %1033 = vmatpush1.msra.mxu0 %v832
        %1034 = vmatprep.subr.mxu0 0.0
        %1035 = vmatpush1.msra.mxu0 %v835
        %1036 = vmatprep.subr.mxu0 0.0
        %1037 = vmatpush1.msra.mxu0 %v838
        %1038 = vmatprep.subr.mxu0 0.0
        %1039 = vmatpush1.msra.mxu0 %v841
        %1040 = vmatprep.subr.mxu0 0.0
        %1041 = vmatpush1.msra.mxu0 %v844
        %1042 = vmatprep.subr.mxu0 0.0
        %1043 = vmatpush1.msra.mxu0 %v847
        %1044 = vmatprep.subr.mxu0 0.0
        %1045 = vmatpush1.msra.mxu0 %v850
        %1046 = vmatprep.subr.mxu0 0.0
        %1047 = vmatpush1.msra.mxu0 %v853
        %1048 = vmatprep.subr.mxu0 0.0
        %1049 = vmatpush1.msra.mxu0 %v856
        %1050 = vmatprep.subr.mxu0 0.0
        %1051 = vmatpush1.msra.mxu0 0.0
        %1052 = vmatprep.subr.mxu0 0.0
        %1053 = vmatpush1.msra.mxu0 0.0
        %1054 = vmatprep.subr.mxu0 0.0
        %1055 = vmatpush1.msra.mxu0 0.0
        %1056 = vmatprep.subr.mxu0 0.0
        %1057 = vmatpush1.msra.mxu0 0.0
        %1058 = vmatprep.subr.mxu0 0.0
        %1059 = vmatpush1.msra.mxu0 0.0
        %1060 = vmatprep.subr.mxu0 0.0
        %1061 = vmatpush1.msra.mxu0 0.0
        %1062 = vmatprep.subr.mxu0 0.0
        %1063 = vmatpush1.msra.mxu0 0.0
        %1064 = vmatprep.subr.mxu0 0.0
        %1065 = vmatpush1.msra.mxu0 0.0
        %1066 = vmatprep.subr.mxu0 0.0
        %1067 = vmatpush1.msra.mxu0 0.0
        %1068 = vmatprep.subr.mxu0 0.0
        %1069 = vmatpush1.msra.mxu0 0.0
        %1070 = vmatprep.subr.mxu0 0.0
        %1071 = vmatpush1.msra.mxu0 0.0
        %1072 = vmatprep.subr.mxu0 0.0
        %1073 = vmatpush1.msra.mxu0 0.0
        %1074 = vmatprep.subr.mxu0 0.0
        %1075 = vmatpush1.msra.mxu0 0.0
        %1076 = vmatprep.subr.mxu0 0.0
        %1077 = vmatpush1.msra.mxu0 0.0
        %1078 = vmatprep.subr.mxu0 0.0
        %1079 = vmatpush1.msra.mxu0 0.0
        %1080 = vmatprep.subr.mxu0 0.0
        %1081 = vmatpush1.msra.mxu0 0.0
        %1082 = vmatprep.mubr.f32.mxu0 0.0
        %1083 = vmatmul.mubr.f32.gmra.mrb[0].mxu0 %v793
        %v1084 = vpop.f32.mrb[0].mxu0
        %v1085 = vadd.f32 0.0, %v1084
        %v1086 = vpop.f32.mrb[0].mxu0
        %1087 = vmatprep.mubr.f32.mxu0 0.0
        %1088 = vmatmul.mubr.f32.gmra.mrb[0].mxu0 %v794
        %v1089 = vpop.f32.mrb[0].mxu0
        %v1090 = vadd.f32 0.0, %v1089
        %v1091 = vpop.f32.mrb[0].mxu0
        %1092 = vmatprep.mubr.f32.mxu0 0.0
        %1093 = vmatmul.mubr.f32.gmra.mrb[0].mxu0 %v795
        %v1094 = vpop.f32.mrb[0].mxu0
        %v1095 = vadd.f32 0.0, %v1094
        %v1096 = vpop.f32.mrb[0].mxu0
        %1097 = vmatprep.mubr.f32.mxu0 0.0
        %1098 = vmatmul.mubr.f32.gmra.mrb[0].mxu0 %v796
        %v1099 = vpop.f32.mrb[0].mxu0
        %v1100 = vadd.f32 0.0, %v1099
        %v1101 = vpop.f32.mrb[0].mxu0
        %1102 = vmatprep.mubr.f32.mxu0 0.0
        %1103 = vmatmul.mubr.f32.gmra.mrb[0].mxu0 %v797
        %v1104 = vpop.f32.mrb[0].mxu0
        %v1105 = vadd.f32 0.0, %v1104
        %v1106 = vpop.f32.mrb[0].mxu0
        %1107 = vmatprep.mubr.f32.mxu0 0.0
        %1108 = vmatmul.mubr.f32.gmra.mrb[0].mxu0 %v798
        %v1109 = vpop.f32.mrb[0].mxu0
        %v1110 = vadd.f32 0.0, %v1109
        %v1111 = vpop.f32.mrb[0].mxu0
        %1112 = vmatprep.mubr.f32.mxu0 0.0
        %1113 = vmatmul.mubr.f32.gmra.mrb[0].mxu0 %v799
        %v1114 = vpop.f32.mrb[0].mxu0
        %v1115 = vadd.f32 0.0, %v1114
        %v1116 = vpop.f32.mrb[0].mxu0
        %1117 = vmatprep.mubr.f32.mxu0 0.0
        %1118 = vmatmul.mubr.f32.gmra.mrb[0].mxu0 %v800
        %v1119 = vpop.f32.mrb[0].mxu0
        %v1120 = vadd.f32 0.0, %v1119
        %v1121 = vpop.f32.mrb[0].mxu0
        %1122 = vmatprep.mubr.f32.mxu0 0.0
        %1123 = vmatmul.mubr.f32.gmra.mrb[0].mxu0 %v801
        %v1124 = vpop.f32.mrb[0].mxu0
        %v1125 = vadd.f32 0.0, %v1124
        %v1126 = vpop.f32.mrb[0].mxu0
        %1127 = vmatprep.mubr.f32.mxu0 0.0
        %1128 = vmatmul.mubr.f32.gmra.mrb[0].mxu0 %v802
        %v1129 = vpop.f32.mrb[0].mxu0
        %v1130 = vadd.f32 0.0, %v1129
        %v1131 = vpop.f32.mrb[0].mxu0
        %1132 = vmatprep.mubr.f32.mxu0 0.0
        %1133 = vmatmul.mubr.f32.gmra.mrb[0].mxu0 %v803
        %v1134 = vpop.f32.mrb[0].mxu0
        %v1135 = vadd.f32 0.0, %v1134
        %v1136 = vpop.f32.mrb[0].mxu0
        %1137 = vmatprep.mubr.f32.mxu0 0.0
        %1138 = vmatmul.mubr.f32.gmra.mrb[0].mxu0 %v804
        %v1139 = vpop.f32.mrb[0].mxu0
        %v1140 = vadd.f32 0.0, %v1139
        %v1141 = vpop.f32.mrb[0].mxu0
        %1142 = vmatprep.mubr.f32.mxu0 0.0
        %1143 = vmatmul.mubr.f32.gmra.mrb[0].mxu0 %v805
        %v1144 = vpop.f32.mrb[0].mxu0
        %v1145 = vadd.f32 0.0, %v1144
        %v1146 = vpop.f32.mrb[0].mxu0
        %1147 = vmatprep.mubr.f32.mxu0 0.0
        %1148 = vmatmul.mubr.f32.gmra.mrb[0].mxu0 %v806
        %v1149 = vpop.f32.mrb[0].mxu0
        %v1150 = vadd.f32 0.0, %v1149
        %v1151 = vpop.f32.mrb[0].mxu0
        %1152 = vmatprep.mubr.f32.mxu0 0.0
        %1153 = vmatmul.mubr.f32.gmra.mrb[0].mxu0 %v807
        %v1154 = vpop.f32.mrb[0].mxu0
        %v1155 = vadd.f32 0.0, %v1154
        %v1156 = vpop.f32.mrb[0].mxu0
        %1157 = vmatprep.mubr.f32.mxu0 0.0
        %1158 = vmatmul.mubr.f32.gmra.mrb[0].mxu0 %v808
        %v1159 = vpop.f32.mrb[0].mxu0
        %v1160 = vadd.f32 0.0, %v1159
        %v1161 = vpop.f32.mrb[0].mxu0
        %1162 = vdwg.mxu0
        %v1163 = vld [vmem:[%s6] sm:$0x7]
        %v1164 = vmul.f32 %v924, 2.0
        %v1165 = vmul.f32 %v926, 2.0
        %v1166 = vmul.f32 %v1085, 2.0
        %v1167 = vmul.f32 %v930, 2.0
        %v1168 = vmul.f32 %v932, 2.0
        %v1169 = vmul.f32 %v1090, 2.0
        %v1170 = vmul.f32 %v936, 2.0
        %v1171 = vmul.f32 %v938, 2.0
        %v1172 = vmul.f32 %v1095, 2.0
        %v1173 = vmul.f32 %v942, 2.0
        %v1174 = vmul.f32 %v944, 2.0
        %v1175 = vmul.f32 %v1100, 2.0
        %v1176 = vmul.f32 %v948, 2.0
        %v1177 = vmul.f32 %v950, 2.0
        %v1178 = vmul.f32 %v1105, 2.0
        %v1179 = vmul.f32 %v954, 2.0
        %v1180 = vmul.f32 %v956, 2.0
        %v1181 = vmul.f32 %v1110, 2.0
        %v1182 = vmul.f32 %v960, 2.0
        %v1183 = vmul.f32 %v962, 2.0
        %v1184 = vmul.f32 %v1115, 2.0
        %v1185 = vmul.f32 %v966, 2.0
        %v1186 = vmul.f32 %v968, 2.0
        %v1187 = vmul.f32 %v1120, 2.0
        %v1188 = vmul.f32 %v972, 2.0
        %v1189 = vmul.f32 %v974, 2.0
        %v1190 = vmul.f32 %v1125, 2.0
        %v1191 = vmul.f32 %v978, 2.0
        %v1192 = vmul.f32 %v980, 2.0
        %v1193 = vmul.f32 %v1130, 2.0
        %v1194 = vmul.f32 %v984, 2.0
        %v1195 = vmul.f32 %v986, 2.0
        %v1196 = vmul.f32 %v1135, 2.0
        %v1197 = vmul.f32 %v990, 2.0
        %v1198 = vmul.f32 %v992, 2.0
        %v1199 = vmul.f32 %v1140, 2.0
        %v1200 = vmul.f32 %v996, 2.0
        %v1201 = vmul.f32 %v998, 2.0
        %v1202 = vmul.f32 %v1145, 2.0
        %v1203 = vmul.f32 %v1002, 2.0
        %v1204 = vmul.f32 %v1004, 2.0
        %v1205 = vmul.f32 %v1150, 2.0
        %v1206 = vmul.f32 %v1008, 2.0
        %v1207 = vmul.f32 %v1010, 2.0
        %v1208 = vmul.f32 %v1155, 2.0
        %v1209 = vmul.f32 %v1014, 2.0
        %v1210 = vmul.f32 %v1016, 2.0
        %v1211 = vmul.f32 %v1160, 2.0
        %v1213 = vlaneseq
        %v1214 = vshrl.u32 %v1213, 7
        %v1215 = vsub.s32 0, %v1214
        %v1216 = vrot.slane %v1163, %v1215
        %v1217 = vlaneseq
        %v1218 = vshrl.u32 %v1217, 7
        %v1219 = vsub.s32 1, %v1218
        %v1220 = vrot.slane %v1163, %v1219
        %v1221 = vlaneseq
        %v1222 = vshrl.u32 %v1221, 7
        %v1223 = vsub.s32 2, %v1222
        %v1224 = vrot.slane %v1163, %v1223
        %v1228 = vsub.f32 %v1216, %v1164
        %v1229 = vsub.f32 %v1220, %v1165
        %v1230 = vsub.f32 %v1224, %v1166
        %v1231 = vsub.f32 %v1216, %v1167
        %v1232 = vsub.f32 %v1220, %v1168
        %v1233 = vsub.f32 %v1224, %v1169
        %v1234 = vsub.f32 %v1216, %v1170
        %v1235 = vsub.f32 %v1220, %v1171
        %v1236 = vsub.f32 %v1224, %v1172
        %v1237 = vsub.f32 %v1216, %v1173
        %v1238 = vsub.f32 %v1220, %v1174
        %v1239 = vsub.f32 %v1224, %v1175
        %v1240 = vsub.f32 %v1216, %v1176
        %v1241 = vsub.f32 %v1220, %v1177
        %v1242 = vsub.f32 %v1224, %v1178
        %v1243 = vsub.f32 %v1216, %v1179
        %v1244 = vsub.f32 %v1220, %v1180
        %v1245 = vsub.f32 %v1224, %v1181
        %v1246 = vsub.f32 %v1216, %v1182
        %v1247 = vsub.f32 %v1220, %v1183
        %v1248 = vsub.f32 %v1224, %v1184
        %v1249 = vsub.f32 %v1216, %v1185
        %v1250 = vsub.f32 %v1220, %v1186
        %v1251 = vsub.f32 %v1224, %v1187
        %v1252 = vsub.f32 %v1216, %v1188
        %v1253 = vsub.f32 %v1220, %v1189
        %v1254 = vsub.f32 %v1224, %v1190
        %v1255 = vsub.f32 %v1216, %v1191
        %v1256 = vsub.f32 %v1220, %v1192
        %v1257 = vsub.f32 %v1224, %v1193
        %v1258 = vsub.f32 %v1216, %v1194
        %v1259 = vsub.f32 %v1220, %v1195
        %v1260 = vsub.f32 %v1224, %v1196
        %v1261 = vsub.f32 %v1216, %v1197
        %v1262 = vsub.f32 %v1220, %v1198
        %v1263 = vsub.f32 %v1224, %v1199
        %v1264 = vsub.f32 %v1216, %v1200
        %v1265 = vsub.f32 %v1220, %v1201
        %v1266 = vsub.f32 %v1224, %v1202
        %v1267 = vsub.f32 %v1216, %v1203
        %v1268 = vsub.f32 %v1220, %v1204
        %v1269 = vsub.f32 %v1224, %v1205
        %v1270 = vsub.f32 %v1216, %v1206
        %v1271 = vsub.f32 %v1220, %v1207
        %v1272 = vsub.f32 %v1224, %v1208
        %v1273 = vsub.f32 %v1216, %v1209
        %v1274 = vsub.f32 %v1220, %v1210
        %v1275 = vsub.f32 %v1224, %v1211
        %v1276 = vmin.f32 %v1228, %v1229
        %vm1277 = vcmask 523264
        %v1278 = vsel %vm1277, %v1230, inf
        %v1279 = vmin.f32 %v1276, %v1278
        %1280 = vmin.xlane.f32.xlu0 %v1279
        %v1281 = vpop.xlane.xlu0 %1280
        %v1282 = vmin.f32 %v1231, %v1232
        %v1283 = vsel %vm1277, %v1233, inf
        %v1284 = vmin.f32 %v1282, %v1283
        %1285 = vmin.xlane.f32.xlu0 %v1284
        %v1286 = vpop.xlane.xlu0 %1285
        %v1287 = vmin.f32 %v1234, %v1235
        %v1288 = vsel %vm1277, %v1236, inf
        %v1289 = vmin.f32 %v1287, %v1288
        %1290 = vmin.xlane.f32.xlu0 %v1289
        %v1291 = vpop.xlane.xlu0 %1290
        %v1292 = vmin.f32 %v1237, %v1238
        %v1293 = vsel %vm1277, %v1239, inf
        %v1294 = vmin.f32 %v1292, %v1293
        %1295 = vmin.xlane.f32.xlu0 %v1294
        %v1296 = vpop.xlane.xlu0 %1295
        %v1297 = vmin.f32 %v1240, %v1241
        %v1298 = vsel %vm1277, %v1242, inf
        %v1299 = vmin.f32 %v1297, %v1298
        %1300 = vmin.xlane.f32.xlu0 %v1299
        %v1301 = vpop.xlane.xlu0 %1300
        %v1302 = vmin.f32 %v1243, %v1244
        %v1303 = vsel %vm1277, %v1245, inf
        %v1304 = vmin.f32 %v1302, %v1303
        %1305 = vmin.xlane.f32.xlu0 %v1304
        %v1306 = vpop.xlane.xlu0 %1305
        %v1307 = vmin.f32 %v1246, %v1247
        %v1308 = vsel %vm1277, %v1248, inf
        %v1309 = vmin.f32 %v1307, %v1308
        %1310 = vmin.xlane.f32.xlu0 %v1309
        %v1311 = vpop.xlane.xlu0 %1310
        %v1312 = vmin.f32 %v1249, %v1250
        %v1313 = vsel %vm1277, %v1251, inf
        %v1314 = vmin.f32 %v1312, %v1313
        %1315 = vmin.xlane.f32.xlu0 %v1314
        %v1316 = vpop.xlane.xlu0 %1315
        %v1317 = vmin.f32 %v1252, %v1253
        %v1318 = vsel %vm1277, %v1254, inf
        %v1319 = vmin.f32 %v1317, %v1318
        %1320 = vmin.xlane.f32.xlu0 %v1319
        %v1321 = vpop.xlane.xlu0 %1320
        %v1322 = vmin.f32 %v1255, %v1256
        %v1323 = vsel %vm1277, %v1257, inf
        %v1324 = vmin.f32 %v1322, %v1323
        %1325 = vmin.xlane.f32.xlu0 %v1324
        %v1326 = vpop.xlane.xlu0 %1325
        %v1327 = vmin.f32 %v1258, %v1259
        %v1328 = vsel %vm1277, %v1260, inf
        %v1329 = vmin.f32 %v1327, %v1328
        %1330 = vmin.xlane.f32.xlu0 %v1329
        %v1331 = vpop.xlane.xlu0 %1330
        %v1332 = vmin.f32 %v1261, %v1262
        %v1333 = vsel %vm1277, %v1263, inf
        %v1334 = vmin.f32 %v1332, %v1333
        %1335 = vmin.xlane.f32.xlu0 %v1334
        %v1336 = vpop.xlane.xlu0 %1335
        %v1337 = vmin.f32 %v1264, %v1265
        %v1338 = vsel %vm1277, %v1266, inf
        %v1339 = vmin.f32 %v1337, %v1338
        %1340 = vmin.xlane.f32.xlu0 %v1339
        %v1341 = vpop.xlane.xlu0 %1340
        %v1342 = vmin.f32 %v1267, %v1268
        %v1343 = vsel %vm1277, %v1269, inf
        %v1344 = vmin.f32 %v1342, %v1343
        %1345 = vmin.xlane.f32.xlu0 %v1344
        %v1346 = vpop.xlane.xlu0 %1345
        %v1347 = vmin.f32 %v1270, %v1271
        %v1348 = vsel %vm1277, %v1272, inf
        %v1349 = vmin.f32 %v1347, %v1348
        %1350 = vmin.xlane.f32.xlu0 %v1349
        %v1351 = vpop.xlane.xlu0 %1350
        %v1352 = vmin.f32 %v1273, %v1274
        %v1353 = vsel %vm1277, %v1275, inf
        %v1354 = vmin.f32 %v1352, %v1353
        %1355 = vmin.xlane.f32.xlu0 %v1354
        %v1356 = vpop.xlane.xlu0 %1355
        %v1357 = vlaneseq
        %v1358 = vand.u32 %v1357, 127
        %v1359 = vadd.s32 %v1358, 128
        %v1360 = vadd.s32 %v1358, 256
        %vm1361 = vcmp.le.f32.partialorder %v1228, %v1281
        %vm1362 = vcmp.le.f32.partialorder %v1229, %v1281
        %vm1363 = vcmp.le.f32.partialorder %v1230, %v1281
        %vm1364 = vcmp.le.f32.partialorder %v1231, %v1286
        %vm1365 = vcmp.le.f32.partialorder %v1232, %v1286
        %vm1366 = vcmp.le.f32.partialorder %v1233, %v1286
        %vm1367 = vcmp.le.f32.partialorder %v1234, %v1291
        %vm1368 = vcmp.le.f32.partialorder %v1235, %v1291
        %vm1369 = vcmp.le.f32.partialorder %v1236, %v1291
        %vm1370 = vcmp.le.f32.partialorder %v1237, %v1296
        %vm1371 = vcmp.le.f32.partialorder %v1238, %v1296
        %vm1372 = vcmp.le.f32.partialorder %v1239, %v1296
        %vm1373 = vcmp.le.f32.partialorder %v1240, %v1301
        %vm1374 = vcmp.le.f32.partialorder %v1241, %v1301
        %vm1375 = vcmp.le.f32.partialorder %v1242, %v1301
        %vm1376 = vcmp.le.f32.partialorder %v1243, %v1306
        %vm1377 = vcmp.le.f32.partialorder %v1244, %v1306
        %vm1378 = vcmp.le.f32.partialorder %v1245, %v1306
        %vm1379 = vcmp.le.f32.partialorder %v1246, %v1311
        %vm1380 = vcmp.le.f32.partialorder %v1247, %v1311
        %vm1381 = vcmp.le.f32.partialorder %v1248, %v1311
        %vm1382 = vcmp.le.f32.partialorder %v1249, %v1316
        %vm1383 = vcmp.le.f32.partialorder %v1250, %v1316
        %vm1384 = vcmp.le.f32.partialorder %v1251, %v1316
        %vm1385 = vcmp.le.f32.partialorder %v1252, %v1321
        %vm1386 = vcmp.le.f32.partialorder %v1253, %v1321
        %vm1387 = vcmp.le.f32.partialorder %v1254, %v1321
        %vm1388 = vcmp.le.f32.partialorder %v1255, %v1326
        %vm1389 = vcmp.le.f32.partialorder %v1256, %v1326
        %vm1390 = vcmp.le.f32.partialorder %v1257, %v1326
        %vm1391 = vcmp.le.f32.partialorder %v1258, %v1331
        %vm1392 = vcmp.le.f32.partialorder %v1259, %v1331
        %vm1393 = vcmp.le.f32.partialorder %v1260, %v1331
        %vm1394 = vcmp.le.f32.partialorder %v1261, %v1336
        %vm1395 = vcmp.le.f32.partialorder %v1262, %v1336
        %vm1396 = vcmp.le.f32.partialorder %v1263, %v1336
        %vm1397 = vcmp.le.f32.partialorder %v1264, %v1341
        %vm1398 = vcmp.le.f32.partialorder %v1265, %v1341
        %vm1399 = vcmp.le.f32.partialorder %v1266, %v1341
        %vm1400 = vcmp.le.f32.partialorder %v1267, %v1346
        %vm1401 = vcmp.le.f32.partialorder %v1268, %v1346
        %vm1402 = vcmp.le.f32.partialorder %v1269, %v1346
        %vm1403 = vcmp.le.f32.partialorder %v1270, %v1351
        %vm1404 = vcmp.le.f32.partialorder %v1271, %v1351
        %vm1405 = vcmp.le.f32.partialorder %v1272, %v1351
        %vm1406 = vcmp.le.f32.partialorder %v1273, %v1356
        %vm1407 = vcmp.le.f32.partialorder %v1274, %v1356
        %vm1408 = vcmp.le.f32.partialorder %v1275, %v1356
        %v1409 = vsel %vm1361, %v1358, 320
        %v1410 = vsel %vm1362, %v1359, 320
        %v1411 = vsel %vm1363, %v1360, 320
        %v1412 = vsel %vm1364, %v1358, 320
        %v1413 = vsel %vm1365, %v1359, 320
        %v1414 = vsel %vm1366, %v1360, 320
        %v1415 = vsel %vm1367, %v1358, 320
        %v1416 = vsel %vm1368, %v1359, 320
        %v1417 = vsel %vm1369, %v1360, 320
        %v1418 = vsel %vm1370, %v1358, 320
        %v1419 = vsel %vm1371, %v1359, 320
        %v1420 = vsel %vm1372, %v1360, 320
        %v1421 = vsel %vm1373, %v1358, 320
        %v1422 = vsel %vm1374, %v1359, 320
        %v1423 = vsel %vm1375, %v1360, 320
        %v1424 = vsel %vm1376, %v1358, 320
        %v1425 = vsel %vm1377, %v1359, 320
        %v1426 = vsel %vm1378, %v1360, 320
        %v1427 = vsel %vm1379, %v1358, 320
        %v1428 = vsel %vm1380, %v1359, 320
        %v1429 = vsel %vm1381, %v1360, 320
        %v1430 = vsel %vm1382, %v1358, 320
        %v1431 = vsel %vm1383, %v1359, 320
        %v1432 = vsel %vm1384, %v1360, 320
        %v1433 = vsel %vm1385, %v1358, 320
        %v1434 = vsel %vm1386, %v1359, 320
        %v1435 = vsel %vm1387, %v1360, 320
        %v1436 = vsel %vm1388, %v1358, 320
        %v1437 = vsel %vm1389, %v1359, 320
        %v1438 = vsel %vm1390, %v1360, 320
        %v1439 = vsel %vm1391, %v1358, 320
        %v1440 = vsel %vm1392, %v1359, 320
        %v1441 = vsel %vm1393, %v1360, 320
        %v1442 = vsel %vm1394, %v1358, 320
        %v1443 = vsel %vm1395, %v1359, 320
        %v1444 = vsel %vm1396, %v1360, 320
        %v1445 = vsel %vm1397, %v1358, 320
        %v1446 = vsel %vm1398, %v1359, 320
        %v1447 = vsel %vm1399, %v1360, 320
        %v1448 = vsel %vm1400, %v1358, 320
        %v1449 = vsel %vm1401, %v1359, 320
        %v1450 = vsel %vm1402, %v1360, 320
        %v1451 = vsel %vm1403, %v1358, 320
        %v1452 = vsel %vm1404, %v1359, 320
        %v1453 = vsel %vm1405, %v1360, 320
        %v1454 = vsel %vm1406, %v1358, 320
        %v1455 = vsel %vm1407, %v1359, 320
        %v1456 = vsel %vm1408, %v1360, 320
        %vm1457 = vcmp.lt.s32.totalorder %v1409, %v1410
        %v1458 = vsel %vm1457, %v1409, %v1410
        %v1459 = vsel %vm1277, %v1411, 2147483647
        %vm1460 = vcmp.lt.s32.totalorder %v1458, %v1459
        %v1461 = vsel %vm1460, %v1458, %v1459
        %v1462 = vand.u32 %v1461, 65535
        %v1463 = vshra.s32 %v1461, 16
        %v1464 = vcvt.s32.f32 %v1462
        %v1465 = vcvt.s32.f32 %v1463
        %1466 = vmin.xlane.f32.xlu0 %v1465
        %v1467 = vpop.xlane.xlu0 %1466
        %vm1468 = vcmp.eq.f32.partialorder %v1465, %v1467
        %v1469 = vsel %vm1468, %v1464, inf
        %1470 = vmin.xlane.f32.xlu0 %v1469
        %v1471 = vpop.xlane.xlu0 %1470
        %v1472 = vcvt.f32.s32 %v1471
        %v1473 = vcvt.f32.s32 %v1467
        %v1474 = vshll.u32 %v1473, 16
        %v1475 = vadd.s32 %v1474, %v1472
        %vm1476 = vcmp.lt.s32.totalorder %v1412, %v1413
        %v1477 = vsel %vm1476, %v1412, %v1413
        %v1478 = vsel %vm1277, %v1414, 2147483647
        %vm1479 = vcmp.lt.s32.totalorder %v1477, %v1478
        %v1480 = vsel %vm1479, %v1477, %v1478
        %v1481 = vand.u32 %v1480, 65535
        %v1482 = vshra.s32 %v1480, 16
        %v1483 = vcvt.s32.f32 %v1481
        %v1484 = vcvt.s32.f32 %v1482
        %1485 = vmin.xlane.f32.xlu0 %v1484
        %v1486 = vpop.xlane.xlu0 %1485
        %vm1487 = vcmp.eq.f32.partialorder %v1484, %v1486
        %v1488 = vsel %vm1487, %v1483, inf
        %1489 = vmin.xlane.f32.xlu0 %v1488
        %v1490 = vpop.xlane.xlu0 %1489
        %v1491 = vcvt.f32.s32 %v1490
        %v1492 = vcvt.f32.s32 %v1486
        %v1493 = vshll.u32 %v1492, 16
        %v1494 = vadd.s32 %v1493, %v1491
        %vm1495 = vcmp.lt.s32.totalorder %v1415, %v1416
        %v1496 = vsel %vm1495, %v1415, %v1416
        %v1497 = vsel %vm1277, %v1417, 2147483647
        %vm1498 = vcmp.lt.s32.totalorder %v1496, %v1497
        %v1499 = vsel %vm1498, %v1496, %v1497
        %v1500 = vand.u32 %v1499, 65535
        %v1501 = vshra.s32 %v1499, 16
        %v1502 = vcvt.s32.f32 %v1500
        %v1503 = vcvt.s32.f32 %v1501
        %1504 = vmin.xlane.f32.xlu0 %v1503
        %v1505 = vpop.xlane.xlu0 %1504
        %vm1506 = vcmp.eq.f32.partialorder %v1503, %v1505
        %v1507 = vsel %vm1506, %v1502, inf
        %1508 = vmin.xlane.f32.xlu0 %v1507
        %v1509 = vpop.xlane.xlu0 %1508
        %v1510 = vcvt.f32.s32 %v1509
        %v1511 = vcvt.f32.s32 %v1505
        %v1512 = vshll.u32 %v1511, 16
        %v1513 = vadd.s32 %v1512, %v1510
        %vm1514 = vcmp.lt.s32.totalorder %v1418, %v1419
        %v1515 = vsel %vm1514, %v1418, %v1419
        %v1516 = vsel %vm1277, %v1420, 2147483647
        %vm1517 = vcmp.lt.s32.totalorder %v1515, %v1516
        %v1518 = vsel %vm1517, %v1515, %v1516
        %v1519 = vand.u32 %v1518, 65535
        %v1520 = vshra.s32 %v1518, 16
        %v1521 = vcvt.s32.f32 %v1519
        %v1522 = vcvt.s32.f32 %v1520
        %1523 = vmin.xlane.f32.xlu0 %v1522
        %v1524 = vpop.xlane.xlu0 %1523
        %vm1525 = vcmp.eq.f32.partialorder %v1522, %v1524
        %v1526 = vsel %vm1525, %v1521, inf
        %1527 = vmin.xlane.f32.xlu0 %v1526
        %v1528 = vpop.xlane.xlu0 %1527
        %v1529 = vcvt.f32.s32 %v1528
        %v1530 = vcvt.f32.s32 %v1524
        %v1531 = vshll.u32 %v1530, 16
        %v1532 = vadd.s32 %v1531, %v1529
        %vm1533 = vcmp.lt.s32.totalorder %v1421, %v1422
        %v1534 = vsel %vm1533, %v1421, %v1422
        %v1535 = vsel %vm1277, %v1423, 2147483647
        %vm1536 = vcmp.lt.s32.totalorder %v1534, %v1535
        %v1537 = vsel %vm1536, %v1534, %v1535
        %v1538 = vand.u32 %v1537, 65535
        %v1539 = vshra.s32 %v1537, 16
        %v1540 = vcvt.s32.f32 %v1538
        %v1541 = vcvt.s32.f32 %v1539
        %1542 = vmin.xlane.f32.xlu0 %v1541
        %v1543 = vpop.xlane.xlu0 %1542
        %vm1544 = vcmp.eq.f32.partialorder %v1541, %v1543
        %v1545 = vsel %vm1544, %v1540, inf
        %1546 = vmin.xlane.f32.xlu0 %v1545
        %v1547 = vpop.xlane.xlu0 %1546
        %v1548 = vcvt.f32.s32 %v1547
        %v1549 = vcvt.f32.s32 %v1543
        %v1550 = vshll.u32 %v1549, 16
        %v1551 = vadd.s32 %v1550, %v1548
        %vm1552 = vcmp.lt.s32.totalorder %v1424, %v1425
        %v1553 = vsel %vm1552, %v1424, %v1425
        %v1554 = vsel %vm1277, %v1426, 2147483647
        %vm1555 = vcmp.lt.s32.totalorder %v1553, %v1554
        %v1556 = vsel %vm1555, %v1553, %v1554
        %v1557 = vand.u32 %v1556, 65535
        %v1558 = vshra.s32 %v1556, 16
        %v1559 = vcvt.s32.f32 %v1557
        %v1560 = vcvt.s32.f32 %v1558
        %1561 = vmin.xlane.f32.xlu0 %v1560
        %v1562 = vpop.xlane.xlu0 %1561
        %vm1563 = vcmp.eq.f32.partialorder %v1560, %v1562
        %v1564 = vsel %vm1563, %v1559, inf
        %1565 = vmin.xlane.f32.xlu0 %v1564
        %v1566 = vpop.xlane.xlu0 %1565
        %v1567 = vcvt.f32.s32 %v1566
        %v1568 = vcvt.f32.s32 %v1562
        %v1569 = vshll.u32 %v1568, 16
        %v1570 = vadd.s32 %v1569, %v1567
        %vm1571 = vcmp.lt.s32.totalorder %v1427, %v1428
        %v1572 = vsel %vm1571, %v1427, %v1428
        %v1573 = vsel %vm1277, %v1429, 2147483647
        %vm1574 = vcmp.lt.s32.totalorder %v1572, %v1573
        %v1575 = vsel %vm1574, %v1572, %v1573
        %v1576 = vand.u32 %v1575, 65535
        %v1577 = vshra.s32 %v1575, 16
        %v1578 = vcvt.s32.f32 %v1576
        %v1579 = vcvt.s32.f32 %v1577
        %1580 = vmin.xlane.f32.xlu0 %v1579
        %v1581 = vpop.xlane.xlu0 %1580
        %vm1582 = vcmp.eq.f32.partialorder %v1579, %v1581
        %v1583 = vsel %vm1582, %v1578, inf
        %1584 = vmin.xlane.f32.xlu0 %v1583
        %v1585 = vpop.xlane.xlu0 %1584
        %v1586 = vcvt.f32.s32 %v1585
        %v1587 = vcvt.f32.s32 %v1581
        %v1588 = vshll.u32 %v1587, 16
        %v1589 = vadd.s32 %v1588, %v1586
        %vm1590 = vcmp.lt.s32.totalorder %v1430, %v1431
        %v1591 = vsel %vm1590, %v1430, %v1431
        %v1592 = vsel %vm1277, %v1432, 2147483647
        %vm1593 = vcmp.lt.s32.totalorder %v1591, %v1592
        %v1594 = vsel %vm1593, %v1591, %v1592
        %v1595 = vand.u32 %v1594, 65535
        %v1596 = vshra.s32 %v1594, 16
        %v1597 = vcvt.s32.f32 %v1595
        %v1598 = vcvt.s32.f32 %v1596
        %1599 = vmin.xlane.f32.xlu0 %v1598
        %v1600 = vpop.xlane.xlu0 %1599
        %vm1601 = vcmp.eq.f32.partialorder %v1598, %v1600
        %v1602 = vsel %vm1601, %v1597, inf
        %1603 = vmin.xlane.f32.xlu0 %v1602
        %v1604 = vpop.xlane.xlu0 %1603
        %v1605 = vcvt.f32.s32 %v1604
        %v1606 = vcvt.f32.s32 %v1600
        %v1607 = vshll.u32 %v1606, 16
        %v1608 = vadd.s32 %v1607, %v1605
        %vm1609 = vcmp.lt.s32.totalorder %v1433, %v1434
        %v1610 = vsel %vm1609, %v1433, %v1434
        %v1611 = vsel %vm1277, %v1435, 2147483647
        %vm1612 = vcmp.lt.s32.totalorder %v1610, %v1611
        %v1613 = vsel %vm1612, %v1610, %v1611
        %v1614 = vand.u32 %v1613, 65535
        %v1615 = vshra.s32 %v1613, 16
        %v1616 = vcvt.s32.f32 %v1614
        %v1617 = vcvt.s32.f32 %v1615
        %1618 = vmin.xlane.f32.xlu0 %v1617
        %v1619 = vpop.xlane.xlu0 %1618
        %vm1620 = vcmp.eq.f32.partialorder %v1617, %v1619
        %v1621 = vsel %vm1620, %v1616, inf
        %1622 = vmin.xlane.f32.xlu0 %v1621
        %v1623 = vpop.xlane.xlu0 %1622
        %v1624 = vcvt.f32.s32 %v1623
        %v1625 = vcvt.f32.s32 %v1619
        %v1626 = vshll.u32 %v1625, 16
        %v1627 = vadd.s32 %v1626, %v1624
        %vm1628 = vcmp.lt.s32.totalorder %v1436, %v1437
        %v1629 = vsel %vm1628, %v1436, %v1437
        %v1630 = vsel %vm1277, %v1438, 2147483647
        %vm1631 = vcmp.lt.s32.totalorder %v1629, %v1630
        %v1632 = vsel %vm1631, %v1629, %v1630
        %v1633 = vand.u32 %v1632, 65535
        %v1634 = vshra.s32 %v1632, 16
        %v1635 = vcvt.s32.f32 %v1633
        %v1636 = vcvt.s32.f32 %v1634
        %1637 = vmin.xlane.f32.xlu0 %v1636
        %v1638 = vpop.xlane.xlu0 %1637
        %vm1639 = vcmp.eq.f32.partialorder %v1636, %v1638
        %v1640 = vsel %vm1639, %v1635, inf
        %1641 = vmin.xlane.f32.xlu0 %v1640
        %v1642 = vpop.xlane.xlu0 %1641
        %v1643 = vcvt.f32.s32 %v1642
        %v1644 = vcvt.f32.s32 %v1638
        %v1645 = vshll.u32 %v1644, 16
        %v1646 = vadd.s32 %v1645, %v1643
        %vm1647 = vcmp.lt.s32.totalorder %v1439, %v1440
        %v1648 = vsel %vm1647, %v1439, %v1440
        %v1649 = vsel %vm1277, %v1441, 2147483647
        %vm1650 = vcmp.lt.s32.totalorder %v1648, %v1649
        %v1651 = vsel %vm1650, %v1648, %v1649
        %v1652 = vand.u32 %v1651, 65535
        %v1653 = vshra.s32 %v1651, 16
        %v1654 = vcvt.s32.f32 %v1652
        %v1655 = vcvt.s32.f32 %v1653
        %1656 = vmin.xlane.f32.xlu0 %v1655
        %v1657 = vpop.xlane.xlu0 %1656
        %vm1658 = vcmp.eq.f32.partialorder %v1655, %v1657
        %v1659 = vsel %vm1658, %v1654, inf
        %1660 = vmin.xlane.f32.xlu0 %v1659
        %v1661 = vpop.xlane.xlu0 %1660
        %v1662 = vcvt.f32.s32 %v1661
        %v1663 = vcvt.f32.s32 %v1657
        %v1664 = vshll.u32 %v1663, 16
        %v1665 = vadd.s32 %v1664, %v1662
        %vm1666 = vcmp.lt.s32.totalorder %v1442, %v1443
        %v1667 = vsel %vm1666, %v1442, %v1443
        %v1668 = vsel %vm1277, %v1444, 2147483647
        %vm1669 = vcmp.lt.s32.totalorder %v1667, %v1668
        %v1670 = vsel %vm1669, %v1667, %v1668
        %v1671 = vand.u32 %v1670, 65535
        %v1672 = vshra.s32 %v1670, 16
        %v1673 = vcvt.s32.f32 %v1671
        %v1674 = vcvt.s32.f32 %v1672
        %1675 = vmin.xlane.f32.xlu0 %v1674
        %v1676 = vpop.xlane.xlu0 %1675
        %vm1677 = vcmp.eq.f32.partialorder %v1674, %v1676
        %v1678 = vsel %vm1677, %v1673, inf
        %1679 = vmin.xlane.f32.xlu0 %v1678
        %v1680 = vpop.xlane.xlu0 %1679
        %v1681 = vcvt.f32.s32 %v1680
        %v1682 = vcvt.f32.s32 %v1676
        %v1683 = vshll.u32 %v1682, 16
        %v1684 = vadd.s32 %v1683, %v1681
        %vm1685 = vcmp.lt.s32.totalorder %v1445, %v1446
        %v1686 = vsel %vm1685, %v1445, %v1446
        %v1687 = vsel %vm1277, %v1447, 2147483647
        %vm1688 = vcmp.lt.s32.totalorder %v1686, %v1687
        %v1689 = vsel %vm1688, %v1686, %v1687
        %v1690 = vand.u32 %v1689, 65535
        %v1691 = vshra.s32 %v1689, 16
        %v1692 = vcvt.s32.f32 %v1690
        %v1693 = vcvt.s32.f32 %v1691
        %1694 = vmin.xlane.f32.xlu0 %v1693
        %v1695 = vpop.xlane.xlu0 %1694
        %vm1696 = vcmp.eq.f32.partialorder %v1693, %v1695
        %v1697 = vsel %vm1696, %v1692, inf
        %1698 = vmin.xlane.f32.xlu0 %v1697
        %v1699 = vpop.xlane.xlu0 %1698
        %v1700 = vcvt.f32.s32 %v1699
        %v1701 = vcvt.f32.s32 %v1695
        %v1702 = vshll.u32 %v1701, 16
        %v1703 = vadd.s32 %v1702, %v1700
        %vm1704 = vcmp.lt.s32.totalorder %v1448, %v1449
        %v1705 = vsel %vm1704, %v1448, %v1449
        %v1706 = vsel %vm1277, %v1450, 2147483647
        %vm1707 = vcmp.lt.s32.totalorder %v1705, %v1706
        %v1708 = vsel %vm1707, %v1705, %v1706
        %v1709 = vand.u32 %v1708, 65535
        %v1710 = vshra.s32 %v1708, 16
        %v1711 = vcvt.s32.f32 %v1709
        %v1712 = vcvt.s32.f32 %v1710
        %1713 = vmin.xlane.f32.xlu0 %v1712
        %v1714 = vpop.xlane.xlu0 %1713
        %vm1715 = vcmp.eq.f32.partialorder %v1712, %v1714
        %v1716 = vsel %vm1715, %v1711, inf
        %1717 = vmin.xlane.f32.xlu0 %v1716
        %v1718 = vpop.xlane.xlu0 %1717
        %v1719 = vcvt.f32.s32 %v1718
        %v1720 = vcvt.f32.s32 %v1714
        %v1721 = vshll.u32 %v1720, 16
        %v1722 = vadd.s32 %v1721, %v1719
        %vm1723 = vcmp.lt.s32.totalorder %v1451, %v1452
        %v1724 = vsel %vm1723, %v1451, %v1452
        %v1725 = vsel %vm1277, %v1453, 2147483647
        %vm1726 = vcmp.lt.s32.totalorder %v1724, %v1725
        %v1727 = vsel %vm1726, %v1724, %v1725
        %v1728 = vand.u32 %v1727, 65535
        %v1729 = vshra.s32 %v1727, 16
        %v1730 = vcvt.s32.f32 %v1728
        %v1731 = vcvt.s32.f32 %v1729
        %1732 = vmin.xlane.f32.xlu0 %v1731
        %v1733 = vpop.xlane.xlu0 %1732
        %vm1734 = vcmp.eq.f32.partialorder %v1731, %v1733
        %v1735 = vsel %vm1734, %v1730, inf
        %1736 = vmin.xlane.f32.xlu0 %v1735
        %v1737 = vpop.xlane.xlu0 %1736
        %v1738 = vcvt.f32.s32 %v1737
        %v1739 = vcvt.f32.s32 %v1733
        %v1740 = vshll.u32 %v1739, 16
        %v1741 = vadd.s32 %v1740, %v1738
        %vm1742 = vcmp.lt.s32.totalorder %v1454, %v1455
        %v1743 = vsel %vm1742, %v1454, %v1455
        %v1744 = vsel %vm1277, %v1456, 2147483647
        %vm1745 = vcmp.lt.s32.totalorder %v1743, %v1744
        %v1746 = vsel %vm1745, %v1743, %v1744
        %v1747 = vand.u32 %v1746, 65535
        %v1748 = vshra.s32 %v1746, 16
        %v1749 = vcvt.s32.f32 %v1747
        %v1750 = vcvt.s32.f32 %v1748
        %1751 = vmin.xlane.f32.xlu0 %v1750
        %v1752 = vpop.xlane.xlu0 %1751
        %vm1753 = vcmp.eq.f32.partialorder %v1750, %v1752
        %v1754 = vsel %vm1753, %v1749, inf
        %1755 = vmin.xlane.f32.xlu0 %v1754
        %v1756 = vpop.xlane.xlu0 %1755
        %v1757 = vcvt.f32.s32 %v1756
        %v1758 = vcvt.f32.s32 %v1752
        %v1759 = vshll.u32 %v1758, 16
        %v1760 = vadd.s32 %v1759, %v1757
        %vm1761 = vcmp.eq.s32.totalorder %v1358, %v1475
        %vm1762 = vcmp.eq.s32.totalorder %v1359, %v1475
        %vm1763 = vcmp.eq.s32.totalorder %v1360, %v1475
        %vm1764 = vcmp.eq.s32.totalorder %v1358, %v1494
        %vm1765 = vcmp.eq.s32.totalorder %v1359, %v1494
        %vm1766 = vcmp.eq.s32.totalorder %v1360, %v1494
        %vm1767 = vcmp.eq.s32.totalorder %v1358, %v1513
        %vm1768 = vcmp.eq.s32.totalorder %v1359, %v1513
        %vm1769 = vcmp.eq.s32.totalorder %v1360, %v1513
        %vm1770 = vcmp.eq.s32.totalorder %v1358, %v1532
        %vm1771 = vcmp.eq.s32.totalorder %v1359, %v1532
        %vm1772 = vcmp.eq.s32.totalorder %v1360, %v1532
        %vm1773 = vcmp.eq.s32.totalorder %v1358, %v1551
        %vm1774 = vcmp.eq.s32.totalorder %v1359, %v1551
        %vm1775 = vcmp.eq.s32.totalorder %v1360, %v1551
        %vm1776 = vcmp.eq.s32.totalorder %v1358, %v1570
        %vm1777 = vcmp.eq.s32.totalorder %v1359, %v1570
        %vm1778 = vcmp.eq.s32.totalorder %v1360, %v1570
        %vm1779 = vcmp.eq.s32.totalorder %v1358, %v1589
        %vm1780 = vcmp.eq.s32.totalorder %v1359, %v1589
        %vm1781 = vcmp.eq.s32.totalorder %v1360, %v1589
        %vm1782 = vcmp.eq.s32.totalorder %v1358, %v1608
        %vm1783 = vcmp.eq.s32.totalorder %v1359, %v1608
        %vm1784 = vcmp.eq.s32.totalorder %v1360, %v1608
        %vm1785 = vcmp.eq.s32.totalorder %v1358, %v1627
        %vm1786 = vcmp.eq.s32.totalorder %v1359, %v1627
        %vm1787 = vcmp.eq.s32.totalorder %v1360, %v1627
        %vm1788 = vcmp.eq.s32.totalorder %v1358, %v1646
        %vm1789 = vcmp.eq.s32.totalorder %v1359, %v1646
        %vm1790 = vcmp.eq.s32.totalorder %v1360, %v1646
        %vm1791 = vcmp.eq.s32.totalorder %v1358, %v1665
        %vm1792 = vcmp.eq.s32.totalorder %v1359, %v1665
        %vm1793 = vcmp.eq.s32.totalorder %v1360, %v1665
        %vm1794 = vcmp.eq.s32.totalorder %v1358, %v1684
        %vm1795 = vcmp.eq.s32.totalorder %v1359, %v1684
        %vm1796 = vcmp.eq.s32.totalorder %v1360, %v1684
        %vm1797 = vcmp.eq.s32.totalorder %v1358, %v1703
        %vm1798 = vcmp.eq.s32.totalorder %v1359, %v1703
        %vm1799 = vcmp.eq.s32.totalorder %v1360, %v1703
        %vm1800 = vcmp.eq.s32.totalorder %v1358, %v1722
        %vm1801 = vcmp.eq.s32.totalorder %v1359, %v1722
        %vm1802 = vcmp.eq.s32.totalorder %v1360, %v1722
        %vm1803 = vcmp.eq.s32.totalorder %v1358, %v1741
        %vm1804 = vcmp.eq.s32.totalorder %v1359, %v1741
        %vm1805 = vcmp.eq.s32.totalorder %v1360, %v1741
        %vm1806 = vcmp.eq.s32.totalorder %v1358, %v1760
        %vm1807 = vcmp.eq.s32.totalorder %v1359, %v1760
        %vm1808 = vcmp.eq.s32.totalorder %v1360, %v1760
        %v1809 = vsel %vm1761, 1, 0
        %v1810 = vsel %vm1762, 1, 0
        %v1811 = vsel %vm1763, 1, 0
        %v1812 = vsel %vm1764, 1, 0
        %v1813 = vsel %vm1765, 1, 0
        %v1814 = vsel %vm1766, 1, 0
        %v1815 = vsel %vm1767, 1, 0
        %v1816 = vsel %vm1768, 1, 0
        %v1817 = vsel %vm1769, 1, 0
        %v1818 = vsel %vm1770, 1, 0
        %v1819 = vsel %vm1771, 1, 0
        %v1820 = vsel %vm1772, 1, 0
        %v1821 = vsel %vm1773, 1, 0
        %v1822 = vsel %vm1774, 1, 0
        %v1823 = vsel %vm1775, 1, 0
        %v1824 = vsel %vm1776, 1, 0
        %v1825 = vsel %vm1777, 1, 0
        %v1826 = vsel %vm1778, 1, 0
        %v1827 = vsel %vm1779, 1, 0
        %v1828 = vsel %vm1780, 1, 0
        %v1829 = vsel %vm1781, 1, 0
        %v1830 = vsel %vm1782, 1, 0
        %v1831 = vsel %vm1783, 1, 0
        %v1832 = vsel %vm1784, 1, 0
        %v1833 = vsel %vm1785, 1, 0
        %v1834 = vsel %vm1786, 1, 0
        %v1835 = vsel %vm1787, 1, 0
        %v1836 = vsel %vm1788, 1, 0
        %v1837 = vsel %vm1789, 1, 0
        %v1838 = vsel %vm1790, 1, 0
        %v1839 = vsel %vm1791, 1, 0
        %v1840 = vsel %vm1792, 1, 0
        %v1841 = vsel %vm1793, 1, 0
        %v1842 = vsel %vm1794, 1, 0
        %v1843 = vsel %vm1795, 1, 0
        %v1844 = vsel %vm1796, 1, 0
        %v1845 = vsel %vm1797, 1, 0
        %v1846 = vsel %vm1798, 1, 0
        %v1847 = vsel %vm1799, 1, 0
        %v1848 = vsel %vm1800, 1, 0
        %v1849 = vsel %vm1801, 1, 0
        %v1850 = vsel %vm1802, 1, 0
        %v1851 = vsel %vm1803, 1, 0
        %v1852 = vsel %vm1804, 1, 0
        %v1853 = vsel %vm1805, 1, 0
        %v1854 = vsel %vm1806, 1, 0
        %v1855 = vsel %vm1807, 1, 0
        %v1856 = vsel %vm1808, 1, 0
        %v1857 = vcvt.s32.f32 %v1809
        %v1858 = vcvt.s32.f32 %v1810
        %v1859 = vcvt.s32.f32 %v1811
        %v1860 = vcvt.s32.f32 %v1812
        %v1861 = vcvt.s32.f32 %v1813
        %v1862 = vcvt.s32.f32 %v1814
        %v1863 = vcvt.s32.f32 %v1815
        %v1864 = vcvt.s32.f32 %v1816
        %v1865 = vcvt.s32.f32 %v1817
        %v1866 = vcvt.s32.f32 %v1818
        %v1867 = vcvt.s32.f32 %v1819
        %v1868 = vcvt.s32.f32 %v1820
        %v1869 = vcvt.s32.f32 %v1821
        %v1870 = vcvt.s32.f32 %v1822
        %v1871 = vcvt.s32.f32 %v1823
        %v1872 = vcvt.s32.f32 %v1824
        %v1873 = vcvt.s32.f32 %v1825
        %v1874 = vcvt.s32.f32 %v1826
        %v1875 = vcvt.s32.f32 %v1827
        %v1876 = vcvt.s32.f32 %v1828
        %v1877 = vcvt.s32.f32 %v1829
        %v1878 = vcvt.s32.f32 %v1830
        %v1879 = vcvt.s32.f32 %v1831
        %v1880 = vcvt.s32.f32 %v1832
        %v1881 = vcvt.s32.f32 %v1833
        %v1882 = vcvt.s32.f32 %v1834
        %v1883 = vcvt.s32.f32 %v1835
        %v1884 = vcvt.s32.f32 %v1836
        %v1885 = vcvt.s32.f32 %v1837
        %v1886 = vcvt.s32.f32 %v1838
        %v1887 = vcvt.s32.f32 %v1839
        %v1888 = vcvt.s32.f32 %v1840
        %v1889 = vcvt.s32.f32 %v1841
        %v1890 = vcvt.s32.f32 %v1842
        %v1891 = vcvt.s32.f32 %v1843
        %v1892 = vcvt.s32.f32 %v1844
        %v1893 = vcvt.s32.f32 %v1845
        %v1894 = vcvt.s32.f32 %v1846
        %v1895 = vcvt.s32.f32 %v1847
        %v1896 = vcvt.s32.f32 %v1848
        %v1897 = vcvt.s32.f32 %v1849
        %v1898 = vcvt.s32.f32 %v1850
        %v1899 = vcvt.s32.f32 %v1851
        %v1900 = vcvt.s32.f32 %v1852
        %v1901 = vcvt.s32.f32 %v1853
        %v1902 = vcvt.s32.f32 %v1854
        %v1903 = vcvt.s32.f32 %v1855
        %v1904 = vcvt.s32.f32 %v1856
        %v1905 = vld [vmem:[%s5] sm:$0xff]
        %v1906 = vld [vmem:[%s5 + $0x8] sm:$0xff]
        %v1907 = vld [vmem:[%s5 + $0x10] sm:$0xff]
        %v1908 = vld [vmem:[%s5 + $0x18] sm:$0xff]
        %v1909 = vld [vmem:[%s5 + $0x20] sm:$0xff]
        %v1910 = vld [vmem:[%s5 + $0x28] sm:$0xff]
        %v1911 = vld [vmem:[%s5 + $0x30] sm:$0xff]
        %v1912 = vld [vmem:[%s5 + $0x38] sm:$0xff]
        %v1913 = vld [vmem:[%s5 + $0x40] sm:$0xff]
        %v1914 = vld [vmem:[%s5 + $0x48] sm:$0xff]
        %v1915 = vld [vmem:[%s5 + $0x50] sm:$0xff]
        %v1916 = vld [vmem:[%s5 + $0x58] sm:$0xff]
        %v1917 = vld [vmem:[%s5 + $0x60] sm:$0xff]
        %v1918 = vld [vmem:[%s5 + $0x68] sm:$0xff]
        %v1919 = vld [vmem:[%s5 + $0x70] sm:$0xff]
        %v1920 = vld [vmem:[%s5 + $0x78] sm:$0xff]
        %v1921 = vld [vmem:[%s5 + $0x80] sm:$0xff]
        %v1922 = vld [vmem:[%s5 + $0x88] sm:$0xff]
        %v1923 = vld [vmem:[%s5 + $0x90] sm:$0xff]
        %v1924 = vld [vmem:[%s5 + $0x98] sm:$0xff]
        %v1925 = vld [vmem:[%s5 + $0xa0] sm:$0xff]
        %v1926 = vld [vmem:[%s5 + $0xa8] sm:$0xff]
        %v1927 = vld [vmem:[%s5 + $0xb0] sm:$0xff]
        %v1928 = vld [vmem:[%s5 + $0xb8] sm:$0xff]
        %v1929 = vld [vmem:[%s5 + $0xc0] sm:$0xff]
        %v1930 = vld [vmem:[%s5 + $0xc8] sm:$0xff]
        %v1931 = vld [vmem:[%s5 + $0xd0] sm:$0xff]
        %v1932 = vld [vmem:[%s5 + $0xd8] sm:$0xff]
        %v1933 = vld [vmem:[%s5 + $0xe0] sm:$0xff]
        %v1934 = vld [vmem:[%s5 + $0xe8] sm:$0xff]
        %v1935 = vld [vmem:[%s5 + $0xf0] sm:$0xff]
        %v1936 = vld [vmem:[%s5 + $0xf8] sm:$0xff]
        %v1937 = vld [vmem:[%s5 + $0x100] sm:$0xff]
        %v1938 = vld [vmem:[%s5 + $0x108] sm:$0xff]
        %v1939 = vld [vmem:[%s5 + $0x110] sm:$0xff]
        %v1940 = vld [vmem:[%s5 + $0x118] sm:$0xff]
        %v1941 = vld [vmem:[%s5 + $0x120] sm:$0xff]
        %v1942 = vld [vmem:[%s5 + $0x128] sm:$0xff]
        %v1943 = vld [vmem:[%s5 + $0x130] sm:$0xff]
        %v1944 = vld [vmem:[%s5 + $0x138] sm:$0xff]
        %v1946 = vsel %vm1277, %v1859, 0
        %v1949 = vsel %vm1277, %v1862, 0
        %v1952 = vsel %vm1277, %v1865, 0
        %v1955 = vsel %vm1277, %v1868, 0
        %v1958 = vsel %vm1277, %v1871, 0
        %v1961 = vsel %vm1277, %v1874, 0
        %v1964 = vsel %vm1277, %v1877, 0
        %v1967 = vsel %vm1277, %v1880, 0
        %v1970 = vsel %vm1277, %v1883, 0
        %v1973 = vsel %vm1277, %v1886, 0
        %v1976 = vsel %vm1277, %v1889, 0
        %v1979 = vsel %vm1277, %v1892, 0
        %v1982 = vsel %vm1277, %v1895, 0
        %v1985 = vsel %vm1277, %v1898, 0
        %v1988 = vsel %vm1277, %v1901, 0
        %v1991 = vsel %vm1277, %v1904, 0
        %1993 = vmatprep.subr.mxu0 0.0
        %1994 = vmatpush1.msra.mxu0 %v1905
        %1995 = vmatprep.subr.mxu0 0.0
        %1996 = vmatpush1.msra.mxu0 %v1906
        %1997 = vmatprep.subr.mxu0 0.0
        %1998 = vmatpush1.msra.mxu0 %v1907
        %1999 = vmatprep.subr.mxu0 0.0
        %2000 = vmatpush1.msra.mxu0 %v1908
        %2001 = vmatprep.subr.mxu0 0.0
        %2002 = vmatpush1.msra.mxu0 %v1909
        %2003 = vmatprep.subr.mxu0 0.0
        %2004 = vmatpush1.msra.mxu0 %v1910
        %2005 = vmatprep.subr.mxu0 0.0
        %2006 = vmatpush1.msra.mxu0 %v1911
        %2007 = vmatprep.subr.mxu0 0.0
        %2008 = vmatpush1.msra.mxu0 %v1912
        %2009 = vmatprep.subr.mxu0 0.0
        %2010 = vmatpush1.msra.mxu0 %v1913
        %2011 = vmatprep.subr.mxu0 0.0
        %2012 = vmatpush1.msra.mxu0 %v1914
        %2013 = vmatprep.subr.mxu0 0.0
        %2014 = vmatpush1.msra.mxu0 %v1915
        %2015 = vmatprep.subr.mxu0 0.0
        %2016 = vmatpush1.msra.mxu0 %v1916
        %2017 = vmatprep.subr.mxu0 0.0
        %2018 = vmatpush1.msra.mxu0 %v1917
        %2019 = vmatprep.subr.mxu0 0.0
        %2020 = vmatpush1.msra.mxu0 %v1918
        %2021 = vmatprep.subr.mxu0 0.0
        %2022 = vmatpush1.msra.mxu0 %v1919
        %2023 = vmatprep.subr.mxu0 0.0
        %2024 = vmatpush1.msra.mxu0 %v1920
        %2025 = vmatprep.subr.mxu0 0.0
        %2026 = vmatpush1.msra.mxu0 %v1921
        %2027 = vmatprep.subr.mxu0 0.0
        %2028 = vmatpush1.msra.mxu0 %v1922
        %2029 = vmatprep.subr.mxu0 0.0
        %2030 = vmatpush1.msra.mxu0 %v1923
        %2031 = vmatprep.subr.mxu0 0.0
        %2032 = vmatpush1.msra.mxu0 %v1924
        %2033 = vmatprep.subr.mxu0 0.0
        %2034 = vmatpush1.msra.mxu0 %v1925
        %2035 = vmatprep.subr.mxu0 0.0
        %2036 = vmatpush1.msra.mxu0 %v1926
        %2037 = vmatprep.subr.mxu0 0.0
        %2038 = vmatpush1.msra.mxu0 %v1927
        %2039 = vmatprep.subr.mxu0 0.0
        %2040 = vmatpush1.msra.mxu0 %v1928
        %2041 = vmatprep.subr.mxu0 0.0
        %2042 = vmatpush1.msra.mxu0 %v1929
        %2043 = vmatprep.subr.mxu0 0.0
        %2044 = vmatpush1.msra.mxu0 %v1930
        %2045 = vmatprep.subr.mxu0 0.0
        %2046 = vmatpush1.msra.mxu0 %v1931
        %2047 = vmatprep.subr.mxu0 0.0
        %2048 = vmatpush1.msra.mxu0 %v1932
        %2049 = vmatprep.subr.mxu0 0.0
        %2050 = vmatpush1.msra.mxu0 %v1933
        %2051 = vmatprep.subr.mxu0 0.0
        %2052 = vmatpush1.msra.mxu0 %v1934
        %2053 = vmatprep.subr.mxu0 0.0
        %2054 = vmatpush1.msra.mxu0 %v1935
        %2055 = vmatprep.subr.mxu0 0.0
        %2056 = vmatpush1.msra.mxu0 %v1936
        %2057 = vmatprep.mubr.f32.mxu0 %v1858
        %2058 = vmatmul.mubr.f32.gmra.mrb[0].mxu0 %v1857
        %v2059 = vpop.f32.mrb[0].mxu0
        %v2060 = vadd.f32 0.0, %v2059
        %v2061 = vpop.f32.mrb[0].mxu0
        %2062 = vmatprep.mubr.f32.mxu0 %v1861
        %2063 = vmatmul.mubr.f32.gmra.mrb[0].mxu0 %v1860
        %v2064 = vpop.f32.mrb[0].mxu0
        %v2065 = vadd.f32 0.0, %v2064
        %v2066 = vpop.f32.mrb[0].mxu0
        %2067 = vmatprep.mubr.f32.mxu0 %v1864
        %2068 = vmatmul.mubr.f32.gmra.mrb[0].mxu0 %v1863
        %v2069 = vpop.f32.mrb[0].mxu0
        %v2070 = vadd.f32 0.0, %v2069
        %v2071 = vpop.f32.mrb[0].mxu0
        %2072 = vmatprep.mubr.f32.mxu0 %v1867
        %2073 = vmatmul.mubr.f32.gmra.mrb[0].mxu0 %v1866
        %v2074 = vpop.f32.mrb[0].mxu0
        %v2075 = vadd.f32 0.0, %v2074
        %v2076 = vpop.f32.mrb[0].mxu0
        %2077 = vmatprep.mubr.f32.mxu0 %v1870
        %2078 = vmatmul.mubr.f32.gmra.mrb[0].mxu0 %v1869
        %v2079 = vpop.f32.mrb[0].mxu0
        %v2080 = vadd.f32 0.0, %v2079
        %v2081 = vpop.f32.mrb[0].mxu0
        %2082 = vmatprep.mubr.f32.mxu0 %v1873
        %2083 = vmatmul.mubr.f32.gmra.mrb[0].mxu0 %v1872
        %v2084 = vpop.f32.mrb[0].mxu0
        %v2085 = vadd.f32 0.0, %v2084
        %v2086 = vpop.f32.mrb[0].mxu0
        %2087 = vmatprep.mubr.f32.mxu0 %v1876
        %2088 = vmatmul.mubr.f32.gmra.mrb[0].mxu0 %v1875
        %v2089 = vpop.f32.mrb[0].mxu0
        %v2090 = vadd.f32 0.0, %v2089
        %v2091 = vpop.f32.mrb[0].mxu0
        %2092 = vmatprep.mubr.f32.mxu0 %v1879
        %2093 = vmatmul.mubr.f32.gmra.mrb[0].mxu0 %v1878
        %v2094 = vpop.f32.mrb[0].mxu0
        %v2095 = vadd.f32 0.0, %v2094
        %v2096 = vpop.f32.mrb[0].mxu0
        %2097 = vmatprep.mubr.f32.mxu0 %v1882
        %2098 = vmatmul.mubr.f32.gmra.mrb[0].mxu0 %v1881
        %v2099 = vpop.f32.mrb[0].mxu0
        %v2100 = vadd.f32 0.0, %v2099
        %v2101 = vpop.f32.mrb[0].mxu0
        %2102 = vmatprep.mubr.f32.mxu0 %v1885
        %2103 = vmatmul.mubr.f32.gmra.mrb[0].mxu0 %v1884
        %v2104 = vpop.f32.mrb[0].mxu0
        %v2105 = vadd.f32 0.0, %v2104
        %v2106 = vpop.f32.mrb[0].mxu0
        %2107 = vmatprep.mubr.f32.mxu0 %v1888
        %2108 = vmatmul.mubr.f32.gmra.mrb[0].mxu0 %v1887
        %v2109 = vpop.f32.mrb[0].mxu0
        %v2110 = vadd.f32 0.0, %v2109
        %v2111 = vpop.f32.mrb[0].mxu0
        %2112 = vmatprep.mubr.f32.mxu0 %v1891
        %2113 = vmatmul.mubr.f32.gmra.mrb[0].mxu0 %v1890
        %v2114 = vpop.f32.mrb[0].mxu0
        %v2115 = vadd.f32 0.0, %v2114
        %v2116 = vpop.f32.mrb[0].mxu0
        %2117 = vmatprep.mubr.f32.mxu0 %v1894
        %2118 = vmatmul.mubr.f32.gmra.mrb[0].mxu0 %v1893
        %v2119 = vpop.f32.mrb[0].mxu0
        %v2120 = vadd.f32 0.0, %v2119
        %v2121 = vpop.f32.mrb[0].mxu0
        %2122 = vmatprep.mubr.f32.mxu0 %v1897
        %2123 = vmatmul.mubr.f32.gmra.mrb[0].mxu0 %v1896
        %v2124 = vpop.f32.mrb[0].mxu0
        %v2125 = vadd.f32 0.0, %v2124
        %v2126 = vpop.f32.mrb[0].mxu0
        %2127 = vmatprep.mubr.f32.mxu0 %v1900
        %2128 = vmatmul.mubr.f32.gmra.mrb[0].mxu0 %v1899
        %v2129 = vpop.f32.mrb[0].mxu0
        %v2130 = vadd.f32 0.0, %v2129
        %v2131 = vpop.f32.mrb[0].mxu0
        %2132 = vmatprep.mubr.f32.mxu0 %v1903
        %2133 = vmatmul.mubr.f32.gmra.mrb[0].mxu0 %v1902
        %v2134 = vpop.f32.mrb[0].mxu0
        %v2135 = vadd.f32 0.0, %v2134
        %v2136 = vpop.f32.mrb[0].mxu0
        %2137 = vdwg.mxu0
        %2138 = vmatprep.subr.mxu0 0.0
        %2139 = vmatpush1.msra.mxu0 %v1937
        %2140 = vmatprep.subr.mxu0 0.0
        %2141 = vmatpush1.msra.mxu0 %v1938
        %2142 = vmatprep.subr.mxu0 0.0
        %2143 = vmatpush1.msra.mxu0 %v1939
        %2144 = vmatprep.subr.mxu0 0.0
        %2145 = vmatpush1.msra.mxu0 %v1940
        %2146 = vmatprep.subr.mxu0 0.0
        %2147 = vmatpush1.msra.mxu0 %v1941
        %2148 = vmatprep.subr.mxu0 0.0
        %2149 = vmatpush1.msra.mxu0 %v1942
        %2150 = vmatprep.subr.mxu0 0.0
        %2151 = vmatpush1.msra.mxu0 %v1943
        %2152 = vmatprep.subr.mxu0 0.0
        %2153 = vmatpush1.msra.mxu0 %v1944
        %2154 = vmatprep.subr.mxu0 0.0
        %2155 = vmatpush1.msra.mxu0 0.0
        %2156 = vmatprep.subr.mxu0 0.0
        %2157 = vmatpush1.msra.mxu0 0.0
        %2158 = vmatprep.subr.mxu0 0.0
        %2159 = vmatpush1.msra.mxu0 0.0
        %2160 = vmatprep.subr.mxu0 0.0
        %2161 = vmatpush1.msra.mxu0 0.0
        %2162 = vmatprep.subr.mxu0 0.0
        %2163 = vmatpush1.msra.mxu0 0.0
        %2164 = vmatprep.subr.mxu0 0.0
        %2165 = vmatpush1.msra.mxu0 0.0
        %2166 = vmatprep.subr.mxu0 0.0
        %2167 = vmatpush1.msra.mxu0 0.0
        %2168 = vmatprep.subr.mxu0 0.0
        %2169 = vmatpush1.msra.mxu0 0.0
        %2170 = vmatprep.subr.mxu0 0.0
        %2171 = vmatpush1.msra.mxu0 0.0
        %2172 = vmatprep.subr.mxu0 0.0
        %2173 = vmatpush1.msra.mxu0 0.0
        %2174 = vmatprep.subr.mxu0 0.0
        %2175 = vmatpush1.msra.mxu0 0.0
        %2176 = vmatprep.subr.mxu0 0.0
        %2177 = vmatpush1.msra.mxu0 0.0
        %2178 = vmatprep.subr.mxu0 0.0
        %2179 = vmatpush1.msra.mxu0 0.0
        %2180 = vmatprep.subr.mxu0 0.0
        %2181 = vmatpush1.msra.mxu0 0.0
        %2182 = vmatprep.subr.mxu0 0.0
        %2183 = vmatpush1.msra.mxu0 0.0
        %2184 = vmatprep.subr.mxu0 0.0
        %2185 = vmatpush1.msra.mxu0 0.0
        %2186 = vmatprep.subr.mxu0 0.0
        %2187 = vmatpush1.msra.mxu0 0.0
        %2188 = vmatprep.subr.mxu0 0.0
        %2189 = vmatpush1.msra.mxu0 0.0
        %2190 = vmatprep.subr.mxu0 0.0
        %2191 = vmatpush1.msra.mxu0 0.0
        %2192 = vmatprep.subr.mxu0 0.0
        %2193 = vmatpush1.msra.mxu0 0.0
        %2194 = vmatprep.subr.mxu0 0.0
        %2195 = vmatpush1.msra.mxu0 0.0
        %2196 = vmatprep.subr.mxu0 0.0
        %2197 = vmatpush1.msra.mxu0 0.0
        %2198 = vmatprep.subr.mxu0 0.0
        %2199 = vmatpush1.msra.mxu0 0.0
        %2200 = vmatprep.subr.mxu0 0.0
        %2201 = vmatpush1.msra.mxu0 0.0
        %2202 = vmatprep.mubr.f32.mxu0 0.0
        %2203 = vmatmul.mubr.f32.gmra.mrb[0].mxu0 %v1946
        %v2204 = vpop.f32.mrb[0].mxu0
        %v2205 = vadd.f32 %v2060, %v2204
        %v2206 = vpop.f32.mrb[0].mxu0
        %2207 = vmatprep.mubr.f32.mxu0 0.0
        %2208 = vmatmul.mubr.f32.gmra.mrb[0].mxu0 %v1949
        %v2209 = vpop.f32.mrb[0].mxu0
        %v2210 = vadd.f32 %v2065, %v2209
        %v2211 = vpop.f32.mrb[0].mxu0
        %2212 = vmatprep.mubr.f32.mxu0 0.0
        %2213 = vmatmul.mubr.f32.gmra.mrb[0].mxu0 %v1952
        %v2214 = vpop.f32.mrb[0].mxu0
        %v2215 = vadd.f32 %v2070, %v2214
        %v2216 = vpop.f32.mrb[0].mxu0
        %2217 = vmatprep.mubr.f32.mxu0 0.0
        %2218 = vmatmul.mubr.f32.gmra.mrb[0].mxu0 %v1955
        %v2219 = vpop.f32.mrb[0].mxu0
        %v2220 = vadd.f32 %v2075, %v2219
        %v2221 = vpop.f32.mrb[0].mxu0
        %2222 = vmatprep.mubr.f32.mxu0 0.0
        %2223 = vmatmul.mubr.f32.gmra.mrb[0].mxu0 %v1958
        %v2224 = vpop.f32.mrb[0].mxu0
        %v2225 = vadd.f32 %v2080, %v2224
        %v2226 = vpop.f32.mrb[0].mxu0
        %2227 = vmatprep.mubr.f32.mxu0 0.0
        %2228 = vmatmul.mubr.f32.gmra.mrb[0].mxu0 %v1961
        %v2229 = vpop.f32.mrb[0].mxu0
        %v2230 = vadd.f32 %v2085, %v2229
        %v2231 = vpop.f32.mrb[0].mxu0
        %2232 = vmatprep.mubr.f32.mxu0 0.0
        %2233 = vmatmul.mubr.f32.gmra.mrb[0].mxu0 %v1964
        %v2234 = vpop.f32.mrb[0].mxu0
        %v2235 = vadd.f32 %v2090, %v2234
        %v2236 = vpop.f32.mrb[0].mxu0
        %2237 = vmatprep.mubr.f32.mxu0 0.0
        %2238 = vmatmul.mubr.f32.gmra.mrb[0].mxu0 %v1967
        %v2239 = vpop.f32.mrb[0].mxu0
        %v2240 = vadd.f32 %v2095, %v2239
        %v2241 = vpop.f32.mrb[0].mxu0
        %2242 = vmatprep.mubr.f32.mxu0 0.0
        %2243 = vmatmul.mubr.f32.gmra.mrb[0].mxu0 %v1970
        %v2244 = vpop.f32.mrb[0].mxu0
        %v2245 = vadd.f32 %v2100, %v2244
        %v2246 = vpop.f32.mrb[0].mxu0
        %2247 = vmatprep.mubr.f32.mxu0 0.0
        %2248 = vmatmul.mubr.f32.gmra.mrb[0].mxu0 %v1973
        %v2249 = vpop.f32.mrb[0].mxu0
        %v2250 = vadd.f32 %v2105, %v2249
        %v2251 = vpop.f32.mrb[0].mxu0
        %2252 = vmatprep.mubr.f32.mxu0 0.0
        %2253 = vmatmul.mubr.f32.gmra.mrb[0].mxu0 %v1976
        %v2254 = vpop.f32.mrb[0].mxu0
        %v2255 = vadd.f32 %v2110, %v2254
        %v2256 = vpop.f32.mrb[0].mxu0
        %2257 = vmatprep.mubr.f32.mxu0 0.0
        %2258 = vmatmul.mubr.f32.gmra.mrb[0].mxu0 %v1979
        %v2259 = vpop.f32.mrb[0].mxu0
        %v2260 = vadd.f32 %v2115, %v2259
        %v2261 = vpop.f32.mrb[0].mxu0
        %2262 = vmatprep.mubr.f32.mxu0 0.0
        %2263 = vmatmul.mubr.f32.gmra.mrb[0].mxu0 %v1982
        %v2264 = vpop.f32.mrb[0].mxu0
        %v2265 = vadd.f32 %v2120, %v2264
        %v2266 = vpop.f32.mrb[0].mxu0
        %2267 = vmatprep.mubr.f32.mxu0 0.0
        %2268 = vmatmul.mubr.f32.gmra.mrb[0].mxu0 %v1985
        %v2269 = vpop.f32.mrb[0].mxu0
        %v2270 = vadd.f32 %v2125, %v2269
        %v2271 = vpop.f32.mrb[0].mxu0
        %2272 = vmatprep.mubr.f32.mxu0 0.0
        %2273 = vmatmul.mubr.f32.gmra.mrb[0].mxu0 %v1988
        %v2274 = vpop.f32.mrb[0].mxu0
        %v2275 = vadd.f32 %v2130, %v2274
        %v2276 = vpop.f32.mrb[0].mxu0
        %2277 = vmatprep.mubr.f32.mxu0 0.0
        %2278 = vmatmul.mubr.f32.gmra.mrb[0].mxu0 %v1991
        %v2279 = vpop.f32.mrb[0].mxu0
        %v2280 = vadd.f32 %v2135, %v2279
        %v2281 = vpop.f32.mrb[0].mxu0
        %2282 = vdwg.mxu0
        %v2283 = vadd.f32 %v568, %v574
        %v2284 = vadd.f32 %v2283, %v580
        %v2285 = vadd.f32 %v2284, %v586
        %v2286 = vadd.f32 %v2285, %v592
        %v2287 = vadd.f32 %v2286, %v598
        %v2288 = vadd.f32 %v2287, %v604
        %v2289 = vadd.f32 %v2288, %v610
        %v2290 = vadd.f32 %v2289, %v616
        %v2291 = vadd.f32 %v2290, %v622
        %v2292 = vadd.f32 %v2291, %v628
        %v2293 = vadd.f32 %v2292, %v634
        %v2294 = vadd.f32 %v2293, %v640
        %v2295 = vadd.f32 %v2294, %v646
        %v2296 = vadd.f32 %v2295, %v652
        %v2297 = vadd.f32 %v2296, %v658
        %2298 = vadd.xlane.f32.xlu0 %v2297
        %v2299 = vpop.xlane.xlu0 %2298
        %v2300 = vrot.slane %v2299, 4
        %v2301 = vadd.f32 %v2299, %v2300
        %v2302 = vrot.slane %v2301, 2
        %v2303 = vadd.f32 %v2301, %v2302
        %v2304 = vrot.slane %v2303, 1
        %v2305 = vadd.f32 %v2303, %v2304
        %s2306 = vtos %v2305
        %v2307 = vstv %s2306
        %v2308 = vmul.f32 %v2307, %v685
        %v2309 = vsub.f32 %v568, %v2308
        %v2310 = vsub.f32 %v574, %v2308
        %v2311 = vsub.f32 %v580, %v2308
        %v2312 = vsub.f32 %v586, %v2308
        %v2313 = vsub.f32 %v592, %v2308
        %v2314 = vsub.f32 %v598, %v2308
        %v2315 = vsub.f32 %v604, %v2308
        %v2316 = vsub.f32 %v610, %v2308
        %v2317 = vsub.f32 %v616, %v2308
        %v2318 = vsub.f32 %v622, %v2308
        %v2319 = vsub.f32 %v628, %v2308
        %v2320 = vsub.f32 %v634, %v2308
        %v2321 = vsub.f32 %v640, %v2308
        %v2322 = vsub.f32 %v646, %v2308
        %v2323 = vsub.f32 %v652, %v2308
        %v2324 = vsub.f32 %v658, %v2308
        %v2325 = vmul.f32 %v2309, %v2309
        %v2326 = vmul.f32 %v2310, %v2310
        %v2327 = vmul.f32 %v2311, %v2311
        %v2328 = vmul.f32 %v2312, %v2312
        %v2329 = vmul.f32 %v2313, %v2313
        %v2330 = vmul.f32 %v2314, %v2314
        %v2331 = vmul.f32 %v2315, %v2315
        %v2332 = vmul.f32 %v2316, %v2316
        %v2333 = vmul.f32 %v2317, %v2317
        %v2334 = vmul.f32 %v2318, %v2318
        %v2335 = vmul.f32 %v2319, %v2319
        %v2336 = vmul.f32 %v2320, %v2320
        %v2337 = vmul.f32 %v2321, %v2321
        %v2338 = vmul.f32 %v2322, %v2322
        %v2339 = vmul.f32 %v2323, %v2323
        %v2340 = vmul.f32 %v2324, %v2324
        %v2341 = vadd.f32 %v2325, %v2326
        %v2342 = vadd.f32 %v2341, %v2327
        %v2343 = vadd.f32 %v2342, %v2328
        %v2344 = vadd.f32 %v2343, %v2329
        %v2345 = vadd.f32 %v2344, %v2330
        %v2346 = vadd.f32 %v2345, %v2331
        %v2347 = vadd.f32 %v2346, %v2332
        %v2348 = vadd.f32 %v2347, %v2333
        %v2349 = vadd.f32 %v2348, %v2334
        %v2350 = vadd.f32 %v2349, %v2335
        %v2351 = vadd.f32 %v2350, %v2336
        %v2352 = vadd.f32 %v2351, %v2337
        %v2353 = vadd.f32 %v2352, %v2338
        %v2354 = vadd.f32 %v2353, %v2339
        %v2355 = vadd.f32 %v2354, %v2340
        %2356 = vadd.xlane.f32.xlu0 %v2355
        %v2357 = vpop.xlane.xlu0 %2356
        %v2358 = vrot.slane %v2357, 4
        %v2359 = vadd.f32 %v2357, %v2358
        %v2360 = vrot.slane %v2359, 2
        %v2361 = vadd.f32 %v2359, %v2360
        %v2362 = vrot.slane %v2361, 1
        %v2363 = vadd.f32 %v2361, %v2362
        %s2364 = vtos %v2363
        %v2365 = vstv %s2364
        %v2366 = vmul.f32 %v2365, %v685
        %v2367 = vadd.f32 %v2366, 1e-05
        %v2368 = vrsqrt.pop %v2367
        %v2369 = vmul.f32 %v2309, %v2368
        %v2370 = vmul.f32 %v2310, %v2368
        %v2371 = vmul.f32 %v2311, %v2368
        %v2372 = vmul.f32 %v2312, %v2368
        %v2373 = vmul.f32 %v2313, %v2368
        %v2374 = vmul.f32 %v2314, %v2368
        %v2375 = vmul.f32 %v2315, %v2368
        %v2376 = vmul.f32 %v2316, %v2368
        %v2377 = vmul.f32 %v2317, %v2368
        %v2378 = vmul.f32 %v2318, %v2368
        %v2379 = vmul.f32 %v2319, %v2368
        %v2380 = vmul.f32 %v2320, %v2368
        %v2381 = vmul.f32 %v2321, %v2368
        %v2382 = vmul.f32 %v2322, %v2368
        %v2383 = vmul.f32 %v2323, %v2368
        %v2384 = vmul.f32 %v2324, %v2368
        %v2385 = vld [vmem:[%s2 + $0x1] sm:$0x1]
        %v2387 = vlaneseq
        %v2388 = vshrl.u32 %v2387, 7
        %v2389 = vsub.s32 0, %v2388
        %v2390 = vrot.slane %v2385, %v2389
        %v2392 = vmul.f32 %v2369, %v2390
        %v2393 = vmul.f32 %v2370, %v2390
        %v2394 = vmul.f32 %v2371, %v2390
        %v2395 = vmul.f32 %v2372, %v2390
        %v2396 = vmul.f32 %v2373, %v2390
        %v2397 = vmul.f32 %v2374, %v2390
        %v2398 = vmul.f32 %v2375, %v2390
        %v2399 = vmul.f32 %v2376, %v2390
        %v2400 = vmul.f32 %v2377, %v2390
        %v2401 = vmul.f32 %v2378, %v2390
        %v2402 = vmul.f32 %v2379, %v2390
        %v2403 = vmul.f32 %v2380, %v2390
        %v2404 = vmul.f32 %v2381, %v2390
        %v2405 = vmul.f32 %v2382, %v2390
        %v2406 = vmul.f32 %v2383, %v2390
        %v2407 = vmul.f32 %v2384, %v2390
        %v2408 = vld [vmem:[%s3 + $0x1] sm:$0x1]
        %v2410 = vlaneseq
        %v2411 = vshrl.u32 %v2410, 7
        %v2412 = vsub.s32 0, %v2411
        %v2413 = vrot.slane %v2408, %v2412
        %v2415 = vadd.f32 %v2392, %v2413
        %v2416 = vadd.f32 %v2393, %v2413
        %v2417 = vadd.f32 %v2394, %v2413
        %v2418 = vadd.f32 %v2395, %v2413
        %v2419 = vadd.f32 %v2396, %v2413
        %v2420 = vadd.f32 %v2397, %v2413
        %v2421 = vadd.f32 %v2398, %v2413
        %v2422 = vadd.f32 %v2399, %v2413
        %v2423 = vadd.f32 %v2400, %v2413
        %v2424 = vadd.f32 %v2401, %v2413
        %v2425 = vadd.f32 %v2402, %v2413
        %v2426 = vadd.f32 %v2403, %v2413
        %v2427 = vadd.f32 %v2404, %v2413
        %v2428 = vadd.f32 %v2405, %v2413
        %v2429 = vadd.f32 %v2406, %v2413
        %v2430 = vadd.f32 %v2407, %v2413
        %s2431 = scalar_lea.vmem %s4, 384
        %v2432 = vld [vmem:[%s2431] sm:$0xff]
        %v2433 = vld [vmem:[%s2431 + $0x8] sm:$0xff]
        %v2434 = vld [vmem:[%s2431 + $0x10] sm:$0xff]
        %v2435 = vld [vmem:[%s2431 + $0x18] sm:$0xff]
        %v2436 = vld [vmem:[%s2431 + $0x20] sm:$0xff]
        %v2437 = vld [vmem:[%s2431 + $0x28] sm:$0xff]
        %v2438 = vld [vmem:[%s2431 + $0x30] sm:$0xff]
        %v2439 = vld [vmem:[%s2431 + $0x38] sm:$0xff]
        %v2440 = vld [vmem:[%s2431 + $0x40] sm:$0xff]
        %v2441 = vld [vmem:[%s2431 + $0x48] sm:$0xff]
        %v2442 = vld [vmem:[%s2431 + $0x50] sm:$0xff]
        %v2443 = vld [vmem:[%s2431 + $0x58] sm:$0xff]
        %v2444 = vld [vmem:[%s2431 + $0x60] sm:$0xff]
        %v2445 = vld [vmem:[%s2431 + $0x68] sm:$0xff]
        %v2446 = vld [vmem:[%s2431 + $0x70] sm:$0xff]
        %v2447 = vld [vmem:[%s2431 + $0x78] sm:$0xff]
        %v2448 = vld [vmem:[%s2431 + $0x80] sm:$0xff]
        %v2449 = vld [vmem:[%s2431 + $0x88] sm:$0xff]
        %v2450 = vld [vmem:[%s2431 + $0x90] sm:$0xff]
        %v2451 = vld [vmem:[%s2431 + $0x98] sm:$0xff]
        %v2452 = vld [vmem:[%s2431 + $0xa0] sm:$0xff]
        %v2453 = vld [vmem:[%s2431 + $0xa8] sm:$0xff]
        %v2454 = vld [vmem:[%s2431 + $0xb0] sm:$0xff]
        %v2455 = vld [vmem:[%s2431 + $0xb8] sm:$0xff]
        %v2456 = vld [vmem:[%s2431 + $0xc0] sm:$0xff]
        %v2457 = vld [vmem:[%s2431 + $0xc8] sm:$0xff]
        %v2458 = vld [vmem:[%s2431 + $0xd0] sm:$0xff]
        %v2459 = vld [vmem:[%s2431 + $0xd8] sm:$0xff]
        %v2460 = vld [vmem:[%s2431 + $0xe0] sm:$0xff]
        %v2461 = vld [vmem:[%s2431 + $0xe8] sm:$0xff]
        %v2462 = vld [vmem:[%s2431 + $0xf0] sm:$0xff]
        %v2463 = vld [vmem:[%s2431 + $0xf8] sm:$0xff]
        %v2464 = vld [vmem:[%s2431 + $0x100] sm:$0xff]
        %v2465 = vld [vmem:[%s2431 + $0x108] sm:$0xff]
        %v2466 = vld [vmem:[%s2431 + $0x110] sm:$0xff]
        %v2467 = vld [vmem:[%s2431 + $0x118] sm:$0xff]
        %v2468 = vld [vmem:[%s2431 + $0x120] sm:$0xff]
        %v2469 = vld [vmem:[%s2431 + $0x128] sm:$0xff]
        %v2470 = vld [vmem:[%s2431 + $0x130] sm:$0xff]
        %v2471 = vld [vmem:[%s2431 + $0x138] sm:$0xff]
        %v2472 = vld [vmem:[%s2431 + $0x140] sm:$0xff]
        %v2473 = vld [vmem:[%s2431 + $0x148] sm:$0xff]
        %v2474 = vld [vmem:[%s2431 + $0x150] sm:$0xff]
        %v2475 = vld [vmem:[%s2431 + $0x158] sm:$0xff]
        %v2476 = vld [vmem:[%s2431 + $0x160] sm:$0xff]
        %v2477 = vld [vmem:[%s2431 + $0x168] sm:$0xff]
        %v2478 = vld [vmem:[%s2431 + $0x170] sm:$0xff]
        %v2479 = vld [vmem:[%s2431 + $0x178] sm:$0xff]
        %2480 = vmatprep.subr.mxu0 %v2433
        %2481 = vmatpush1.msra.mxu0 %v2432
        %2482 = vmatprep.subr.mxu0 %v2436
        %2483 = vmatpush1.msra.mxu0 %v2435
        %2484 = vmatprep.subr.mxu0 %v2439
        %2485 = vmatpush1.msra.mxu0 %v2438
        %2486 = vmatprep.subr.mxu0 %v2442
        %2487 = vmatpush1.msra.mxu0 %v2441
        %2488 = vmatprep.subr.mxu0 %v2445
        %2489 = vmatpush1.msra.mxu0 %v2444
        %2490 = vmatprep.subr.mxu0 %v2448
        %2491 = vmatpush1.msra.mxu0 %v2447
        %2492 = vmatprep.subr.mxu0 %v2451
        %2493 = vmatpush1.msra.mxu0 %v2450
        %2494 = vmatprep.subr.mxu0 %v2454
        %2495 = vmatpush1.msra.mxu0 %v2453
        %2496 = vmatprep.subr.mxu0 %v2457
        %2497 = vmatpush1.msra.mxu0 %v2456
        %2498 = vmatprep.subr.mxu0 %v2460
        %2499 = vmatpush1.msra.mxu0 %v2459
        %2500 = vmatprep.subr.mxu0 %v2463
        %2501 = vmatpush1.msra.mxu0 %v2462
        %2502 = vmatprep.subr.mxu0 %v2466
        %2503 = vmatpush1.msra.mxu0 %v2465
        %2504 = vmatprep.subr.mxu0 %v2469
        %2505 = vmatpush1.msra.mxu0 %v2468
        %2506 = vmatprep.subr.mxu0 %v2472
        %2507 = vmatpush1.msra.mxu0 %v2471
        %2508 = vmatprep.subr.mxu0 %v2475
        %2509 = vmatpush1.msra.mxu0 %v2474
        %2510 = vmatprep.subr.mxu0 %v2478
        %2511 = vmatpush1.msra.mxu0 %v2477
        %2512 = vmatprep.subr.mxu0 0.0
        %2513 = vmatpush1.msra.mxu0 0.0
        %2514 = vmatprep.subr.mxu0 0.0
        %2515 = vmatpush1.msra.mxu0 0.0
        %2516 = vmatprep.subr.mxu0 0.0
        %2517 = vmatpush1.msra.mxu0 0.0
        %2518 = vmatprep.subr.mxu0 0.0
        %2519 = vmatpush1.msra.mxu0 0.0
        %2520 = vmatprep.subr.mxu0 0.0
        %2521 = vmatpush1.msra.mxu0 0.0
        %2522 = vmatprep.subr.mxu0 0.0
        %2523 = vmatpush1.msra.mxu0 0.0
        %2524 = vmatprep.subr.mxu0 0.0
        %2525 = vmatpush1.msra.mxu0 0.0
        %2526 = vmatprep.subr.mxu0 0.0
        %2527 = vmatpush1.msra.mxu0 0.0
        %2528 = vmatprep.subr.mxu0 0.0
        %2529 = vmatpush1.msra.mxu0 0.0
        %2530 = vmatprep.subr.mxu0 0.0
        %2531 = vmatpush1.msra.mxu0 0.0
        %2532 = vmatprep.subr.mxu0 0.0
        %2533 = vmatpush1.msra.mxu0 0.0
        %2534 = vmatprep.subr.mxu0 0.0
        %2535 = vmatpush1.msra.mxu0 0.0
        %2536 = vmatprep.subr.mxu0 0.0
        %2537 = vmatpush1.msra.mxu0 0.0
        %2538 = vmatprep.subr.mxu0 0.0
        %2539 = vmatpush1.msra.mxu0 0.0
        %2540 = vmatprep.subr.mxu0 0.0
        %2541 = vmatpush1.msra.mxu0 0.0
        %2542 = vmatprep.subr.mxu0 0.0
        %2543 = vmatpush1.msra.mxu0 0.0
        %2544 = vmatprep.mubr.f32.mxu0 0.0
        %2545 = vmatmul.mubr.f32.gmra.mrb[0].mxu0 %v2415
        %v2546 = vpop.f32.mrb[0].mxu0
        %v2547 = vadd.f32 0.0, %v2546
        %v2548 = vpop.f32.mrb[0].mxu0
        %v2549 = vadd.f32 0.0, %v2548
        %2550 = vmatprep.mubr.f32.mxu0 0.0
        %2551 = vmatmul.mubr.f32.gmra.mrb[0].mxu0 %v2416
        %v2552 = vpop.f32.mrb[0].mxu0
        %v2553 = vadd.f32 0.0, %v2552
        %v2554 = vpop.f32.mrb[0].mxu0
        %v2555 = vadd.f32 0.0, %v2554
        %2556 = vmatprep.mubr.f32.mxu0 0.0
        %2557 = vmatmul.mubr.f32.gmra.mrb[0].mxu0 %v2417
        %v2558 = vpop.f32.mrb[0].mxu0
        %v2559 = vadd.f32 0.0, %v2558
        %v2560 = vpop.f32.mrb[0].mxu0
        %v2561 = vadd.f32 0.0, %v2560
        %2562 = vmatprep.mubr.f32.mxu0 0.0
        %2563 = vmatmul.mubr.f32.gmra.mrb[0].mxu0 %v2418
        %v2564 = vpop.f32.mrb[0].mxu0
        %v2565 = vadd.f32 0.0, %v2564
        %v2566 = vpop.f32.mrb[0].mxu0
        %v2567 = vadd.f32 0.0, %v2566
        %2568 = vmatprep.mubr.f32.mxu0 0.0
        %2569 = vmatmul.mubr.f32.gmra.mrb[0].mxu0 %v2419
        %v2570 = vpop.f32.mrb[0].mxu0
        %v2571 = vadd.f32 0.0, %v2570
        %v2572 = vpop.f32.mrb[0].mxu0
        %v2573 = vadd.f32 0.0, %v2572
        %2574 = vmatprep.mubr.f32.mxu0 0.0
        %2575 = vmatmul.mubr.f32.gmra.mrb[0].mxu0 %v2420
        %v2576 = vpop.f32.mrb[0].mxu0
        %v2577 = vadd.f32 0.0, %v2576
        %v2578 = vpop.f32.mrb[0].mxu0
        %v2579 = vadd.f32 0.0, %v2578
        %2580 = vmatprep.mubr.f32.mxu0 0.0
        %2581 = vmatmul.mubr.f32.gmra.mrb[0].mxu0 %v2421
        %v2582 = vpop.f32.mrb[0].mxu0
        %v2583 = vadd.f32 0.0, %v2582
        %v2584 = vpop.f32.mrb[0].mxu0
        %v2585 = vadd.f32 0.0, %v2584
        %2586 = vmatprep.mubr.f32.mxu0 0.0
        %2587 = vmatmul.mubr.f32.gmra.mrb[0].mxu0 %v2422
        %v2588 = vpop.f32.mrb[0].mxu0
        %v2589 = vadd.f32 0.0, %v2588
        %v2590 = vpop.f32.mrb[0].mxu0
        %v2591 = vadd.f32 0.0, %v2590
        %2592 = vmatprep.mubr.f32.mxu0 0.0
        %2593 = vmatmul.mubr.f32.gmra.mrb[0].mxu0 %v2423
        %v2594 = vpop.f32.mrb[0].mxu0
        %v2595 = vadd.f32 0.0, %v2594
        %v2596 = vpop.f32.mrb[0].mxu0
        %v2597 = vadd.f32 0.0, %v2596
        %2598 = vmatprep.mubr.f32.mxu0 0.0
        %2599 = vmatmul.mubr.f32.gmra.mrb[0].mxu0 %v2424
        %v2600 = vpop.f32.mrb[0].mxu0
        %v2601 = vadd.f32 0.0, %v2600
        %v2602 = vpop.f32.mrb[0].mxu0
        %v2603 = vadd.f32 0.0, %v2602
        %2604 = vmatprep.mubr.f32.mxu0 0.0
        %2605 = vmatmul.mubr.f32.gmra.mrb[0].mxu0 %v2425
        %v2606 = vpop.f32.mrb[0].mxu0
        %v2607 = vadd.f32 0.0, %v2606
        %v2608 = vpop.f32.mrb[0].mxu0
        %v2609 = vadd.f32 0.0, %v2608
        %2610 = vmatprep.mubr.f32.mxu0 0.0
        %2611 = vmatmul.mubr.f32.gmra.mrb[0].mxu0 %v2426
        %v2612 = vpop.f32.mrb[0].mxu0
        %v2613 = vadd.f32 0.0, %v2612
        %v2614 = vpop.f32.mrb[0].mxu0
        %v2615 = vadd.f32 0.0, %v2614
        %2616 = vmatprep.mubr.f32.mxu0 0.0
        %2617 = vmatmul.mubr.f32.gmra.mrb[0].mxu0 %v2427
        %v2618 = vpop.f32.mrb[0].mxu0
        %v2619 = vadd.f32 0.0, %v2618
        %v2620 = vpop.f32.mrb[0].mxu0
        %v2621 = vadd.f32 0.0, %v2620
        %2622 = vmatprep.mubr.f32.mxu0 0.0
        %2623 = vmatmul.mubr.f32.gmra.mrb[0].mxu0 %v2428
        %v2624 = vpop.f32.mrb[0].mxu0
        %v2625 = vadd.f32 0.0, %v2624
        %v2626 = vpop.f32.mrb[0].mxu0
        %v2627 = vadd.f32 0.0, %v2626
        %2628 = vmatprep.mubr.f32.mxu0 0.0
        %2629 = vmatmul.mubr.f32.gmra.mrb[0].mxu0 %v2429
        %v2630 = vpop.f32.mrb[0].mxu0
        %v2631 = vadd.f32 0.0, %v2630
        %v2632 = vpop.f32.mrb[0].mxu0
        %v2633 = vadd.f32 0.0, %v2632
        %2634 = vmatprep.mubr.f32.mxu0 0.0
        %2635 = vmatmul.mubr.f32.gmra.mrb[0].mxu0 %v2430
        %v2636 = vpop.f32.mrb[0].mxu0
        %v2637 = vadd.f32 0.0, %v2636
        %v2638 = vpop.f32.mrb[0].mxu0
        %v2639 = vadd.f32 0.0, %v2638
        %2640 = vdwg.mxu0
        %2641 = vmatprep.subr.mxu0 0.0
        %2642 = vmatpush1.msra.mxu0 %v2434
        %2643 = vmatprep.subr.mxu0 0.0
        %2644 = vmatpush1.msra.mxu0 %v2437
        %2645 = vmatprep.subr.mxu0 0.0
        %2646 = vmatpush1.msra.mxu0 %v2440
        %2647 = vmatprep.subr.mxu0 0.0
        %2648 = vmatpush1.msra.mxu0 %v2443
        %2649 = vmatprep.subr.mxu0 0.0
        %2650 = vmatpush1.msra.mxu0 %v2446
        %2651 = vmatprep.subr.mxu0 0.0
        %2652 = vmatpush1.msra.mxu0 %v2449
        %2653 = vmatprep.subr.mxu0 0.0
        %2654 = vmatpush1.msra.mxu0 %v2452
        %2655 = vmatprep.subr.mxu0 0.0
        %2656 = vmatpush1.msra.mxu0 %v2455
        %2657 = vmatprep.subr.mxu0 0.0
        %2658 = vmatpush1.msra.mxu0 %v2458
        %2659 = vmatprep.subr.mxu0 0.0
        %2660 = vmatpush1.msra.mxu0 %v2461
        %2661 = vmatprep.subr.mxu0 0.0
        %2662 = vmatpush1.msra.mxu0 %v2464
        %2663 = vmatprep.subr.mxu0 0.0
        %2664 = vmatpush1.msra.mxu0 %v2467
        %2665 = vmatprep.subr.mxu0 0.0
        %2666 = vmatpush1.msra.mxu0 %v2470
        %2667 = vmatprep.subr.mxu0 0.0
        %2668 = vmatpush1.msra.mxu0 %v2473
        %2669 = vmatprep.subr.mxu0 0.0
        %2670 = vmatpush1.msra.mxu0 %v2476
        %2671 = vmatprep.subr.mxu0 0.0
        %2672 = vmatpush1.msra.mxu0 %v2479
        %2673 = vmatprep.subr.mxu0 0.0
        %2674 = vmatpush1.msra.mxu0 0.0
        %2675 = vmatprep.subr.mxu0 0.0
        %2676 = vmatpush1.msra.mxu0 0.0
        %2677 = vmatprep.subr.mxu0 0.0
        %2678 = vmatpush1.msra.mxu0 0.0
        %2679 = vmatprep.subr.mxu0 0.0
        %2680 = vmatpush1.msra.mxu0 0.0
        %2681 = vmatprep.subr.mxu0 0.0
        %2682 = vmatpush1.msra.mxu0 0.0
        %2683 = vmatprep.subr.mxu0 0.0
        %2684 = vmatpush1.msra.mxu0 0.0
        %2685 = vmatprep.subr.mxu0 0.0
        %2686 = vmatpush1.msra.mxu0 0.0
        %2687 = vmatprep.subr.mxu0 0.0
        %2688 = vmatpush1.msra.mxu0 0.0
        %2689 = vmatprep.subr.mxu0 0.0
        %2690 = vmatpush1.msra.mxu0 0.0
        %2691 = vmatprep.subr.mxu0 0.0
        %2692 = vmatpush1.msra.mxu0 0.0
        %2693 = vmatprep.subr.mxu0 0.0
        %2694 = vmatpush1.msra.mxu0 0.0
        %2695 = vmatprep.subr.mxu0 0.0
        %2696 = vmatpush1.msra.mxu0 0.0
        %2697 = vmatprep.subr.mxu0 0.0
        %2698 = vmatpush1.msra.mxu0 0.0
        %2699 = vmatprep.subr.mxu0 0.0
        %2700 = vmatpush1.msra.mxu0 0.0
        %2701 = vmatprep.subr.mxu0 0.0
        %2702 = vmatpush1.msra.mxu0 0.0
        %2703 = vmatprep.subr.mxu0 0.0
        %2704 = vmatpush1.msra.mxu0 0.0
        %2705 = vmatprep.mubr.f32.mxu0 0.0
        %2706 = vmatmul.mubr.f32.gmra.mrb[0].mxu0 %v2415
        %v2707 = vpop.f32.mrb[0].mxu0
        %v2708 = vadd.f32 0.0, %v2707
        %v2709 = vpop.f32.mrb[0].mxu0
        %2710 = vmatprep.mubr.f32.mxu0 0.0
        %2711 = vmatmul.mubr.f32.gmra.mrb[0].mxu0 %v2416
        %v2712 = vpop.f32.mrb[0].mxu0
        %v2713 = vadd.f32 0.0, %v2712
        %v2714 = vpop.f32.mrb[0].mxu0
        %2715 = vmatprep.mubr.f32.mxu0 0.0
        %2716 = vmatmul.mubr.f32.gmra.mrb[0].mxu0 %v2417
        %v2717 = vpop.f32.mrb[0].mxu0
        %v2718 = vadd.f32 0.0, %v2717
        %v2719 = vpop.f32.mrb[0].mxu0
        %2720 = vmatprep.mubr.f32.mxu0 0.0
        %2721 = vmatmul.mubr.f32.gmra.mrb[0].mxu0 %v2418
        %v2722 = vpop.f32.mrb[0].mxu0
        %v2723 = vadd.f32 0.0, %v2722
        %v2724 = vpop.f32.mrb[0].mxu0
        %2725 = vmatprep.mubr.f32.mxu0 0.0
        %2726 = vmatmul.mubr.f32.gmra.mrb[0].mxu0 %v2419
        %v2727 = vpop.f32.mrb[0].mxu0
        %v2728 = vadd.f32 0.0, %v2727
        %v2729 = vpop.f32.mrb[0].mxu0
        %2730 = vmatprep.mubr.f32.mxu0 0.0
        %2731 = vmatmul.mubr.f32.gmra.mrb[0].mxu0 %v2420
        %v2732 = vpop.f32.mrb[0].mxu0
        %v2733 = vadd.f32 0.0, %v2732
        %v2734 = vpop.f32.mrb[0].mxu0
        %2735 = vmatprep.mubr.f32.mxu0 0.0
        %2736 = vmatmul.mubr.f32.gmra.mrb[0].mxu0 %v2421
        %v2737 = vpop.f32.mrb[0].mxu0
        %v2738 = vadd.f32 0.0, %v2737
        %v2739 = vpop.f32.mrb[0].mxu0
        %2740 = vmatprep.mubr.f32.mxu0 0.0
        %2741 = vmatmul.mubr.f32.gmra.mrb[0].mxu0 %v2422
        %v2742 = vpop.f32.mrb[0].mxu0
        %v2743 = vadd.f32 0.0, %v2742
        %v2744 = vpop.f32.mrb[0].mxu0
        %2745 = vmatprep.mubr.f32.mxu0 0.0
        %2746 = vmatmul.mubr.f32.gmra.mrb[0].mxu0 %v2423
        %v2747 = vpop.f32.mrb[0].mxu0
        %v2748 = vadd.f32 0.0, %v2747
        %v2749 = vpop.f32.mrb[0].mxu0
        %2750 = vmatprep.mubr.f32.mxu0 0.0
        %2751 = vmatmul.mubr.f32.gmra.mrb[0].mxu0 %v2424
        %v2752 = vpop.f32.mrb[0].mxu0
        %v2753 = vadd.f32 0.0, %v2752
        %v2754 = vpop.f32.mrb[0].mxu0
        %2755 = vmatprep.mubr.f32.mxu0 0.0
        %2756 = vmatmul.mubr.f32.gmra.mrb[0].mxu0 %v2425
        %v2757 = vpop.f32.mrb[0].mxu0
        %v2758 = vadd.f32 0.0, %v2757
        %v2759 = vpop.f32.mrb[0].mxu0
        %2760 = vmatprep.mubr.f32.mxu0 0.0
        %2761 = vmatmul.mubr.f32.gmra.mrb[0].mxu0 %v2426
        %v2762 = vpop.f32.mrb[0].mxu0
        %v2763 = vadd.f32 0.0, %v2762
        %v2764 = vpop.f32.mrb[0].mxu0
        %2765 = vmatprep.mubr.f32.mxu0 0.0
        %2766 = vmatmul.mubr.f32.gmra.mrb[0].mxu0 %v2427
        %v2767 = vpop.f32.mrb[0].mxu0
        %v2768 = vadd.f32 0.0, %v2767
        %v2769 = vpop.f32.mrb[0].mxu0
        %2770 = vmatprep.mubr.f32.mxu0 0.0
        %2771 = vmatmul.mubr.f32.gmra.mrb[0].mxu0 %v2428
        %v2772 = vpop.f32.mrb[0].mxu0
        %v2773 = vadd.f32 0.0, %v2772
        %v2774 = vpop.f32.mrb[0].mxu0
        %2775 = vmatprep.mubr.f32.mxu0 0.0
        %2776 = vmatmul.mubr.f32.gmra.mrb[0].mxu0 %v2429
        %v2777 = vpop.f32.mrb[0].mxu0
        %v2778 = vadd.f32 0.0, %v2777
        %v2779 = vpop.f32.mrb[0].mxu0
        %2780 = vmatprep.mubr.f32.mxu0 0.0
        %2781 = vmatmul.mubr.f32.gmra.mrb[0].mxu0 %v2430
        %v2782 = vpop.f32.mrb[0].mxu0
        %v2783 = vadd.f32 0.0, %v2782
        %v2784 = vpop.f32.mrb[0].mxu0
        %2785 = vdwg.mxu0
        %s2786 = scalar_lea.vmem %s6, 3
        %v2787 = vld [vmem:[%s2786] sm:$0x7]
        %v2788 = vmul.f32 %v2547, 2.0
        %v2789 = vmul.f32 %v2549, 2.0
        %v2790 = vmul.f32 %v2708, 2.0
        %v2791 = vmul.f32 %v2553, 2.0
        %v2792 = vmul.f32 %v2555, 2.0
        %v2793 = vmul.f32 %v2713, 2.0
        %v2794 = vmul.f32 %v2559, 2.0
        %v2795 = vmul.f32 %v2561, 2.0
        %v2796 = vmul.f32 %v2718, 2.0
        %v2797 = vmul.f32 %v2565, 2.0
        %v2798 = vmul.f32 %v2567, 2.0
        %v2799 = vmul.f32 %v2723, 2.0
        %v2800 = vmul.f32 %v2571, 2.0
        %v2801 = vmul.f32 %v2573, 2.0
        %v2802 = vmul.f32 %v2728, 2.0
        %v2803 = vmul.f32 %v2577, 2.0
        %v2804 = vmul.f32 %v2579, 2.0
        %v2805 = vmul.f32 %v2733, 2.0
        %v2806 = vmul.f32 %v2583, 2.0
        %v2807 = vmul.f32 %v2585, 2.0
        %v2808 = vmul.f32 %v2738, 2.0
        %v2809 = vmul.f32 %v2589, 2.0
        %v2810 = vmul.f32 %v2591, 2.0
        %v2811 = vmul.f32 %v2743, 2.0
        %v2812 = vmul.f32 %v2595, 2.0
        %v2813 = vmul.f32 %v2597, 2.0
        %v2814 = vmul.f32 %v2748, 2.0
        %v2815 = vmul.f32 %v2601, 2.0
        %v2816 = vmul.f32 %v2603, 2.0
        %v2817 = vmul.f32 %v2753, 2.0
        %v2818 = vmul.f32 %v2607, 2.0
        %v2819 = vmul.f32 %v2609, 2.0
        %v2820 = vmul.f32 %v2758, 2.0
        %v2821 = vmul.f32 %v2613, 2.0
        %v2822 = vmul.f32 %v2615, 2.0
        %v2823 = vmul.f32 %v2763, 2.0
        %v2824 = vmul.f32 %v2619, 2.0
        %v2825 = vmul.f32 %v2621, 2.0
        %v2826 = vmul.f32 %v2768, 2.0
        %v2827 = vmul.f32 %v2625, 2.0
        %v2828 = vmul.f32 %v2627, 2.0
        %v2829 = vmul.f32 %v2773, 2.0
        %v2830 = vmul.f32 %v2631, 2.0
        %v2831 = vmul.f32 %v2633, 2.0
        %v2832 = vmul.f32 %v2778, 2.0
        %v2833 = vmul.f32 %v2637, 2.0
        %v2834 = vmul.f32 %v2639, 2.0
        %v2835 = vmul.f32 %v2783, 2.0
        %v2837 = vlaneseq
        %v2838 = vshrl.u32 %v2837, 7
        %v2839 = vsub.s32 0, %v2838
        %v2840 = vrot.slane %v2787, %v2839
        %v2841 = vlaneseq
        %v2842 = vshrl.u32 %v2841, 7
        %v2843 = vsub.s32 1, %v2842
        %v2844 = vrot.slane %v2787, %v2843
        %v2845 = vlaneseq
        %v2846 = vshrl.u32 %v2845, 7
        %v2847 = vsub.s32 2, %v2846
        %v2848 = vrot.slane %v2787, %v2847
        %v2852 = vsub.f32 %v2840, %v2788
        %v2853 = vsub.f32 %v2844, %v2789
        %v2854 = vsub.f32 %v2848, %v2790
        %v2855 = vsub.f32 %v2840, %v2791
        %v2856 = vsub.f32 %v2844, %v2792
        %v2857 = vsub.f32 %v2848, %v2793
        %v2858 = vsub.f32 %v2840, %v2794
        %v2859 = vsub.f32 %v2844, %v2795
        %v2860 = vsub.f32 %v2848, %v2796
        %v2861 = vsub.f32 %v2840, %v2797
        %v2862 = vsub.f32 %v2844, %v2798
        %v2863 = vsub.f32 %v2848, %v2799
        %v2864 = vsub.f32 %v2840, %v2800
        %v2865 = vsub.f32 %v2844, %v2801
        %v2866 = vsub.f32 %v2848, %v2802
        %v2867 = vsub.f32 %v2840, %v2803
        %v2868 = vsub.f32 %v2844, %v2804
        %v2869 = vsub.f32 %v2848, %v2805
        %v2870 = vsub.f32 %v2840, %v2806
        %v2871 = vsub.f32 %v2844, %v2807
        %v2872 = vsub.f32 %v2848, %v2808
        %v2873 = vsub.f32 %v2840, %v2809
        %v2874 = vsub.f32 %v2844, %v2810
        %v2875 = vsub.f32 %v2848, %v2811
        %v2876 = vsub.f32 %v2840, %v2812
        %v2877 = vsub.f32 %v2844, %v2813
        %v2878 = vsub.f32 %v2848, %v2814
        %v2879 = vsub.f32 %v2840, %v2815
        %v2880 = vsub.f32 %v2844, %v2816
        %v2881 = vsub.f32 %v2848, %v2817
        %v2882 = vsub.f32 %v2840, %v2818
        %v2883 = vsub.f32 %v2844, %v2819
        %v2884 = vsub.f32 %v2848, %v2820
        %v2885 = vsub.f32 %v2840, %v2821
        %v2886 = vsub.f32 %v2844, %v2822
        %v2887 = vsub.f32 %v2848, %v2823
        %v2888 = vsub.f32 %v2840, %v2824
        %v2889 = vsub.f32 %v2844, %v2825
        %v2890 = vsub.f32 %v2848, %v2826
        %v2891 = vsub.f32 %v2840, %v2827
        %v2892 = vsub.f32 %v2844, %v2828
        %v2893 = vsub.f32 %v2848, %v2829
        %v2894 = vsub.f32 %v2840, %v2830
        %v2895 = vsub.f32 %v2844, %v2831
        %v2896 = vsub.f32 %v2848, %v2832
        %v2897 = vsub.f32 %v2840, %v2833
        %v2898 = vsub.f32 %v2844, %v2834
        %v2899 = vsub.f32 %v2848, %v2835
        %v2900 = vmin.f32 %v2852, %v2853
        %v2901 = vsel %vm1277, %v2854, inf
        %v2902 = vmin.f32 %v2900, %v2901
        %2903 = vmin.xlane.f32.xlu0 %v2902
        %v2904 = vpop.xlane.xlu0 %2903
        %v2905 = vmin.f32 %v2855, %v2856
        %v2906 = vsel %vm1277, %v2857, inf
        %v2907 = vmin.f32 %v2905, %v2906
        %2908 = vmin.xlane.f32.xlu0 %v2907
        %v2909 = vpop.xlane.xlu0 %2908
        %v2910 = vmin.f32 %v2858, %v2859
        %v2911 = vsel %vm1277, %v2860, inf
        %v2912 = vmin.f32 %v2910, %v2911
        %2913 = vmin.xlane.f32.xlu0 %v2912
        %v2914 = vpop.xlane.xlu0 %2913
        %v2915 = vmin.f32 %v2861, %v2862
        %v2916 = vsel %vm1277, %v2863, inf
        %v2917 = vmin.f32 %v2915, %v2916
        %2918 = vmin.xlane.f32.xlu0 %v2917
        %v2919 = vpop.xlane.xlu0 %2918
        %v2920 = vmin.f32 %v2864, %v2865
        %v2921 = vsel %vm1277, %v2866, inf
        %v2922 = vmin.f32 %v2920, %v2921
        %2923 = vmin.xlane.f32.xlu0 %v2922
        %v2924 = vpop.xlane.xlu0 %2923
        %v2925 = vmin.f32 %v2867, %v2868
        %v2926 = vsel %vm1277, %v2869, inf
        %v2927 = vmin.f32 %v2925, %v2926
        %2928 = vmin.xlane.f32.xlu0 %v2927
        %v2929 = vpop.xlane.xlu0 %2928
        %v2930 = vmin.f32 %v2870, %v2871
        %v2931 = vsel %vm1277, %v2872, inf
        %v2932 = vmin.f32 %v2930, %v2931
        %2933 = vmin.xlane.f32.xlu0 %v2932
        %v2934 = vpop.xlane.xlu0 %2933
        %v2935 = vmin.f32 %v2873, %v2874
        %v2936 = vsel %vm1277, %v2875, inf
        %v2937 = vmin.f32 %v2935, %v2936
        %2938 = vmin.xlane.f32.xlu0 %v2937
        %v2939 = vpop.xlane.xlu0 %2938
        %v2940 = vmin.f32 %v2876, %v2877
        %v2941 = vsel %vm1277, %v2878, inf
        %v2942 = vmin.f32 %v2940, %v2941
        %2943 = vmin.xlane.f32.xlu0 %v2942
        %v2944 = vpop.xlane.xlu0 %2943
        %v2945 = vmin.f32 %v2879, %v2880
        %v2946 = vsel %vm1277, %v2881, inf
        %v2947 = vmin.f32 %v2945, %v2946
        %2948 = vmin.xlane.f32.xlu0 %v2947
        %v2949 = vpop.xlane.xlu0 %2948
        %v2950 = vmin.f32 %v2882, %v2883
        %v2951 = vsel %vm1277, %v2884, inf
        %v2952 = vmin.f32 %v2950, %v2951
        %2953 = vmin.xlane.f32.xlu0 %v2952
        %v2954 = vpop.xlane.xlu0 %2953
        %v2955 = vmin.f32 %v2885, %v2886
        %v2956 = vsel %vm1277, %v2887, inf
        %v2957 = vmin.f32 %v2955, %v2956
        %2958 = vmin.xlane.f32.xlu0 %v2957
        %v2959 = vpop.xlane.xlu0 %2958
        %v2960 = vmin.f32 %v2888, %v2889
        %v2961 = vsel %vm1277, %v2890, inf
        %v2962 = vmin.f32 %v2960, %v2961
        %2963 = vmin.xlane.f32.xlu0 %v2962
        %v2964 = vpop.xlane.xlu0 %2963
        %v2965 = vmin.f32 %v2891, %v2892
        %v2966 = vsel %vm1277, %v2893, inf
        %v2967 = vmin.f32 %v2965, %v2966
        %2968 = vmin.xlane.f32.xlu0 %v2967
        %v2969 = vpop.xlane.xlu0 %2968
        %v2970 = vmin.f32 %v2894, %v2895
        %v2971 = vsel %vm1277, %v2896, inf
        %v2972 = vmin.f32 %v2970, %v2971
        %2973 = vmin.xlane.f32.xlu0 %v2972
        %v2974 = vpop.xlane.xlu0 %2973
        %v2975 = vmin.f32 %v2897, %v2898
        %v2976 = vsel %vm1277, %v2899, inf
        %v2977 = vmin.f32 %v2975, %v2976
        %2978 = vmin.xlane.f32.xlu0 %v2977
        %v2979 = vpop.xlane.xlu0 %2978
        %vm2980 = vcmp.le.f32.partialorder %v2852, %v2904
        %vm2981 = vcmp.le.f32.partialorder %v2853, %v2904
        %vm2982 = vcmp.le.f32.partialorder %v2854, %v2904
        %vm2983 = vcmp.le.f32.partialorder %v2855, %v2909
        %vm2984 = vcmp.le.f32.partialorder %v2856, %v2909
        %vm2985 = vcmp.le.f32.partialorder %v2857, %v2909
        %vm2986 = vcmp.le.f32.partialorder %v2858, %v2914
        %vm2987 = vcmp.le.f32.partialorder %v2859, %v2914
        %vm2988 = vcmp.le.f32.partialorder %v2860, %v2914
        %vm2989 = vcmp.le.f32.partialorder %v2861, %v2919
        %vm2990 = vcmp.le.f32.partialorder %v2862, %v2919
        %vm2991 = vcmp.le.f32.partialorder %v2863, %v2919
        %vm2992 = vcmp.le.f32.partialorder %v2864, %v2924
        %vm2993 = vcmp.le.f32.partialorder %v2865, %v2924
        %vm2994 = vcmp.le.f32.partialorder %v2866, %v2924
        %vm2995 = vcmp.le.f32.partialorder %v2867, %v2929
        %vm2996 = vcmp.le.f32.partialorder %v2868, %v2929
        %vm2997 = vcmp.le.f32.partialorder %v2869, %v2929
        %vm2998 = vcmp.le.f32.partialorder %v2870, %v2934
        %vm2999 = vcmp.le.f32.partialorder %v2871, %v2934
        %vm3000 = vcmp.le.f32.partialorder %v2872, %v2934
        %vm3001 = vcmp.le.f32.partialorder %v2873, %v2939
        %vm3002 = vcmp.le.f32.partialorder %v2874, %v2939
        %vm3003 = vcmp.le.f32.partialorder %v2875, %v2939
        %vm3004 = vcmp.le.f32.partialorder %v2876, %v2944
        %vm3005 = vcmp.le.f32.partialorder %v2877, %v2944
        %vm3006 = vcmp.le.f32.partialorder %v2878, %v2944
        %vm3007 = vcmp.le.f32.partialorder %v2879, %v2949
        %vm3008 = vcmp.le.f32.partialorder %v2880, %v2949
        %vm3009 = vcmp.le.f32.partialorder %v2881, %v2949
        %vm3010 = vcmp.le.f32.partialorder %v2882, %v2954
        %vm3011 = vcmp.le.f32.partialorder %v2883, %v2954
        %vm3012 = vcmp.le.f32.partialorder %v2884, %v2954
        %vm3013 = vcmp.le.f32.partialorder %v2885, %v2959
        %vm3014 = vcmp.le.f32.partialorder %v2886, %v2959
        %vm3015 = vcmp.le.f32.partialorder %v2887, %v2959
        %vm3016 = vcmp.le.f32.partialorder %v2888, %v2964
        %vm3017 = vcmp.le.f32.partialorder %v2889, %v2964
        %vm3018 = vcmp.le.f32.partialorder %v2890, %v2964
        %vm3019 = vcmp.le.f32.partialorder %v2891, %v2969
        %vm3020 = vcmp.le.f32.partialorder %v2892, %v2969
        %vm3021 = vcmp.le.f32.partialorder %v2893, %v2969
        %vm3022 = vcmp.le.f32.partialorder %v2894, %v2974
        %vm3023 = vcmp.le.f32.partialorder %v2895, %v2974
        %vm3024 = vcmp.le.f32.partialorder %v2896, %v2974
        %vm3025 = vcmp.le.f32.partialorder %v2897, %v2979
        %vm3026 = vcmp.le.f32.partialorder %v2898, %v2979
        %vm3027 = vcmp.le.f32.partialorder %v2899, %v2979
        %v3028 = vsel %vm2980, %v1358, 320
        %v3029 = vsel %vm2981, %v1359, 320
        %v3030 = vsel %vm2982, %v1360, 320
        %v3031 = vsel %vm2983, %v1358, 320
        %v3032 = vsel %vm2984, %v1359, 320
        %v3033 = vsel %vm2985, %v1360, 320
        %v3034 = vsel %vm2986, %v1358, 320
        %v3035 = vsel %vm2987, %v1359, 320
        %v3036 = vsel %vm2988, %v1360, 320
        %v3037 = vsel %vm2989, %v1358, 320
        %v3038 = vsel %vm2990, %v1359, 320
        %v3039 = vsel %vm2991, %v1360, 320
        %v3040 = vsel %vm2992, %v1358, 320
        %v3041 = vsel %vm2993, %v1359, 320
        %v3042 = vsel %vm2994, %v1360, 320
        %v3043 = vsel %vm2995, %v1358, 320
        %v3044 = vsel %vm2996, %v1359, 320
        %v3045 = vsel %vm2997, %v1360, 320
        %v3046 = vsel %vm2998, %v1358, 320
        %v3047 = vsel %vm2999, %v1359, 320
        %v3048 = vsel %vm3000, %v1360, 320
        %v3049 = vsel %vm3001, %v1358, 320
        %v3050 = vsel %vm3002, %v1359, 320
        %v3051 = vsel %vm3003, %v1360, 320
        %v3052 = vsel %vm3004, %v1358, 320
        %v3053 = vsel %vm3005, %v1359, 320
        %v3054 = vsel %vm3006, %v1360, 320
        %v3055 = vsel %vm3007, %v1358, 320
        %v3056 = vsel %vm3008, %v1359, 320
        %v3057 = vsel %vm3009, %v1360, 320
        %v3058 = vsel %vm3010, %v1358, 320
        %v3059 = vsel %vm3011, %v1359, 320
        %v3060 = vsel %vm3012, %v1360, 320
        %v3061 = vsel %vm3013, %v1358, 320
        %v3062 = vsel %vm3014, %v1359, 320
        %v3063 = vsel %vm3015, %v1360, 320
        %v3064 = vsel %vm3016, %v1358, 320
        %v3065 = vsel %vm3017, %v1359, 320
        %v3066 = vsel %vm3018, %v1360, 320
        %v3067 = vsel %vm3019, %v1358, 320
        %v3068 = vsel %vm3020, %v1359, 320
        %v3069 = vsel %vm3021, %v1360, 320
        %v3070 = vsel %vm3022, %v1358, 320
        %v3071 = vsel %vm3023, %v1359, 320
        %v3072 = vsel %vm3024, %v1360, 320
        %v3073 = vsel %vm3025, %v1358, 320
        %v3074 = vsel %vm3026, %v1359, 320
        %v3075 = vsel %vm3027, %v1360, 320
        %vm3076 = vcmp.lt.s32.totalorder %v3028, %v3029
        %v3077 = vsel %vm3076, %v3028, %v3029
        %v3078 = vsel %vm1277, %v3030, 2147483647
        %vm3079 = vcmp.lt.s32.totalorder %v3077, %v3078
        %v3080 = vsel %vm3079, %v3077, %v3078
        %v3081 = vand.u32 %v3080, 65535
        %v3082 = vshra.s32 %v3080, 16
        %v3083 = vcvt.s32.f32 %v3081
        %v3084 = vcvt.s32.f32 %v3082
        %3085 = vmin.xlane.f32.xlu0 %v3084
        %v3086 = vpop.xlane.xlu0 %3085
        %vm3087 = vcmp.eq.f32.partialorder %v3084, %v3086
        %v3088 = vsel %vm3087, %v3083, inf
        %3089 = vmin.xlane.f32.xlu0 %v3088
        %v3090 = vpop.xlane.xlu0 %3089
        %v3091 = vcvt.f32.s32 %v3090
        %v3092 = vcvt.f32.s32 %v3086
        %v3093 = vshll.u32 %v3092, 16
        %v3094 = vadd.s32 %v3093, %v3091
        %vm3095 = vcmp.lt.s32.totalorder %v3031, %v3032
        %v3096 = vsel %vm3095, %v3031, %v3032
        %v3097 = vsel %vm1277, %v3033, 2147483647
        %vm3098 = vcmp.lt.s32.totalorder %v3096, %v3097
        %v3099 = vsel %vm3098, %v3096, %v3097
        %v3100 = vand.u32 %v3099, 65535
        %v3101 = vshra.s32 %v3099, 16
        %v3102 = vcvt.s32.f32 %v3100
        %v3103 = vcvt.s32.f32 %v3101
        %3104 = vmin.xlane.f32.xlu0 %v3103
        %v3105 = vpop.xlane.xlu0 %3104
        %vm3106 = vcmp.eq.f32.partialorder %v3103, %v3105
        %v3107 = vsel %vm3106, %v3102, inf
        %3108 = vmin.xlane.f32.xlu0 %v3107
        %v3109 = vpop.xlane.xlu0 %3108
        %v3110 = vcvt.f32.s32 %v3109
        %v3111 = vcvt.f32.s32 %v3105
        %v3112 = vshll.u32 %v3111, 16
        %v3113 = vadd.s32 %v3112, %v3110
        %vm3114 = vcmp.lt.s32.totalorder %v3034, %v3035
        %v3115 = vsel %vm3114, %v3034, %v3035
        %v3116 = vsel %vm1277, %v3036, 2147483647
        %vm3117 = vcmp.lt.s32.totalorder %v3115, %v3116
        %v3118 = vsel %vm3117, %v3115, %v3116
        %v3119 = vand.u32 %v3118, 65535
        %v3120 = vshra.s32 %v3118, 16
        %v3121 = vcvt.s32.f32 %v3119
        %v3122 = vcvt.s32.f32 %v3120
        %3123 = vmin.xlane.f32.xlu0 %v3122
        %v3124 = vpop.xlane.xlu0 %3123
        %vm3125 = vcmp.eq.f32.partialorder %v3122, %v3124
        %v3126 = vsel %vm3125, %v3121, inf
        %3127 = vmin.xlane.f32.xlu0 %v3126
        %v3128 = vpop.xlane.xlu0 %3127
        %v3129 = vcvt.f32.s32 %v3128
        %v3130 = vcvt.f32.s32 %v3124
        %v3131 = vshll.u32 %v3130, 16
        %v3132 = vadd.s32 %v3131, %v3129
        %vm3133 = vcmp.lt.s32.totalorder %v3037, %v3038
        %v3134 = vsel %vm3133, %v3037, %v3038
        %v3135 = vsel %vm1277, %v3039, 2147483647
        %vm3136 = vcmp.lt.s32.totalorder %v3134, %v3135
        %v3137 = vsel %vm3136, %v3134, %v3135
        %v3138 = vand.u32 %v3137, 65535
        %v3139 = vshra.s32 %v3137, 16
        %v3140 = vcvt.s32.f32 %v3138
        %v3141 = vcvt.s32.f32 %v3139
        %3142 = vmin.xlane.f32.xlu0 %v3141
        %v3143 = vpop.xlane.xlu0 %3142
        %vm3144 = vcmp.eq.f32.partialorder %v3141, %v3143
        %v3145 = vsel %vm3144, %v3140, inf
        %3146 = vmin.xlane.f32.xlu0 %v3145
        %v3147 = vpop.xlane.xlu0 %3146
        %v3148 = vcvt.f32.s32 %v3147
        %v3149 = vcvt.f32.s32 %v3143
        %v3150 = vshll.u32 %v3149, 16
        %v3151 = vadd.s32 %v3150, %v3148
        %vm3152 = vcmp.lt.s32.totalorder %v3040, %v3041
        %v3153 = vsel %vm3152, %v3040, %v3041
        %v3154 = vsel %vm1277, %v3042, 2147483647
        %vm3155 = vcmp.lt.s32.totalorder %v3153, %v3154
        %v3156 = vsel %vm3155, %v3153, %v3154
        %v3157 = vand.u32 %v3156, 65535
        %v3158 = vshra.s32 %v3156, 16
        %v3159 = vcvt.s32.f32 %v3157
        %v3160 = vcvt.s32.f32 %v3158
        %3161 = vmin.xlane.f32.xlu0 %v3160
        %v3162 = vpop.xlane.xlu0 %3161
        %vm3163 = vcmp.eq.f32.partialorder %v3160, %v3162
        %v3164 = vsel %vm3163, %v3159, inf
        %3165 = vmin.xlane.f32.xlu0 %v3164
        %v3166 = vpop.xlane.xlu0 %3165
        %v3167 = vcvt.f32.s32 %v3166
        %v3168 = vcvt.f32.s32 %v3162
        %v3169 = vshll.u32 %v3168, 16
        %v3170 = vadd.s32 %v3169, %v3167
        %vm3171 = vcmp.lt.s32.totalorder %v3043, %v3044
        %v3172 = vsel %vm3171, %v3043, %v3044
        %v3173 = vsel %vm1277, %v3045, 2147483647
        %vm3174 = vcmp.lt.s32.totalorder %v3172, %v3173
        %v3175 = vsel %vm3174, %v3172, %v3173
        %v3176 = vand.u32 %v3175, 65535
        %v3177 = vshra.s32 %v3175, 16
        %v3178 = vcvt.s32.f32 %v3176
        %v3179 = vcvt.s32.f32 %v3177
        %3180 = vmin.xlane.f32.xlu0 %v3179
        %v3181 = vpop.xlane.xlu0 %3180
        %vm3182 = vcmp.eq.f32.partialorder %v3179, %v3181
        %v3183 = vsel %vm3182, %v3178, inf
        %3184 = vmin.xlane.f32.xlu0 %v3183
        %v3185 = vpop.xlane.xlu0 %3184
        %v3186 = vcvt.f32.s32 %v3185
        %v3187 = vcvt.f32.s32 %v3181
        %v3188 = vshll.u32 %v3187, 16
        %v3189 = vadd.s32 %v3188, %v3186
        %vm3190 = vcmp.lt.s32.totalorder %v3046, %v3047
        %v3191 = vsel %vm3190, %v3046, %v3047
        %v3192 = vsel %vm1277, %v3048, 2147483647
        %vm3193 = vcmp.lt.s32.totalorder %v3191, %v3192
        %v3194 = vsel %vm3193, %v3191, %v3192
        %v3195 = vand.u32 %v3194, 65535
        %v3196 = vshra.s32 %v3194, 16
        %v3197 = vcvt.s32.f32 %v3195
        %v3198 = vcvt.s32.f32 %v3196
        %3199 = vmin.xlane.f32.xlu0 %v3198
        %v3200 = vpop.xlane.xlu0 %3199
        %vm3201 = vcmp.eq.f32.partialorder %v3198, %v3200
        %v3202 = vsel %vm3201, %v3197, inf
        %3203 = vmin.xlane.f32.xlu0 %v3202
        %v3204 = vpop.xlane.xlu0 %3203
        %v3205 = vcvt.f32.s32 %v3204
        %v3206 = vcvt.f32.s32 %v3200
        %v3207 = vshll.u32 %v3206, 16
        %v3208 = vadd.s32 %v3207, %v3205
        %vm3209 = vcmp.lt.s32.totalorder %v3049, %v3050
        %v3210 = vsel %vm3209, %v3049, %v3050
        %v3211 = vsel %vm1277, %v3051, 2147483647
        %vm3212 = vcmp.lt.s32.totalorder %v3210, %v3211
        %v3213 = vsel %vm3212, %v3210, %v3211
        %v3214 = vand.u32 %v3213, 65535
        %v3215 = vshra.s32 %v3213, 16
        %v3216 = vcvt.s32.f32 %v3214
        %v3217 = vcvt.s32.f32 %v3215
        %3218 = vmin.xlane.f32.xlu0 %v3217
        %v3219 = vpop.xlane.xlu0 %3218
        %vm3220 = vcmp.eq.f32.partialorder %v3217, %v3219
        %v3221 = vsel %vm3220, %v3216, inf
        %3222 = vmin.xlane.f32.xlu0 %v3221
        %v3223 = vpop.xlane.xlu0 %3222
        %v3224 = vcvt.f32.s32 %v3223
        %v3225 = vcvt.f32.s32 %v3219
        %v3226 = vshll.u32 %v3225, 16
        %v3227 = vadd.s32 %v3226, %v3224
        %vm3228 = vcmp.lt.s32.totalorder %v3052, %v3053
        %v3229 = vsel %vm3228, %v3052, %v3053
        %v3230 = vsel %vm1277, %v3054, 2147483647
        %vm3231 = vcmp.lt.s32.totalorder %v3229, %v3230
        %v3232 = vsel %vm3231, %v3229, %v3230
        %v3233 = vand.u32 %v3232, 65535
        %v3234 = vshra.s32 %v3232, 16
        %v3235 = vcvt.s32.f32 %v3233
        %v3236 = vcvt.s32.f32 %v3234
        %3237 = vmin.xlane.f32.xlu0 %v3236
        %v3238 = vpop.xlane.xlu0 %3237
        %vm3239 = vcmp.eq.f32.partialorder %v3236, %v3238
        %v3240 = vsel %vm3239, %v3235, inf
        %3241 = vmin.xlane.f32.xlu0 %v3240
        %v3242 = vpop.xlane.xlu0 %3241
        %v3243 = vcvt.f32.s32 %v3242
        %v3244 = vcvt.f32.s32 %v3238
        %v3245 = vshll.u32 %v3244, 16
        %v3246 = vadd.s32 %v3245, %v3243
        %vm3247 = vcmp.lt.s32.totalorder %v3055, %v3056
        %v3248 = vsel %vm3247, %v3055, %v3056
        %v3249 = vsel %vm1277, %v3057, 2147483647
        %vm3250 = vcmp.lt.s32.totalorder %v3248, %v3249
        %v3251 = vsel %vm3250, %v3248, %v3249
        %v3252 = vand.u32 %v3251, 65535
        %v3253 = vshra.s32 %v3251, 16
        %v3254 = vcvt.s32.f32 %v3252
        %v3255 = vcvt.s32.f32 %v3253
        %3256 = vmin.xlane.f32.xlu0 %v3255
        %v3257 = vpop.xlane.xlu0 %3256
        %vm3258 = vcmp.eq.f32.partialorder %v3255, %v3257
        %v3259 = vsel %vm3258, %v3254, inf
        %3260 = vmin.xlane.f32.xlu0 %v3259
        %v3261 = vpop.xlane.xlu0 %3260
        %v3262 = vcvt.f32.s32 %v3261
        %v3263 = vcvt.f32.s32 %v3257
        %v3264 = vshll.u32 %v3263, 16
        %v3265 = vadd.s32 %v3264, %v3262
        %vm3266 = vcmp.lt.s32.totalorder %v3058, %v3059
        %v3267 = vsel %vm3266, %v3058, %v3059
        %v3268 = vsel %vm1277, %v3060, 2147483647
        %vm3269 = vcmp.lt.s32.totalorder %v3267, %v3268
        %v3270 = vsel %vm3269, %v3267, %v3268
        %v3271 = vand.u32 %v3270, 65535
        %v3272 = vshra.s32 %v3270, 16
        %v3273 = vcvt.s32.f32 %v3271
        %v3274 = vcvt.s32.f32 %v3272
        %3275 = vmin.xlane.f32.xlu0 %v3274
        %v3276 = vpop.xlane.xlu0 %3275
        %vm3277 = vcmp.eq.f32.partialorder %v3274, %v3276
        %v3278 = vsel %vm3277, %v3273, inf
        %3279 = vmin.xlane.f32.xlu0 %v3278
        %v3280 = vpop.xlane.xlu0 %3279
        %v3281 = vcvt.f32.s32 %v3280
        %v3282 = vcvt.f32.s32 %v3276
        %v3283 = vshll.u32 %v3282, 16
        %v3284 = vadd.s32 %v3283, %v3281
        %vm3285 = vcmp.lt.s32.totalorder %v3061, %v3062
        %v3286 = vsel %vm3285, %v3061, %v3062
        %v3287 = vsel %vm1277, %v3063, 2147483647
        %vm3288 = vcmp.lt.s32.totalorder %v3286, %v3287
        %v3289 = vsel %vm3288, %v3286, %v3287
        %v3290 = vand.u32 %v3289, 65535
        %v3291 = vshra.s32 %v3289, 16
        %v3292 = vcvt.s32.f32 %v3290
        %v3293 = vcvt.s32.f32 %v3291
        %3294 = vmin.xlane.f32.xlu0 %v3293
        %v3295 = vpop.xlane.xlu0 %3294
        %vm3296 = vcmp.eq.f32.partialorder %v3293, %v3295
        %v3297 = vsel %vm3296, %v3292, inf
        %3298 = vmin.xlane.f32.xlu0 %v3297
        %v3299 = vpop.xlane.xlu0 %3298
        %v3300 = vcvt.f32.s32 %v3299
        %v3301 = vcvt.f32.s32 %v3295
        %v3302 = vshll.u32 %v3301, 16
        %v3303 = vadd.s32 %v3302, %v3300
        %vm3304 = vcmp.lt.s32.totalorder %v3064, %v3065
        %v3305 = vsel %vm3304, %v3064, %v3065
        %v3306 = vsel %vm1277, %v3066, 2147483647
        %vm3307 = vcmp.lt.s32.totalorder %v3305, %v3306
        %v3308 = vsel %vm3307, %v3305, %v3306
        %v3309 = vand.u32 %v3308, 65535
        %v3310 = vshra.s32 %v3308, 16
        %v3311 = vcvt.s32.f32 %v3309
        %v3312 = vcvt.s32.f32 %v3310
        %3313 = vmin.xlane.f32.xlu0 %v3312
        %v3314 = vpop.xlane.xlu0 %3313
        %vm3315 = vcmp.eq.f32.partialorder %v3312, %v3314
        %v3316 = vsel %vm3315, %v3311, inf
        %3317 = vmin.xlane.f32.xlu0 %v3316
        %v3318 = vpop.xlane.xlu0 %3317
        %v3319 = vcvt.f32.s32 %v3318
        %v3320 = vcvt.f32.s32 %v3314
        %v3321 = vshll.u32 %v3320, 16
        %v3322 = vadd.s32 %v3321, %v3319
        %vm3323 = vcmp.lt.s32.totalorder %v3067, %v3068
        %v3324 = vsel %vm3323, %v3067, %v3068
        %v3325 = vsel %vm1277, %v3069, 2147483647
        %vm3326 = vcmp.lt.s32.totalorder %v3324, %v3325
        %v3327 = vsel %vm3326, %v3324, %v3325
        %v3328 = vand.u32 %v3327, 65535
        %v3329 = vshra.s32 %v3327, 16
        %v3330 = vcvt.s32.f32 %v3328
        %v3331 = vcvt.s32.f32 %v3329
        %3332 = vmin.xlane.f32.xlu0 %v3331
        %v3333 = vpop.xlane.xlu0 %3332
        %vm3334 = vcmp.eq.f32.partialorder %v3331, %v3333
        %v3335 = vsel %vm3334, %v3330, inf
        %3336 = vmin.xlane.f32.xlu0 %v3335
        %v3337 = vpop.xlane.xlu0 %3336
        %v3338 = vcvt.f32.s32 %v3337
        %v3339 = vcvt.f32.s32 %v3333
        %v3340 = vshll.u32 %v3339, 16
        %v3341 = vadd.s32 %v3340, %v3338
        %vm3342 = vcmp.lt.s32.totalorder %v3070, %v3071
        %v3343 = vsel %vm3342, %v3070, %v3071
        %v3344 = vsel %vm1277, %v3072, 2147483647
        %vm3345 = vcmp.lt.s32.totalorder %v3343, %v3344
        %v3346 = vsel %vm3345, %v3343, %v3344
        %v3347 = vand.u32 %v3346, 65535
        %v3348 = vshra.s32 %v3346, 16
        %v3349 = vcvt.s32.f32 %v3347
        %v3350 = vcvt.s32.f32 %v3348
        %3351 = vmin.xlane.f32.xlu0 %v3350
        %v3352 = vpop.xlane.xlu0 %3351
        %vm3353 = vcmp.eq.f32.partialorder %v3350, %v3352
        %v3354 = vsel %vm3353, %v3349, inf
        %3355 = vmin.xlane.f32.xlu0 %v3354
        %v3356 = vpop.xlane.xlu0 %3355
        %v3357 = vcvt.f32.s32 %v3356
        %v3358 = vcvt.f32.s32 %v3352
        %v3359 = vshll.u32 %v3358, 16
        %v3360 = vadd.s32 %v3359, %v3357
        %vm3361 = vcmp.lt.s32.totalorder %v3073, %v3074
        %v3362 = vsel %vm3361, %v3073, %v3074
        %v3363 = vsel %vm1277, %v3075, 2147483647
        %vm3364 = vcmp.lt.s32.totalorder %v3362, %v3363
        %v3365 = vsel %vm3364, %v3362, %v3363
        %v3366 = vand.u32 %v3365, 65535
        %v3367 = vshra.s32 %v3365, 16
        %v3368 = vcvt.s32.f32 %v3366
        %v3369 = vcvt.s32.f32 %v3367
        %3370 = vmin.xlane.f32.xlu0 %v3369
        %v3371 = vpop.xlane.xlu0 %3370
        %vm3372 = vcmp.eq.f32.partialorder %v3369, %v3371
        %v3373 = vsel %vm3372, %v3368, inf
        %3374 = vmin.xlane.f32.xlu0 %v3373
        %v3375 = vpop.xlane.xlu0 %3374
        %v3376 = vcvt.f32.s32 %v3375
        %v3377 = vcvt.f32.s32 %v3371
        %v3378 = vshll.u32 %v3377, 16
        %v3379 = vadd.s32 %v3378, %v3376
        %vm3380 = vcmp.eq.s32.totalorder %v1358, %v3094
        %vm3381 = vcmp.eq.s32.totalorder %v1359, %v3094
        %vm3382 = vcmp.eq.s32.totalorder %v1360, %v3094
        %vm3383 = vcmp.eq.s32.totalorder %v1358, %v3113
        %vm3384 = vcmp.eq.s32.totalorder %v1359, %v3113
        %vm3385 = vcmp.eq.s32.totalorder %v1360, %v3113
        %vm3386 = vcmp.eq.s32.totalorder %v1358, %v3132
        %vm3387 = vcmp.eq.s32.totalorder %v1359, %v3132
        %vm3388 = vcmp.eq.s32.totalorder %v1360, %v3132
        %vm3389 = vcmp.eq.s32.totalorder %v1358, %v3151
        %vm3390 = vcmp.eq.s32.totalorder %v1359, %v3151
        %vm3391 = vcmp.eq.s32.totalorder %v1360, %v3151
        %vm3392 = vcmp.eq.s32.totalorder %v1358, %v3170
        %vm3393 = vcmp.eq.s32.totalorder %v1359, %v3170
        %vm3394 = vcmp.eq.s32.totalorder %v1360, %v3170
        %vm3395 = vcmp.eq.s32.totalorder %v1358, %v3189
        %vm3396 = vcmp.eq.s32.totalorder %v1359, %v3189
        %vm3397 = vcmp.eq.s32.totalorder %v1360, %v3189
        %vm3398 = vcmp.eq.s32.totalorder %v1358, %v3208
        %vm3399 = vcmp.eq.s32.totalorder %v1359, %v3208
        %vm3400 = vcmp.eq.s32.totalorder %v1360, %v3208
        %vm3401 = vcmp.eq.s32.totalorder %v1358, %v3227
        %vm3402 = vcmp.eq.s32.totalorder %v1359, %v3227
        %vm3403 = vcmp.eq.s32.totalorder %v1360, %v3227
        %vm3404 = vcmp.eq.s32.totalorder %v1358, %v3246
        %vm3405 = vcmp.eq.s32.totalorder %v1359, %v3246
        %vm3406 = vcmp.eq.s32.totalorder %v1360, %v3246
        %vm3407 = vcmp.eq.s32.totalorder %v1358, %v3265
        %vm3408 = vcmp.eq.s32.totalorder %v1359, %v3265
        %vm3409 = vcmp.eq.s32.totalorder %v1360, %v3265
        %vm3410 = vcmp.eq.s32.totalorder %v1358, %v3284
        %vm3411 = vcmp.eq.s32.totalorder %v1359, %v3284
        %vm3412 = vcmp.eq.s32.totalorder %v1360, %v3284
        %vm3413 = vcmp.eq.s32.totalorder %v1358, %v3303
        %vm3414 = vcmp.eq.s32.totalorder %v1359, %v3303
        %vm3415 = vcmp.eq.s32.totalorder %v1360, %v3303
        %vm3416 = vcmp.eq.s32.totalorder %v1358, %v3322
        %vm3417 = vcmp.eq.s32.totalorder %v1359, %v3322
        %vm3418 = vcmp.eq.s32.totalorder %v1360, %v3322
        %vm3419 = vcmp.eq.s32.totalorder %v1358, %v3341
        %vm3420 = vcmp.eq.s32.totalorder %v1359, %v3341
        %vm3421 = vcmp.eq.s32.totalorder %v1360, %v3341
        %vm3422 = vcmp.eq.s32.totalorder %v1358, %v3360
        %vm3423 = vcmp.eq.s32.totalorder %v1359, %v3360
        %vm3424 = vcmp.eq.s32.totalorder %v1360, %v3360
        %vm3425 = vcmp.eq.s32.totalorder %v1358, %v3379
        %vm3426 = vcmp.eq.s32.totalorder %v1359, %v3379
        %vm3427 = vcmp.eq.s32.totalorder %v1360, %v3379
        %v3428 = vsel %vm3380, 1, 0
        %v3429 = vsel %vm3381, 1, 0
        %v3430 = vsel %vm3382, 1, 0
        %v3431 = vsel %vm3383, 1, 0
        %v3432 = vsel %vm3384, 1, 0
        %v3433 = vsel %vm3385, 1, 0
        %v3434 = vsel %vm3386, 1, 0
        %v3435 = vsel %vm3387, 1, 0
        %v3436 = vsel %vm3388, 1, 0
        %v3437 = vsel %vm3389, 1, 0
        %v3438 = vsel %vm3390, 1, 0
        %v3439 = vsel %vm3391, 1, 0
        %v3440 = vsel %vm3392, 1, 0
        %v3441 = vsel %vm3393, 1, 0
        %v3442 = vsel %vm3394, 1, 0
        %v3443 = vsel %vm3395, 1, 0
        %v3444 = vsel %vm3396, 1, 0
        %v3445 = vsel %vm3397, 1, 0
        %v3446 = vsel %vm3398, 1, 0
        %v3447 = vsel %vm3399, 1, 0
        %v3448 = vsel %vm3400, 1, 0
        %v3449 = vsel %vm3401, 1, 0
        %v3450 = vsel %vm3402, 1, 0
        %v3451 = vsel %vm3403, 1, 0
        %v3452 = vsel %vm3404, 1, 0
        %v3453 = vsel %vm3405, 1, 0
        %v3454 = vsel %vm3406, 1, 0
        %v3455 = vsel %vm3407, 1, 0
        %v3456 = vsel %vm3408, 1, 0
        %v3457 = vsel %vm3409, 1, 0
        %v3458 = vsel %vm3410, 1, 0
        %v3459 = vsel %vm3411, 1, 0
        %v3460 = vsel %vm3412, 1, 0
        %v3461 = vsel %vm3413, 1, 0
        %v3462 = vsel %vm3414, 1, 0
        %v3463 = vsel %vm3415, 1, 0
        %v3464 = vsel %vm3416, 1, 0
        %v3465 = vsel %vm3417, 1, 0
        %v3466 = vsel %vm3418, 1, 0
        %v3467 = vsel %vm3419, 1, 0
        %v3468 = vsel %vm3420, 1, 0
        %v3469 = vsel %vm3421, 1, 0
        %v3470 = vsel %vm3422, 1, 0
        %v3471 = vsel %vm3423, 1, 0
        %v3472 = vsel %vm3424, 1, 0
        %v3473 = vsel %vm3425, 1, 0
        %v3474 = vsel %vm3426, 1, 0
        %v3475 = vsel %vm3427, 1, 0
        %v3476 = vcvt.s32.f32 %v3428
        %v3477 = vcvt.s32.f32 %v3429
        %v3478 = vcvt.s32.f32 %v3430
        %v3479 = vcvt.s32.f32 %v3431
        %v3480 = vcvt.s32.f32 %v3432
        %v3481 = vcvt.s32.f32 %v3433
        %v3482 = vcvt.s32.f32 %v3434
        %v3483 = vcvt.s32.f32 %v3435
        %v3484 = vcvt.s32.f32 %v3436
        %v3485 = vcvt.s32.f32 %v3437
        %v3486 = vcvt.s32.f32 %v3438
        %v3487 = vcvt.s32.f32 %v3439
        %v3488 = vcvt.s32.f32 %v3440
        %v3489 = vcvt.s32.f32 %v3441
        %v3490 = vcvt.s32.f32 %v3442
        %v3491 = vcvt.s32.f32 %v3443
        %v3492 = vcvt.s32.f32 %v3444
        %v3493 = vcvt.s32.f32 %v3445
        %v3494 = vcvt.s32.f32 %v3446
        %v3495 = vcvt.s32.f32 %v3447
        %v3496 = vcvt.s32.f32 %v3448
        %v3497 = vcvt.s32.f32 %v3449
        %v3498 = vcvt.s32.f32 %v3450
        %v3499 = vcvt.s32.f32 %v3451
        %v3500 = vcvt.s32.f32 %v3452
        %v3501 = vcvt.s32.f32 %v3453
        %v3502 = vcvt.s32.f32 %v3454
        %v3503 = vcvt.s32.f32 %v3455
        %v3504 = vcvt.s32.f32 %v3456
        %v3505 = vcvt.s32.f32 %v3457
        %v3506 = vcvt.s32.f32 %v3458
        %v3507 = vcvt.s32.f32 %v3459
        %v3508 = vcvt.s32.f32 %v3460
        %v3509 = vcvt.s32.f32 %v3461
        %v3510 = vcvt.s32.f32 %v3462
        %v3511 = vcvt.s32.f32 %v3463
        %v3512 = vcvt.s32.f32 %v3464
        %v3513 = vcvt.s32.f32 %v3465
        %v3514 = vcvt.s32.f32 %v3466
        %v3515 = vcvt.s32.f32 %v3467
        %v3516 = vcvt.s32.f32 %v3468
        %v3517 = vcvt.s32.f32 %v3469
        %v3518 = vcvt.s32.f32 %v3470
        %v3519 = vcvt.s32.f32 %v3471
        %v3520 = vcvt.s32.f32 %v3472
        %v3521 = vcvt.s32.f32 %v3473
        %v3522 = vcvt.s32.f32 %v3474
        %v3523 = vcvt.s32.f32 %v3475
        %s3524 = scalar_lea.vmem %s5, 320
        %v3525 = vld [vmem:[%s3524] sm:$0xff]
        %v3526 = vld [vmem:[%s3524 + $0x8] sm:$0xff]
        %v3527 = vld [vmem:[%s3524 + $0x10] sm:$0xff]
        %v3528 = vld [vmem:[%s3524 + $0x18] sm:$0xff]
        %v3529 = vld [vmem:[%s3524 + $0x20] sm:$0xff]
        %v3530 = vld [vmem:[%s3524 + $0x28] sm:$0xff]
        %v3531 = vld [vmem:[%s3524 + $0x30] sm:$0xff]
        %v3532 = vld [vmem:[%s3524 + $0x38] sm:$0xff]
        %v3533 = vld [vmem:[%s3524 + $0x40] sm:$0xff]
        %v3534 = vld [vmem:[%s3524 + $0x48] sm:$0xff]
        %v3535 = vld [vmem:[%s3524 + $0x50] sm:$0xff]
        %v3536 = vld [vmem:[%s3524 + $0x58] sm:$0xff]
        %v3537 = vld [vmem:[%s3524 + $0x60] sm:$0xff]
        %v3538 = vld [vmem:[%s3524 + $0x68] sm:$0xff]
        %v3539 = vld [vmem:[%s3524 + $0x70] sm:$0xff]
        %v3540 = vld [vmem:[%s3524 + $0x78] sm:$0xff]
        %v3541 = vld [vmem:[%s3524 + $0x80] sm:$0xff]
        %v3542 = vld [vmem:[%s3524 + $0x88] sm:$0xff]
        %v3543 = vld [vmem:[%s3524 + $0x90] sm:$0xff]
        %v3544 = vld [vmem:[%s3524 + $0x98] sm:$0xff]
        %v3545 = vld [vmem:[%s3524 + $0xa0] sm:$0xff]
        %v3546 = vld [vmem:[%s3524 + $0xa8] sm:$0xff]
        %v3547 = vld [vmem:[%s3524 + $0xb0] sm:$0xff]
        %v3548 = vld [vmem:[%s3524 + $0xb8] sm:$0xff]
        %v3549 = vld [vmem:[%s3524 + $0xc0] sm:$0xff]
        %v3550 = vld [vmem:[%s3524 + $0xc8] sm:$0xff]
        %v3551 = vld [vmem:[%s3524 + $0xd0] sm:$0xff]
        %v3552 = vld [vmem:[%s3524 + $0xd8] sm:$0xff]
        %v3553 = vld [vmem:[%s3524 + $0xe0] sm:$0xff]
        %v3554 = vld [vmem:[%s3524 + $0xe8] sm:$0xff]
        %v3555 = vld [vmem:[%s3524 + $0xf0] sm:$0xff]
        %v3556 = vld [vmem:[%s3524 + $0xf8] sm:$0xff]
        %v3557 = vld [vmem:[%s3524 + $0x100] sm:$0xff]
        %v3558 = vld [vmem:[%s3524 + $0x108] sm:$0xff]
        %v3559 = vld [vmem:[%s3524 + $0x110] sm:$0xff]
        %v3560 = vld [vmem:[%s3524 + $0x118] sm:$0xff]
        %v3561 = vld [vmem:[%s3524 + $0x120] sm:$0xff]
        %v3562 = vld [vmem:[%s3524 + $0x128] sm:$0xff]
        %v3563 = vld [vmem:[%s3524 + $0x130] sm:$0xff]
        %v3564 = vld [vmem:[%s3524 + $0x138] sm:$0xff]
        %v3566 = vsel %vm1277, %v3478, 0
        %v3569 = vsel %vm1277, %v3481, 0
        %v3572 = vsel %vm1277, %v3484, 0
        %v3575 = vsel %vm1277, %v3487, 0
        %v3578 = vsel %vm1277, %v3490, 0
        %v3581 = vsel %vm1277, %v3493, 0
        %v3584 = vsel %vm1277, %v3496, 0
        %v3587 = vsel %vm1277, %v3499, 0
        %v3590 = vsel %vm1277, %v3502, 0
        %v3593 = vsel %vm1277, %v3505, 0
        %v3596 = vsel %vm1277, %v3508, 0
        %v3599 = vsel %vm1277, %v3511, 0
        %v3602 = vsel %vm1277, %v3514, 0
        %v3605 = vsel %vm1277, %v3517, 0
        %v3608 = vsel %vm1277, %v3520, 0
        %v3611 = vsel %vm1277, %v3523, 0
        %3613 = vmatprep.subr.mxu0 0.0
        %3614 = vmatpush1.msra.mxu0 %v3525
        %3615 = vmatprep.subr.mxu0 0.0
        %3616 = vmatpush1.msra.mxu0 %v3526
        %3617 = vmatprep.subr.mxu0 0.0
        %3618 = vmatpush1.msra.mxu0 %v3527
        %3619 = vmatprep.subr.mxu0 0.0
        %3620 = vmatpush1.msra.mxu0 %v3528
        %3621 = vmatprep.subr.mxu0 0.0
        %3622 = vmatpush1.msra.mxu0 %v3529
        %3623 = vmatprep.subr.mxu0 0.0
        %3624 = vmatpush1.msra.mxu0 %v3530
        %3625 = vmatprep.subr.mxu0 0.0
        %3626 = vmatpush1.msra.mxu0 %v3531
        %3627 = vmatprep.subr.mxu0 0.0
        %3628 = vmatpush1.msra.mxu0 %v3532
        %3629 = vmatprep.subr.mxu0 0.0
        %3630 = vmatpush1.msra.mxu0 %v3533
        %3631 = vmatprep.subr.mxu0 0.0
        %3632 = vmatpush1.msra.mxu0 %v3534
        %3633 = vmatprep.subr.mxu0 0.0
        %3634 = vmatpush1.msra.mxu0 %v3535
        %3635 = vmatprep.subr.mxu0 0.0
        %3636 = vmatpush1.msra.mxu0 %v3536
        %3637 = vmatprep.subr.mxu0 0.0
        %3638 = vmatpush1.msra.mxu0 %v3537
        %3639 = vmatprep.subr.mxu0 0.0
        %3640 = vmatpush1.msra.mxu0 %v3538
        %3641 = vmatprep.subr.mxu0 0.0
        %3642 = vmatpush1.msra.mxu0 %v3539
        %3643 = vmatprep.subr.mxu0 0.0
        %3644 = vmatpush1.msra.mxu0 %v3540
        %3645 = vmatprep.subr.mxu0 0.0
        %3646 = vmatpush1.msra.mxu0 %v3541
        %3647 = vmatprep.subr.mxu0 0.0
        %3648 = vmatpush1.msra.mxu0 %v3542
        %3649 = vmatprep.subr.mxu0 0.0
        %3650 = vmatpush1.msra.mxu0 %v3543
        %3651 = vmatprep.subr.mxu0 0.0
        %3652 = vmatpush1.msra.mxu0 %v3544
        %3653 = vmatprep.subr.mxu0 0.0
        %3654 = vmatpush1.msra.mxu0 %v3545
        %3655 = vmatprep.subr.mxu0 0.0
        %3656 = vmatpush1.msra.mxu0 %v3546
        %3657 = vmatprep.subr.mxu0 0.0
        %3658 = vmatpush1.msra.mxu0 %v3547
        %3659 = vmatprep.subr.mxu0 0.0
        %3660 = vmatpush1.msra.mxu0 %v3548
        %3661 = vmatprep.subr.mxu0 0.0
        %3662 = vmatpush1.msra.mxu0 %v3549
        %3663 = vmatprep.subr.mxu0 0.0
        %3664 = vmatpush1.msra.mxu0 %v3550
        %3665 = vmatprep.subr.mxu0 0.0
        %3666 = vmatpush1.msra.mxu0 %v3551
        %3667 = vmatprep.subr.mxu0 0.0
        %3668 = vmatpush1.msra.mxu0 %v3552
        %3669 = vmatprep.subr.mxu0 0.0
        %3670 = vmatpush1.msra.mxu0 %v3553
        %3671 = vmatprep.subr.mxu0 0.0
        %3672 = vmatpush1.msra.mxu0 %v3554
        %3673 = vmatprep.subr.mxu0 0.0
        %3674 = vmatpush1.msra.mxu0 %v3555
        %3675 = vmatprep.subr.mxu0 0.0
        %3676 = vmatpush1.msra.mxu0 %v3556
        %3677 = vmatprep.mubr.f32.mxu0 %v3477
        %3678 = vmatmul.mubr.f32.gmra.mrb[0].mxu0 %v3476
        %v3679 = vpop.f32.mrb[0].mxu0
        %v3680 = vadd.f32 0.0, %v3679
        %v3681 = vpop.f32.mrb[0].mxu0
        %3682 = vmatprep.mubr.f32.mxu0 %v3480
        %3683 = vmatmul.mubr.f32.gmra.mrb[0].mxu0 %v3479
        %v3684 = vpop.f32.mrb[0].mxu0
        %v3685 = vadd.f32 0.0, %v3684
        %v3686 = vpop.f32.mrb[0].mxu0
        %3687 = vmatprep.mubr.f32.mxu0 %v3483
        %3688 = vmatmul.mubr.f32.gmra.mrb[0].mxu0 %v3482
        %v3689 = vpop.f32.mrb[0].mxu0
        %v3690 = vadd.f32 0.0, %v3689
        %v3691 = vpop.f32.mrb[0].mxu0
        %3692 = vmatprep.mubr.f32.mxu0 %v3486
        %3693 = vmatmul.mubr.f32.gmra.mrb[0].mxu0 %v3485
        %v3694 = vpop.f32.mrb[0].mxu0
        %v3695 = vadd.f32 0.0, %v3694
        %v3696 = vpop.f32.mrb[0].mxu0
        %3697 = vmatprep.mubr.f32.mxu0 %v3489
        %3698 = vmatmul.mubr.f32.gmra.mrb[0].mxu0 %v3488
        %v3699 = vpop.f32.mrb[0].mxu0
        %v3700 = vadd.f32 0.0, %v3699
        %v3701 = vpop.f32.mrb[0].mxu0
        %3702 = vmatprep.mubr.f32.mxu0 %v3492
        %3703 = vmatmul.mubr.f32.gmra.mrb[0].mxu0 %v3491
        %v3704 = vpop.f32.mrb[0].mxu0
        %v3705 = vadd.f32 0.0, %v3704
        %v3706 = vpop.f32.mrb[0].mxu0
        %3707 = vmatprep.mubr.f32.mxu0 %v3495
        %3708 = vmatmul.mubr.f32.gmra.mrb[0].mxu0 %v3494
        %v3709 = vpop.f32.mrb[0].mxu0
        %v3710 = vadd.f32 0.0, %v3709
        %v3711 = vpop.f32.mrb[0].mxu0
        %3712 = vmatprep.mubr.f32.mxu0 %v3498
        %3713 = vmatmul.mubr.f32.gmra.mrb[0].mxu0 %v3497
        %v3714 = vpop.f32.mrb[0].mxu0
        %v3715 = vadd.f32 0.0, %v3714
        %v3716 = vpop.f32.mrb[0].mxu0
        %3717 = vmatprep.mubr.f32.mxu0 %v3501
        %3718 = vmatmul.mubr.f32.gmra.mrb[0].mxu0 %v3500
        %v3719 = vpop.f32.mrb[0].mxu0
        %v3720 = vadd.f32 0.0, %v3719
        %v3721 = vpop.f32.mrb[0].mxu0
        %3722 = vmatprep.mubr.f32.mxu0 %v3504
        %3723 = vmatmul.mubr.f32.gmra.mrb[0].mxu0 %v3503
        %v3724 = vpop.f32.mrb[0].mxu0
        %v3725 = vadd.f32 0.0, %v3724
        %v3726 = vpop.f32.mrb[0].mxu0
        %3727 = vmatprep.mubr.f32.mxu0 %v3507
        %3728 = vmatmul.mubr.f32.gmra.mrb[0].mxu0 %v3506
        %v3729 = vpop.f32.mrb[0].mxu0
        %v3730 = vadd.f32 0.0, %v3729
        %v3731 = vpop.f32.mrb[0].mxu0
        %3732 = vmatprep.mubr.f32.mxu0 %v3510
        %3733 = vmatmul.mubr.f32.gmra.mrb[0].mxu0 %v3509
        %v3734 = vpop.f32.mrb[0].mxu0
        %v3735 = vadd.f32 0.0, %v3734
        %v3736 = vpop.f32.mrb[0].mxu0
        %3737 = vmatprep.mubr.f32.mxu0 %v3513
        %3738 = vmatmul.mubr.f32.gmra.mrb[0].mxu0 %v3512
        %v3739 = vpop.f32.mrb[0].mxu0
        %v3740 = vadd.f32 0.0, %v3739
        %v3741 = vpop.f32.mrb[0].mxu0
        %3742 = vmatprep.mubr.f32.mxu0 %v3516
        %3743 = vmatmul.mubr.f32.gmra.mrb[0].mxu0 %v3515
        %v3744 = vpop.f32.mrb[0].mxu0
        %v3745 = vadd.f32 0.0, %v3744
        %v3746 = vpop.f32.mrb[0].mxu0
        %3747 = vmatprep.mubr.f32.mxu0 %v3519
        %3748 = vmatmul.mubr.f32.gmra.mrb[0].mxu0 %v3518
        %v3749 = vpop.f32.mrb[0].mxu0
        %v3750 = vadd.f32 0.0, %v3749
        %v3751 = vpop.f32.mrb[0].mxu0
        %3752 = vmatprep.mubr.f32.mxu0 %v3522
        %3753 = vmatmul.mubr.f32.gmra.mrb[0].mxu0 %v3521
        %v3754 = vpop.f32.mrb[0].mxu0
        %v3755 = vadd.f32 0.0, %v3754
        %v3756 = vpop.f32.mrb[0].mxu0
        %3757 = vdwg.mxu0
        %3758 = vmatprep.subr.mxu0 0.0
        %3759 = vmatpush1.msra.mxu0 %v3557
        %3760 = vmatprep.subr.mxu0 0.0
        %3761 = vmatpush1.msra.mxu0 %v3558
        %3762 = vmatprep.subr.mxu0 0.0
        %3763 = vmatpush1.msra.mxu0 %v3559
        %3764 = vmatprep.subr.mxu0 0.0
        %3765 = vmatpush1.msra.mxu0 %v3560
        %3766 = vmatprep.subr.mxu0 0.0
        %3767 = vmatpush1.msra.mxu0 %v3561
        %3768 = vmatprep.subr.mxu0 0.0
        %3769 = vmatpush1.msra.mxu0 %v3562
        %3770 = vmatprep.subr.mxu0 0.0
        %3771 = vmatpush1.msra.mxu0 %v3563
        %3772 = vmatprep.subr.mxu0 0.0
        %3773 = vmatpush1.msra.mxu0 %v3564
        %3774 = vmatprep.subr.mxu0 0.0
        %3775 = vmatpush1.msra.mxu0 0.0
        %3776 = vmatprep.subr.mxu0 0.0
        %3777 = vmatpush1.msra.mxu0 0.0
        %3778 = vmatprep.subr.mxu0 0.0
        %3779 = vmatpush1.msra.mxu0 0.0
        %3780 = vmatprep.subr.mxu0 0.0
        %3781 = vmatpush1.msra.mxu0 0.0
        %3782 = vmatprep.subr.mxu0 0.0
        %3783 = vmatpush1.msra.mxu0 0.0
        %3784 = vmatprep.subr.mxu0 0.0
        %3785 = vmatpush1.msra.mxu0 0.0
        %3786 = vmatprep.subr.mxu0 0.0
        %3787 = vmatpush1.msra.mxu0 0.0
        %3788 = vmatprep.subr.mxu0 0.0
        %3789 = vmatpush1.msra.mxu0 0.0
        %3790 = vmatprep.subr.mxu0 0.0
        %3791 = vmatpush1.msra.mxu0 0.0
        %3792 = vmatprep.subr.mxu0 0.0
        %3793 = vmatpush1.msra.mxu0 0.0
        %3794 = vmatprep.subr.mxu0 0.0
        %3795 = vmatpush1.msra.mxu0 0.0
        %3796 = vmatprep.subr.mxu0 0.0
        %3797 = vmatpush1.msra.mxu0 0.0
        %3798 = vmatprep.subr.mxu0 0.0
        %3799 = vmatpush1.msra.mxu0 0.0
        %3800 = vmatprep.subr.mxu0 0.0
        %3801 = vmatpush1.msra.mxu0 0.0
        %3802 = vmatprep.subr.mxu0 0.0
        %3803 = vmatpush1.msra.mxu0 0.0
        %3804 = vmatprep.subr.mxu0 0.0
        %3805 = vmatpush1.msra.mxu0 0.0
        %3806 = vmatprep.subr.mxu0 0.0
        %3807 = vmatpush1.msra.mxu0 0.0
        %3808 = vmatprep.subr.mxu0 0.0
        %3809 = vmatpush1.msra.mxu0 0.0
        %3810 = vmatprep.subr.mxu0 0.0
        %3811 = vmatpush1.msra.mxu0 0.0
        %3812 = vmatprep.subr.mxu0 0.0
        %3813 = vmatpush1.msra.mxu0 0.0
        %3814 = vmatprep.subr.mxu0 0.0
        %3815 = vmatpush1.msra.mxu0 0.0
        %3816 = vmatprep.subr.mxu0 0.0
        %3817 = vmatpush1.msra.mxu0 0.0
        %3818 = vmatprep.subr.mxu0 0.0
        %3819 = vmatpush1.msra.mxu0 0.0
        %3820 = vmatprep.subr.mxu0 0.0
        %3821 = vmatpush1.msra.mxu0 0.0
        %3822 = vmatprep.mubr.f32.mxu0 0.0
        %3823 = vmatmul.mubr.f32.gmra.mrb[0].mxu0 %v3566
        %v3824 = vpop.f32.mrb[0].mxu0
        %v3825 = vadd.f32 %v3680, %v3824
        %v3826 = vpop.f32.mrb[0].mxu0
        %3827 = vmatprep.mubr.f32.mxu0 0.0
        %3828 = vmatmul.mubr.f32.gmra.mrb[0].mxu0 %v3569
        %v3829 = vpop.f32.mrb[0].mxu0
        %v3830 = vadd.f32 %v3685, %v3829
        %v3831 = vpop.f32.mrb[0].mxu0
        %3832 = vmatprep.mubr.f32.mxu0 0.0
        %3833 = vmatmul.mubr.f32.gmra.mrb[0].mxu0 %v3572
        %v3834 = vpop.f32.mrb[0].mxu0
        %v3835 = vadd.f32 %v3690, %v3834
        %v3836 = vpop.f32.mrb[0].mxu0
        %3837 = vmatprep.mubr.f32.mxu0 0.0
        %3838 = vmatmul.mubr.f32.gmra.mrb[0].mxu0 %v3575
        %v3839 = vpop.f32.mrb[0].mxu0
        %v3840 = vadd.f32 %v3695, %v3839
        %v3841 = vpop.f32.mrb[0].mxu0
        %3842 = vmatprep.mubr.f32.mxu0 0.0
        %3843 = vmatmul.mubr.f32.gmra.mrb[0].mxu0 %v3578
        %v3844 = vpop.f32.mrb[0].mxu0
        %v3845 = vadd.f32 %v3700, %v3844
        %v3846 = vpop.f32.mrb[0].mxu0
        %3847 = vmatprep.mubr.f32.mxu0 0.0
        %3848 = vmatmul.mubr.f32.gmra.mrb[0].mxu0 %v3581
        %v3849 = vpop.f32.mrb[0].mxu0
        %v3850 = vadd.f32 %v3705, %v3849
        %v3851 = vpop.f32.mrb[0].mxu0
        %3852 = vmatprep.mubr.f32.mxu0 0.0
        %3853 = vmatmul.mubr.f32.gmra.mrb[0].mxu0 %v3584
        %v3854 = vpop.f32.mrb[0].mxu0
        %v3855 = vadd.f32 %v3710, %v3854
        %v3856 = vpop.f32.mrb[0].mxu0
        %3857 = vmatprep.mubr.f32.mxu0 0.0
        %3858 = vmatmul.mubr.f32.gmra.mrb[0].mxu0 %v3587
        %v3859 = vpop.f32.mrb[0].mxu0
        %v3860 = vadd.f32 %v3715, %v3859
        %v3861 = vpop.f32.mrb[0].mxu0
        %3862 = vmatprep.mubr.f32.mxu0 0.0
        %3863 = vmatmul.mubr.f32.gmra.mrb[0].mxu0 %v3590
        %v3864 = vpop.f32.mrb[0].mxu0
        %v3865 = vadd.f32 %v3720, %v3864
        %v3866 = vpop.f32.mrb[0].mxu0
        %3867 = vmatprep.mubr.f32.mxu0 0.0
        %3868 = vmatmul.mubr.f32.gmra.mrb[0].mxu0 %v3593
        %v3869 = vpop.f32.mrb[0].mxu0
        %v3870 = vadd.f32 %v3725, %v3869
        %v3871 = vpop.f32.mrb[0].mxu0
        %3872 = vmatprep.mubr.f32.mxu0 0.0
        %3873 = vmatmul.mubr.f32.gmra.mrb[0].mxu0 %v3596
        %v3874 = vpop.f32.mrb[0].mxu0
        %v3875 = vadd.f32 %v3730, %v3874
        %v3876 = vpop.f32.mrb[0].mxu0
        %3877 = vmatprep.mubr.f32.mxu0 0.0
        %3878 = vmatmul.mubr.f32.gmra.mrb[0].mxu0 %v3599
        %v3879 = vpop.f32.mrb[0].mxu0
        %v3880 = vadd.f32 %v3735, %v3879
        %v3881 = vpop.f32.mrb[0].mxu0
        %3882 = vmatprep.mubr.f32.mxu0 0.0
        %3883 = vmatmul.mubr.f32.gmra.mrb[0].mxu0 %v3602
        %v3884 = vpop.f32.mrb[0].mxu0
        %v3885 = vadd.f32 %v3740, %v3884
        %v3886 = vpop.f32.mrb[0].mxu0
        %3887 = vmatprep.mubr.f32.mxu0 0.0
        %3888 = vmatmul.mubr.f32.gmra.mrb[0].mxu0 %v3605
        %v3889 = vpop.f32.mrb[0].mxu0
        %v3890 = vadd.f32 %v3745, %v3889
        %v3891 = vpop.f32.mrb[0].mxu0
        %3892 = vmatprep.mubr.f32.mxu0 0.0
        %3893 = vmatmul.mubr.f32.gmra.mrb[0].mxu0 %v3608
        %v3894 = vpop.f32.mrb[0].mxu0
        %v3895 = vadd.f32 %v3750, %v3894
        %v3896 = vpop.f32.mrb[0].mxu0
        %3897 = vmatprep.mubr.f32.mxu0 0.0
        %3898 = vmatmul.mubr.f32.gmra.mrb[0].mxu0 %v3611
        %v3899 = vpop.f32.mrb[0].mxu0
        %v3900 = vadd.f32 %v3755, %v3899
        %v3901 = vpop.f32.mrb[0].mxu0
        %3902 = vdwg.mxu0
        %v3903 = vadd.f32 %v2205, %v793
        %v3904 = vadd.f32 %v3825, %v2415
        %v3905 = vadd.f32 %v2210, %v794
        %v3906 = vadd.f32 %v3830, %v2416
        %v3907 = vadd.f32 %v2215, %v795
        %v3908 = vadd.f32 %v3835, %v2417
        %v3909 = vadd.f32 %v2220, %v796
        %v3910 = vadd.f32 %v3840, %v2418
        %v3911 = vadd.f32 %v2225, %v797
        %v3912 = vadd.f32 %v3845, %v2419
        %v3913 = vadd.f32 %v2230, %v798
        %v3914 = vadd.f32 %v3850, %v2420
        %v3915 = vadd.f32 %v2235, %v799
        %v3916 = vadd.f32 %v3855, %v2421
        %v3917 = vadd.f32 %v2240, %v800
        %v3918 = vadd.f32 %v3860, %v2422
        %v3919 = vadd.f32 %v2245, %v801
        %v3920 = vadd.f32 %v3865, %v2423
        %v3921 = vadd.f32 %v2250, %v802
        %v3922 = vadd.f32 %v3870, %v2424
        %v3923 = vadd.f32 %v2255, %v803
        %v3924 = vadd.f32 %v3875, %v2425
        %v3925 = vadd.f32 %v2260, %v804
        %v3926 = vadd.f32 %v3880, %v2426
        %v3927 = vadd.f32 %v2265, %v805
        %v3928 = vadd.f32 %v3885, %v2427
        %v3929 = vadd.f32 %v2270, %v806
        %v3930 = vadd.f32 %v3890, %v2428
        %v3931 = vadd.f32 %v2275, %v807
        %v3932 = vadd.f32 %v3895, %v2429
        %v3933 = vadd.f32 %v2280, %v808
        %v3934 = vadd.f32 %v3900, %v2430
        %v3935 = vsub.f32 %v3903, %v793
        %v3936 = vsub.f32 %v3904, %v2415
        %v3937 = vsub.f32 %v3905, %v794
        %v3938 = vsub.f32 %v3906, %v2416
        %v3939 = vsub.f32 %v3907, %v795
        %v3940 = vsub.f32 %v3908, %v2417
        %v3941 = vsub.f32 %v3909, %v796
        %v3942 = vsub.f32 %v3910, %v2418
        %v3943 = vsub.f32 %v3911, %v797
        %v3944 = vsub.f32 %v3912, %v2419
        %v3945 = vsub.f32 %v3913, %v798
        %v3946 = vsub.f32 %v3914, %v2420
        %v3947 = vsub.f32 %v3915, %v799
        %v3948 = vsub.f32 %v3916, %v2421
        %v3949 = vsub.f32 %v3917, %v800
        %v3950 = vsub.f32 %v3918, %v2422
        %v3951 = vsub.f32 %v3919, %v801
        %v3952 = vsub.f32 %v3920, %v2423
        %v3953 = vsub.f32 %v3921, %v802
        %v3954 = vsub.f32 %v3922, %v2424
        %v3955 = vsub.f32 %v3923, %v803
        %v3956 = vsub.f32 %v3924, %v2425
        %v3957 = vsub.f32 %v3925, %v804
        %v3958 = vsub.f32 %v3926, %v2426
        %v3959 = vsub.f32 %v3927, %v805
        %v3960 = vsub.f32 %v3928, %v2427
        %v3961 = vsub.f32 %v3929, %v806
        %v3962 = vsub.f32 %v3930, %v2428
        %v3963 = vsub.f32 %v3931, %v807
        %v3964 = vsub.f32 %v3932, %v2429
        %v3965 = vsub.f32 %v3933, %v808
        %v3966 = vsub.f32 %v3934, %v2430
        %3967 = vst [vmem:[%s371] sm:$0xff] %v3935
        %3968 = vst [vmem:[%s371 + $0x8] sm:$0xff] %v3936
        %3969 = vst [vmem:[%s371 + $0x10] sm:$0xff] %v3937
        %3970 = vst [vmem:[%s371 + $0x18] sm:$0xff] %v3938
        %3971 = vst [vmem:[%s371 + $0x20] sm:$0xff] %v3939
        %3972 = vst [vmem:[%s371 + $0x28] sm:$0xff] %v3940
        %3973 = vst [vmem:[%s371 + $0x30] sm:$0xff] %v3941
        %3974 = vst [vmem:[%s371 + $0x38] sm:$0xff] %v3942
        %3975 = vst [vmem:[%s371 + $0x40] sm:$0xff] %v3943
        %3976 = vst [vmem:[%s371 + $0x48] sm:$0xff] %v3944
        %3977 = vst [vmem:[%s371 + $0x50] sm:$0xff] %v3945
        %3978 = vst [vmem:[%s371 + $0x58] sm:$0xff] %v3946
        %3979 = vst [vmem:[%s371 + $0x60] sm:$0xff] %v3947
        %3980 = vst [vmem:[%s371 + $0x68] sm:$0xff] %v3948
        %3981 = vst [vmem:[%s371 + $0x70] sm:$0xff] %v3949
        %3982 = vst [vmem:[%s371 + $0x78] sm:$0xff] %v3950
        %3983 = vst [vmem:[%s371 + $0x80] sm:$0xff] %v3951
        %3984 = vst [vmem:[%s371 + $0x88] sm:$0xff] %v3952
        %3985 = vst [vmem:[%s371 + $0x90] sm:$0xff] %v3953
        %3986 = vst [vmem:[%s371 + $0x98] sm:$0xff] %v3954
        %3987 = vst [vmem:[%s371 + $0xa0] sm:$0xff] %v3955
        %3988 = vst [vmem:[%s371 + $0xa8] sm:$0xff] %v3956
        %3989 = vst [vmem:[%s371 + $0xb0] sm:$0xff] %v3957
        %3990 = vst [vmem:[%s371 + $0xb8] sm:$0xff] %v3958
        %3991 = vst [vmem:[%s371 + $0xc0] sm:$0xff] %v3959
        %3992 = vst [vmem:[%s371 + $0xc8] sm:$0xff] %v3960
        %3993 = vst [vmem:[%s371 + $0xd0] sm:$0xff] %v3961
        %3994 = vst [vmem:[%s371 + $0xd8] sm:$0xff] %v3962
        %3995 = vst [vmem:[%s371 + $0xe0] sm:$0xff] %v3963
        %3996 = vst [vmem:[%s371 + $0xe8] sm:$0xff] %v3964
        %3997 = vst [vmem:[%s371 + $0xf0] sm:$0xff] %v3965
        %3998 = vst [vmem:[%s371 + $0xf8] sm:$0xff] %v3966
        %3999 = vst [vmem:[%s378] sm:$0xff] %v793
        %4000 = vst [vmem:[%s378 + $0x8] sm:$0xff] %v2415
        %4001 = vst [vmem:[%s378 + $0x10] sm:$0xff] %v794
        %4002 = vst [vmem:[%s378 + $0x18] sm:$0xff] %v2416
        %4003 = vst [vmem:[%s378 + $0x20] sm:$0xff] %v795
        %4004 = vst [vmem:[%s378 + $0x28] sm:$0xff] %v2417
        %4005 = vst [vmem:[%s378 + $0x30] sm:$0xff] %v796
        %4006 = vst [vmem:[%s378 + $0x38] sm:$0xff] %v2418
        %4007 = vst [vmem:[%s378 + $0x40] sm:$0xff] %v797
        %4008 = vst [vmem:[%s378 + $0x48] sm:$0xff] %v2419
        %4009 = vst [vmem:[%s378 + $0x50] sm:$0xff] %v798
        %4010 = vst [vmem:[%s378 + $0x58] sm:$0xff] %v2420
        %4011 = vst [vmem:[%s378 + $0x60] sm:$0xff] %v799
        %4012 = vst [vmem:[%s378 + $0x68] sm:$0xff] %v2421
        %4013 = vst [vmem:[%s378 + $0x70] sm:$0xff] %v800
        %4014 = vst [vmem:[%s378 + $0x78] sm:$0xff] %v2422
        %4015 = vst [vmem:[%s378 + $0x80] sm:$0xff] %v801
        %4016 = vst [vmem:[%s378 + $0x88] sm:$0xff] %v2423
        %4017 = vst [vmem:[%s378 + $0x90] sm:$0xff] %v802
        %4018 = vst [vmem:[%s378 + $0x98] sm:$0xff] %v2424
        %4019 = vst [vmem:[%s378 + $0xa0] sm:$0xff] %v803
        %4020 = vst [vmem:[%s378 + $0xa8] sm:$0xff] %v2425
        %4021 = vst [vmem:[%s378 + $0xb0] sm:$0xff] %v804
        %4022 = vst [vmem:[%s378 + $0xb8] sm:$0xff] %v2426
        %4023 = vst [vmem:[%s378 + $0xc0] sm:$0xff] %v805
        %4024 = vst [vmem:[%s378 + $0xc8] sm:$0xff] %v2427
        %4025 = vst [vmem:[%s378 + $0xd0] sm:$0xff] %v806
        %4026 = vst [vmem:[%s378 + $0xd8] sm:$0xff] %v2428
        %4027 = vst [vmem:[%s378 + $0xe0] sm:$0xff] %v807
        %4028 = vst [vmem:[%s378 + $0xe8] sm:$0xff] %v2429
        %4029 = vst [vmem:[%s378 + $0xf0] sm:$0xff] %v808
        %4030 = vst [vmem:[%s378 + $0xf8] sm:$0xff] %v2430
        %4031 = vst [vmem:[%s385] sm:$0xff] %v2205
        %4032 = vst [vmem:[%s385 + $0x8] sm:$0xff] %v3825
        %4033 = vst [vmem:[%s385 + $0x10] sm:$0xff] %v2210
        %4034 = vst [vmem:[%s385 + $0x18] sm:$0xff] %v3830
        %4035 = vst [vmem:[%s385 + $0x20] sm:$0xff] %v2215
        %4036 = vst [vmem:[%s385 + $0x28] sm:$0xff] %v3835
        %4037 = vst [vmem:[%s385 + $0x30] sm:$0xff] %v2220
        %4038 = vst [vmem:[%s385 + $0x38] sm:$0xff] %v3840
        %4039 = vst [vmem:[%s385 + $0x40] sm:$0xff] %v2225
        %4040 = vst [vmem:[%s385 + $0x48] sm:$0xff] %v3845
        %4041 = vst [vmem:[%s385 + $0x50] sm:$0xff] %v2230
        %4042 = vst [vmem:[%s385 + $0x58] sm:$0xff] %v3850
        %4043 = vst [vmem:[%s385 + $0x60] sm:$0xff] %v2235
        %4044 = vst [vmem:[%s385 + $0x68] sm:$0xff] %v3855
        %4045 = vst [vmem:[%s385 + $0x70] sm:$0xff] %v2240
        %4046 = vst [vmem:[%s385 + $0x78] sm:$0xff] %v3860
        %4047 = vst [vmem:[%s385 + $0x80] sm:$0xff] %v2245
        %4048 = vst [vmem:[%s385 + $0x88] sm:$0xff] %v3865
        %4049 = vst [vmem:[%s385 + $0x90] sm:$0xff] %v2250
        %4050 = vst [vmem:[%s385 + $0x98] sm:$0xff] %v3870
        %4051 = vst [vmem:[%s385 + $0xa0] sm:$0xff] %v2255
        %4052 = vst [vmem:[%s385 + $0xa8] sm:$0xff] %v3875
        %4053 = vst [vmem:[%s385 + $0xb0] sm:$0xff] %v2260
        %4054 = vst [vmem:[%s385 + $0xb8] sm:$0xff] %v3880
        %4055 = vst [vmem:[%s385 + $0xc0] sm:$0xff] %v2265
        %4056 = vst [vmem:[%s385 + $0xc8] sm:$0xff] %v3885
        %4057 = vst [vmem:[%s385 + $0xd0] sm:$0xff] %v2270
        %4058 = vst [vmem:[%s385 + $0xd8] sm:$0xff] %v3890
        %4059 = vst [vmem:[%s385 + $0xe0] sm:$0xff] %v2275
        %4060 = vst [vmem:[%s385 + $0xe8] sm:$0xff] %v3895
        %4061 = vst [vmem:[%s385 + $0xf0] sm:$0xff] %v2280
        %4062 = vst [vmem:[%s385 + $0xf8] sm:$0xff] %v3900
        %vm4063 = vcmask 7168
        %v4064 = vsel %vm4063, %v1475, %v3094
        %v4065 = vsel %vm4063, %v1494, %v3113
        %v4066 = vsel %vm4063, %v1513, %v3132
        %v4067 = vsel %vm4063, %v1532, %v3151
        %v4068 = vsel %vm4063, %v1551, %v3170
        %v4069 = vsel %vm4063, %v1570, %v3189
        %v4070 = vsel %vm4063, %v1589, %v3208
        %v4071 = vsel %vm4063, %v1608, %v3227
        %v4072 = vsel %vm4063, %v1627, %v3246
        %v4073 = vsel %vm4063, %v1646, %v3265
        %v4074 = vsel %vm4063, %v1665, %v3284
        %v4075 = vsel %vm4063, %v1684, %v3303
        %v4076 = vsel %vm4063, %v1703, %v3322
        %v4077 = vsel %vm4063, %v1722, %v3341
        %v4078 = vsel %vm4063, %v1741, %v3360
        %v4079 = vsel %vm4063, %v1760, %v3379
        %vm4080 = vcmask 15360
        %4081 = vst.msk [vmem:[%s402] sm:$0xff] %vm4080, %v4064
        %4082 = vst.msk [vmem:[%s402 + $0x8] sm:$0xff] %vm4080, %v4065
        %4083 = vst.msk [vmem:[%s402 + $0x10] sm:$0xff] %vm4080, %v4066
        %4084 = vst.msk [vmem:[%s402 + $0x18] sm:$0xff] %vm4080, %v4067
        %4085 = vst.msk [vmem:[%s402 + $0x20] sm:$0xff] %vm4080, %v4068
        %4086 = vst.msk [vmem:[%s402 + $0x28] sm:$0xff] %vm4080, %v4069
        %4087 = vst.msk [vmem:[%s402 + $0x30] sm:$0xff] %vm4080, %v4070
        %4088 = vst.msk [vmem:[%s402 + $0x38] sm:$0xff] %vm4080, %v4071
        %4089 = vst.msk [vmem:[%s402 + $0x40] sm:$0xff] %vm4080, %v4072
        %4090 = vst.msk [vmem:[%s402 + $0x48] sm:$0xff] %vm4080, %v4073
        %4091 = vst.msk [vmem:[%s402 + $0x50] sm:$0xff] %vm4080, %v4074
        %4092 = vst.msk [vmem:[%s402 + $0x58] sm:$0xff] %vm4080, %v4075
        %4093 = vst.msk [vmem:[%s402 + $0x60] sm:$0xff] %vm4080, %v4076
        %4094 = vst.msk [vmem:[%s402 + $0x68] sm:$0xff] %vm4080, %v4077
        %4095 = vst.msk [vmem:[%s402 + $0x70] sm:$0xff] %vm4080, %v4078
        %4096 = vst.msk [vmem:[%s402 + $0x78] sm:$0xff] %vm4080, %v4079
        %s4097 = sand.u32 %s189, 1
        %s4098 = scalar_lea.sflag [#allocation4], %s4097
        %s4099 = sand.u32 %s189, 1
        %s4100 = smul.addr %s4099, 256
        %s4101 = scalar_lea.vmem [#allocation5], %s4100
        %s4102 = sand.u32 %s29, 1
        %s4103 = scalar_lea.sflag [#allocation7], %s4102
        %s4104 = sand.u32 %s215, 1
        %s4105 = smul.addr %s4104, 256
        %s4106 = scalar_lea.vmem [#allocation6], %s4105
        %s4107 = sand.u32 %s29, 1
        %s4108 = scalar_lea.sflag [#allocation7], %s4107
        %s4109 = sand.u32 %s241, 1
        %s4110 = smul.addr %s4109, 256
        %s4111 = scalar_lea.vmem [#allocation8], %s4110
        %p4112 = scmp.lt.s32.totalorder %s29, 1
        %s4113 = scalar_select %p4112, %s29, 1
        %s4114 = smul.addr %s4113, 16
        %s4115 = smul.addr %s4114, 8
        %s4116 = scalar_lea.vmem %s10, %s4115
        // Predicated region
        $region53: #{tpu_custom_call.1} parent=47 // pred_check
          %p4117 = pneg %p199
        $region54: #{tpu_custom_call.1} parent=47 // pred_check_branch
          %4119 = sbr.rel (%p4117) target = $region56
        $region55: #{tpu_custom_call.1} parent=47 // pred_region
          %s4121 = ssub.s32 4096, 4096
          %4122 = vsyncadd %s4098, %s4121
          %s4123 = smul.addr %s29, 32
          %s4124 = smul.addr %s4123, 128
          %s4125 = scalar_lea.hbm %s7, %s4124
          %s4126 = sshll.u32 %s4101, 4
          %s4127 = int_to_ptr.vmem [resolvable:$true] %s4126
          %4132 = dma.vmem_to_hbm [thread:$0]  %s4127, 4096, %s4125, %s4098, 256, 256, 16
        $region56: #{tpu_custom_call.1} parent=47 // pred_fallthru
          _
        // Predicated region
        $region57: #{tpu_custom_call.1} parent=47 // pred_check
          %p4133 = pneg %p225
        $region58: #{tpu_custom_call.1} parent=47 // pred_check_branch
          %4135 = sbr.rel (%p4133) target = $region60
        $region59: #{tpu_custom_call.1} parent=47 // pred_region
          %s4137 = ssub.s32 4096, 4096
          %4138 = vsyncadd %s4103, %s4137
          %s4139 = smul.addr %s29, 32
          %s4140 = smul.addr %s4139, 128
          %s4141 = scalar_lea.hbm %s8, %s4140
          %s4142 = sshll.u32 %s4106, 4
          %s4143 = int_to_ptr.vmem [resolvable:$true] %s4142
          %4148 = dma.vmem_to_hbm [thread:$0]  %s4143, 4096, %s4141, %s4103, 256, 256, 16
        $region60: #{tpu_custom_call.1} parent=47 // pred_fallthru
          _
        // Predicated region
        $region61: #{tpu_custom_call.1} parent=47 // pred_check
          %p4149 = pneg %p251
        $region62: #{tpu_custom_call.1} parent=47 // pred_check_branch
          %4151 = sbr.rel (%p4149) target = $region64
        $region63: #{tpu_custom_call.1} parent=47 // pred_region
          %s4153 = ssub.s32 4096, 4096
          %4154 = vsyncadd %s4108, %s4153
          %s4155 = smul.addr %s29, 32
          %s4156 = smul.addr %s4155, 128
          %s4157 = scalar_lea.hbm %s9, %s4156
          %s4158 = sshll.u32 %s4111, 4
          %s4159 = int_to_ptr.vmem [resolvable:$true] %s4158
          %4164 = dma.vmem_to_hbm [thread:$0]  %s4159, 4096, %s4157, %s4108, 256, 256, 16
        $region64: #{tpu_custom_call.1} parent=47 // pred_fallthru
          _
        // Predicated region
        $region65: #{tpu_custom_call.1} parent=47 // pred_check
          %p4165 = pneg %p277
        $region66: #{tpu_custom_call.1} parent=47 // pred_check_branch
          %4167 = sbr.rel (%p4165) target = $region68
        $region67: #{tpu_custom_call.1} parent=47 // pred_region
          _
        $region68: #{tpu_custom_call.1} parent=47 // pred_fallthru
          _
      $region48: #{tpu_custom_call.1} parent=5 // pred_fallthru
        _
      %p4168 = scmp.le.s32.totalorder 2, %s24
      // Predicated region
      $region69: #{tpu_custom_call.1} parent=5 // pred_check
        %p4169 = pneg %p4168
      $region70: #{tpu_custom_call.1} parent=5 // pred_check_branch
        %4171 = sbr.rel (%p4169) target = $region72
      $region71: #{tpu_custom_call.1} parent=5 // pred_region
        %s4172 = ssub.s32 %s24, 2
        // Predicated region
        $region73: #{tpu_custom_call.1} parent=71 // pred_check
          %p4173 = pneg %p205
        $region74: #{tpu_custom_call.1} parent=71 // pred_check_branch
          %4175 = sbr.rel (%p4173) target = $region76
        $region75: #{tpu_custom_call.1} parent=71 // pred_region
          %s4176 = sand.u32 %s190, 1
          %s4177 = scalar_lea.sflag [#allocation4], %s4176
          %s4178 = sand.u32 %s190, 1
          %s4179 = smul.addr %s4178, 256
          %s4180 = scalar_lea.vmem [#allocation5], %s4179
          %4181 = dma.done %s4177, 4096
        $region76: #{tpu_custom_call.1} parent=71 // pred_fallthru
          _
        // Predicated region
        $region77: #{tpu_custom_call.1} parent=71 // pred_check
          %p4182 = pneg %p231
        $region78: #{tpu_custom_call.1} parent=71 // pred_check_branch
          %4184 = sbr.rel (%p4182) target = $region80
        $region79: #{tpu_custom_call.1} parent=71 // pred_region
          %s4185 = sand.u32 %s30, 1
          %s4186 = scalar_lea.sflag [#allocation7], %s4185
          %s4187 = sand.u32 %s216, 1
          %s4188 = smul.addr %s4187, 256
          %s4189 = scalar_lea.vmem [#allocation6], %s4188
          %4190 = dma.done %s4186, 4096
        $region80: #{tpu_custom_call.1} parent=71 // pred_fallthru
          _
        // Predicated region
        $region81: #{tpu_custom_call.1} parent=71 // pred_check
          %p4191 = pneg %p257
        $region82: #{tpu_custom_call.1} parent=71 // pred_check_branch
          %4193 = sbr.rel (%p4191) target = $region84
        $region83: #{tpu_custom_call.1} parent=71 // pred_region
          %s4194 = sand.u32 %s30, 1
          %s4195 = scalar_lea.sflag [#allocation7], %s4194
          %s4196 = sand.u32 %s242, 1
          %s4197 = smul.addr %s4196, 256
          %s4198 = scalar_lea.vmem [#allocation8], %s4197
          %4199 = dma.done %s4195, 4096
        $region84: #{tpu_custom_call.1} parent=71 // pred_fallthru
          _
        // Predicated region
        $region85: #{tpu_custom_call.1} parent=71 // pred_check
          %p4200 = pneg %p283
        $region86: #{tpu_custom_call.1} parent=71 // pred_check_branch
          %4202 = sbr.rel (%p4200) target = $region88
        $region87: #{tpu_custom_call.1} parent=71 // pred_region
          %p4203 = scmp.lt.s32.totalorder %s30, 1
          %s4204 = scalar_select %p4203, %s30, 1
          %s4205 = smul.addr %s4204, 16
          %s4206 = smul.addr %s4205, 8
          %s4207 = scalar_lea.vmem %s10, %s4206
        $region88: #{tpu_custom_call.1} parent=71 // pred_fallthru
          _
      $region72: #{tpu_custom_call.1} parent=5 // pred_fallthru
        _
    $region6: #{tpu_custom_call.1} parent=1 // loop_footer
      %s28 = sadd.s32 1, %s24
    $region7: #{tpu_custom_call.1} parent=1 // loop_footer_branch
      %23 = sbr.rel target = $region3
    $region8: #{tpu_custom_call.1} parent=1 // loop_exit
      _
    %4208 = vsyncpa [#allocation3], 1
    %s4209 = scalar_lea.sflag [#allocation3], 1
    %4210 = vsyncpa %s4209, 1
    %4211 = vsyncpa [#allocation4], 1
    %s4212 = scalar_lea.sflag [#allocation4], 1
    %4213 = vsyncpa %s4212, 1
    %4214 = vsyncpa [#allocation7], 1
    %s4215 = scalar_lea.sflag [#allocation7], 1
    %4216 = vsyncpa %s4215, 1

</llo_original>
